<compile_context>
chip_gen: v7x
topology: tpu7x:2x2x1
jax: 0.10.0
libtpu: 0.0.40
codegen_flags: <defaults>
</compile_context>

<pallas_src>
import inspect
import numpy as np
import jax
import jax.numpy as jnp
from jax.experimental import pallas as pl
from jax.experimental.pallas import tpu as pltpu

# ---------------------------- model constants ------------------------------
L = 12                    # conv length (forced by forward's reshape(-1, 1, 12))
C_OUT = 5                 # conv out channels
K = 3                     # conv kernel size
L_POOL = L // 2           # 6
FEATS = C_OUT * L_POOL    # 30 flattened activations per conv row
FEATS_P = 32              # padded to a sublane-friendly multiple of 8
HIDDEN = 128
OUT_SIZE = 8
OUT_SLAB = FEATS_P * OUT_SIZE   # 256-lane dense output slab per batch row
TILE_N_MAX = 512          # batch tile upper bound (~20 MiB intermediates/tile, fits v7x)

# Single-buffering support for constant operands (review item #1).
try:
    _HAS_PIPELINE_MODE = (
        hasattr(pl, "Buffered")
        and "pipeline_mode" in inspect.signature(pl.BlockSpec).parameters
    )
except (TypeError, ValueError):   # pragma: no cover
    _HAS_PIPELINE_MODE = False


# ------------------------------- kernel ------------------------------------
def fused_kernel(x_ref, wc_ref, bc_ref, w1e_ref, b1t_ref, wbig_ref, b2t_ref, o_ref):
    """Conv+pool+ReLU+MLP for one batch tile, all as lane-dense 2D ops.

    x_ref   : (T, 12)  f32   input rows
    wc_ref  : (12, 64) f32   [W_even | W_odd] banded conv weights (cols 30,31,62,63 zero)
    bc_ref  : (1, 32)  f32   conv bias per (c_out, pooled_pos), zero-padded
    w1e_ref : (32, 4096) bf16 expansion with Linear(1,128) folded in:
                              w1e[f, f*128+k] = w1[k]
    b1t_ref : (1, 4096) f32  Linear(1,128) bias tiled 32x
    wbig_ref: (4096, 256) bf16 block-diagonal Linear(128,8) weight (32 blocks)
    b2t_ref : (1, 256) f32   Linear(128,8) bias tiled 32x
    o_ref   : (T, 256) f32   out[t, f*8 + o]
    """
    x = x_ref[...]                                                       # (T, 12)
    y = jnp.dot(x, wc_ref[...], preferred_element_type=jnp.float32)      # (T, 64)
    # maxpool over even/odd conv positions, bias after max (equivalent), then ReLU
    acts = jnp.maximum(
        jnp.maximum(y[:, :FEATS_P], y[:, FEATS_P:]) + bc_ref[...], 0.0)  # (T, 32) f32
    # Linear(1,128) for every feature scalar: bf16 expansion matmul (w1 folded in),
    # f32 accumulate, bias + ReLU in f32.
    h = jnp.maximum(
        jnp.dot(acts.astype(jnp.bfloat16), w1e_ref[...],
                preferred_element_type=jnp.float32) + b1t_ref[...], 0.0)  # (T, 4096)
    # block-diagonal second linear -> lane-dense output slab
    o_ref[...] = (jnp.dot(h.astype(jnp.bfloat16), wbig_ref[...],
                          preferred_element_type=jnp.float32)
                  + b2t_ref[...])                                         # (T, 256)


# ------------------------- host-side weight transforms ----------------------
def _cdiv(a, b):
    return -(-a // b)


def _round_up(a, b):
    return _cdiv(a, b) * b


def prepare_params(params):
    """Precompute (once, in numpy) the dense weight matrices used by the kernel."""
    conv_w = np.asarray(params["conv_w"], np.float32)          # (5, 3)
    conv_b = np.asarray(params["conv_b"], np.float32)          # (5,)
    w1 = np.asarray(params["w1"], np.float32).reshape(1, HIDDEN)
    b1 = np.asarray(params["b1"], np.float32).reshape(1, HIDDEN)
    w2 = np.asarray(params["w2"], np.float32)                  # (128, 8)
    b2 = np.asarray(params["b2"], np.float32).reshape(1, OUT_SIZE)

    # Banded conv weights: column m = co*6 + j; even/odd pooled positions.
    we = np.zeros((L, FEATS_P), np.float32)
    wo = np.zeros((L, FEATS_P), np.float32)
    for co in range(C_OUT):
        for j in range(L_POOL):
            m = co * L_POOL + j
            for k in range(K):
                ie = 2 * j + k - 1          # padding=1 -> input index (even pos)
                io = 2 * j + k              # odd pooled position
                if 0 <= ie < L:
                    we[ie, m] += conv_w[co, k]
                if 0 <= io < L:
                    wo[io, m] += conv_w[co, k]
    wc = np.concatenate([we, wo], axis=1)                      # (12, 64)

    bc = np.zeros((1, FEATS_P), np.float32)
    bc[0, :FEATS] = np.repeat(conv_b, L_POOL)

    # Expansion with Linear(1,128) weight folded in (review item #2).
    w1e = np.zeros((FEATS_P, FEATS_P * HIDDEN), np.float32)    # (32, 4096)
    for f in range(FEATS_P):
        w1e[f, f * HIDDEN:(f + 1) * HIDDEN] = w1[0]
    b1_tile = np.tile(b1, (1, FEATS_P))                        # (1, 4096)

    w_big = np.zeros((FEATS_P * HIDDEN, OUT_SLAB), np.float32)  # (4096, 256)
    for f in range(FEATS_P):
        w_big[f * HIDDEN:(f + 1) * HIDDEN, f * OUT_SIZE:(f + 1) * OUT_SIZE] = w2
    b2_tile = np.tile(b2, (1, FEATS_P))                        # (1, 256)

    return {
        "wc": jnp.asarray(wc),                                 # f32 (tiny)
        "bc": jnp.asarray(bc),                                 # f32
        "w1e": jnp.asarray(w1e, jnp.bfloat16),                 # bf16 (review item #3)
        "b1t": jnp.asarray(b1_tile),                           # f32
        "wbig": jnp.asarray(w_big, jnp.bfloat16),              # bf16
        "b2t": jnp.asarray(b2_tile),                           # f32
    }


# ------------------------------- forward ------------------------------------
def _const_spec(shape):
    """Constant weights: block index never changes -> single buffer (item #1)."""
    if _HAS_PIPELINE_MODE:
        return pl.BlockSpec(shape, lambda i: (0, 0), pipeline_mode=pl.Buffered(1))
    return pl.BlockSpec(shape, lambda i: (0, 0))


@jax.jit
def mycnn1_forward(x, prep):
    x2 = x.reshape(-1, L).astype(jnp.float32)   # torch reshape(-1, 1, 12), C=1 squeezed
    n = x2.shape[0]

    # Balanced tiles to minimize padding (item #8); force >=2 grid steps when
    # there is enough work so both v7x TensorCores get used (item #7).
    num_tiles = _cdiv(n, TILE_N_MAX)
    if num_tiles == 1 and n >= 64:
        num_tiles = 2
    tile_n = _round_up(_cdiv(n, num_tiles), 8)
    n_pad = _round_up(n, tile_n)
    if n_pad != n:
        x2 = jnp.pad(x2, ((0, n_pad - n), (0, 0)))

    out_slab = pl.pallas_call(
        fused_kernel,
        out_shape=jax.ShapeDtypeStruct((n_pad, OUT_SLAB), jnp.float32),
        grid=(n_pad // tile_n,),
        in_specs=[
            pl.BlockSpec((tile_n, L), lambda i: (i, 0)),       # only pipelined input
            _const_spec((L, 2 * FEATS_P)),
            _const_spec((1, FEATS_P)),
            _const_spec((FEATS_P, FEATS_P * HIDDEN)),
            _const_spec((1, FEATS_P * HIDDEN)),
            _const_spec((FEATS_P * HIDDEN, OUT_SLAB)),
            _const_spec((1, OUT_SLAB)),
        ],
        out_specs=pl.BlockSpec((tile_n, OUT_SLAB), lambda i: (i, 0)),
        compiler_params=pltpu.CompilerParams(
            dimension_semantics=("parallel",),        # shards grid across v7x's 2 TCs
            vmem_limit_bytes=48 * 1024 * 1024,        # headroom on v5e/v6e/v7x
        ),
    )(x2, prep["wc"], prep["bc"], prep["w1e"], prep["b1t"], prep["wbig"], prep["b2t"])

    # Torch-shaped result: (n,256) -> (n,32,8) -> drop 2 padded features -> (n*30, 8).
    # Consumers that can work on the raw lane-dense slab should take out_slab[:n]
    # directly and skip this extra HBM pass (review item #9).
    out = out_slab[:n].reshape(n, FEATS_P, OUT_SIZE)[:, :FEATS, :]
    return out.reshape(n * FEATS, OUT_SIZE)


# ------------------------------ reference -----------------------------------
def reference_forward(x, params):
    """Pure-JAX reference mirroring the PyTorch forward."""
    xi = x.reshape(-1, 1, L)
    n = xi.shape[0]
    xp = jnp.pad(xi, ((0, 0), (0, 0), (1, 1)))
    y = jnp.stack(
        [
            sum(params["conv_w"][co, k] * xp[:, 0, k:k + L] for k in range(K))
            + params["conv_b"][co]
            for co in range(C_OUT)
        ],
        axis=1,
    )  # (n, 5, 12)
    pooled = jnp.max(y.reshape(n, C_OUT, L_POOL, 2), axis=-1)
    act = jnp.maximum(pooled, 0.0).reshape(-1, 1)
    h = jnp.maximum(act @ params["w1"] + params["b1"][None, :], 0.0)
    return h @ params["w2"] + params["b2"][None, :]


def init_params(key):
    kc, kcb, k1, k1b, k2, k2b = jax.random.split(key, 6)
    b_conv = 1.0 / np.sqrt(1 * K)       # fan_in = in_channels * kernel_size
    b_l1 = 1.0 / np.sqrt(1.0)           # fan_in = 1
    b_l2 = 1.0 / np.sqrt(HIDDEN)        # fan_in = 128
    return {
        "conv_w": jax.random.uniform(kc, (C_OUT, K), jnp.float32, -b_conv, b_conv),
        "conv_b": jax.random.uniform(kcb, (C_OUT,), jnp.float32, -b_conv, b_conv),
        "w1": jax.random.uniform(k1, (1, HIDDEN), jnp.float32, -b_l1, b_l1),
        "b1": jax.random.uniform(k1b, (HIDDEN,), jnp.float32, -b_l1, b_l1),
        "w2": jax.random.uniform(k2, (HIDDEN, OUT_SIZE), jnp.float32, -b_l2, b_l2),
        "b2": jax.random.uniform(k2b, (OUT_SIZE,), jnp.float32, -b_l2, b_l2),
    }


if __name__ == "__main__":
    key = jax.random.PRNGKey(0)
    kp, kx, kx2 = jax.random.split(key, 3)
    params = init_params(kp)
    prep = prepare_params(params)   # host-side weight transforms, done once

    # bf16 weights on the two wide matmuls -> bf16-level agreement vs f32 reference.
    TOL = 1e-2

    # Small batch (2 sequences of length 12; model reshapes to (2, 1, 12)).
    x = jax.random.normal(kx, (2, L), jnp.float32)
    out = jax.block_until_ready(mycnn1_forward(x, prep))
    ref = reference_forward(x, params)
    assert out.shape == (2 * FEATS, OUT_SIZE), out.shape
    err = float(jnp.max(jnp.abs(out - ref)))
    assert jnp.allclose(out, ref, rtol=TOL, atol=TOL), err

    # Ragged batch exercising the balanced-tile path (2 grid steps + batch padding).
    xb = jax.random.normal(kx2, (70, L), jnp.float32)
    outb = jax.block_until_ready(mycnn1_forward(xb, prep))
    refb = reference_forward(xb, params)
    assert outb.shape == (70 * FEATS, OUT_SIZE), outb.shape
    errb = float(jnp.max(jnp.abs(outb - refb)))
    assert jnp.allclose(outb, refb, rtol=TOL, atol=TOL), errb

    print("KERNEL_OK")
</pallas_src>

<mosaic_0001>
module attributes {stable_mosaic.version = 11 : i64} {
  func.func @fused_kernel(%arg0: i32, %arg1: memref<8x12xf32, #tpu.memory_space<vmem>>, %arg2: memref<12x64xf32, #tpu.memory_space<vmem>>, %arg3: memref<1x32xf32, #tpu.memory_space<vmem>>, %arg4: memref<32x4096xbf16, #tpu.memory_space<vmem>>, %arg5: memref<1x4096xf32, #tpu.memory_space<vmem>>, %arg6: memref<4096x256xbf16, #tpu.memory_space<vmem>>, %arg7: memref<1x256xf32, #tpu.memory_space<vmem>>, %arg8: memref<8x256xf32, #tpu.memory_space<vmem>>) attributes {dimension_semantics = [#tpu.dimension_semantics<parallel>], iteration_bounds = array<i64: 1>, scalar_prefetch = 0 : i64, scratch_operands = 0 : i64, tpu.core_type = #tpu.core_type<tc>, window_params = [{transform_indices = @transform_0, window_bounds = array<i64: 8, 12>}, {pipeline_mode = #tpu.pipeline_mode<synchronous>, transform_indices = @transform_1, window_bounds = array<i64: 12, 64>}, {pipeline_mode = #tpu.pipeline_mode<synchronous>, transform_indices = @transform_2, window_bounds = array<i64: 1, 32>}, {pipeline_mode = #tpu.pipeline_mode<synchronous>, transform_indices = @transform_3, window_bounds = array<i64: 32, 4096>}, {pipeline_mode = #tpu.pipeline_mode<synchronous>, transform_indices = @transform_4, window_bounds = array<i64: 1, 4096>}, {pipeline_mode = #tpu.pipeline_mode<synchronous>, transform_indices = @transform_5, window_bounds = array<i64: 4096, 256>}, {pipeline_mode = #tpu.pipeline_mode<synchronous>, transform_indices = @transform_6, window_bounds = array<i64: 1, 256>}, {transform_indices = @transform_7, window_bounds = array<i64: 8, 256>}]} {
    %c0 = arith.constant 0 : index
    %c0_0 = arith.constant 0 : index
    %0 = vector.load %arg1[%c0, %c0_0] : memref<8x12xf32, #tpu.memory_space<vmem>>, vector<8x12xf32>
    %c0_1 = arith.constant 0 : index
    %c0_2 = arith.constant 0 : index
    %1 = vector.load %arg2[%c0_1, %c0_2] : memref<12x64xf32, #tpu.memory_space<vmem>>, vector<12x64xf32>
    %cst = arith.constant dense<0.000000e+00> : vector<8x64xf32>
    %2 = tpu.matmul %0, %1, %cst {dimension_numbers = #tpu.dot_dimension_numbers<[1], [0], [0], [1], [0, 0, 1, 1], [], []>} : vector<8x12xf32>, vector<12x64xf32>, vector<8x64xf32> -> vector<8x64xf32>
    %3 = vector.extract_strided_slice %2 {offsets = [0, 0], sizes = [8, 32], strides = [1, 1]} : vector<8x64xf32> to vector<8x32xf32>
    %4 = vector.extract_strided_slice %2 {offsets = [0, 32], sizes = [8, 32], strides = [1, 1]} : vector<8x64xf32> to vector<8x32xf32>
    %5 = arith.maximumf %3, %4 : vector<8x32xf32>
    %c0_3 = arith.constant 0 : index
    %c0_4 = arith.constant 0 : index
    %6 = vector.load %arg3[%c0_3, %c0_4] : memref<1x32xf32, #tpu.memory_space<vmem>>, vector<1x32xf32>
    %7 = vector.broadcast %6 : vector<1x32xf32> to vector<8x32xf32>
    %8 = arith.addf %5, %7 : vector<8x32xf32>
    %cst_5 = arith.constant 0.000000e+00 : f32
    %9 = vector.broadcast %cst_5 : f32 to vector<8x32xf32>
    %10 = arith.maximumf %8, %9 : vector<8x32xf32>
    %11 = arith.truncf %10 : vector<8x32xf32> to vector<8x32xbf16>
    %c0_6 = arith.constant 0 : index
    %c0_7 = arith.constant 0 : index
    %12 = vector.load %arg4[%c0_6, %c0_7] : memref<32x4096xbf16, #tpu.memory_space<vmem>>, vector<32x4096xbf16>
    %cst_8 = arith.constant dense<0.000000e+00> : vector<8x4096xf32>
    %13 = tpu.matmul %11, %12, %cst_8 {dimension_numbers = #tpu.dot_dimension_numbers<[1], [0], [0], [1], [0, 0, 1, 1], [], []>} : vector<8x32xbf16>, vector<32x4096xbf16>, vector<8x4096xf32> -> vector<8x4096xf32>
    %c0_9 = arith.constant 0 : index
    %c0_10 = arith.constant 0 : index
    %14 = vector.load %arg5[%c0_9, %c0_10] : memref<1x4096xf32, #tpu.memory_space<vmem>>, vector<1x4096xf32>
    %15 = vector.broadcast %14 : vector<1x4096xf32> to vector<8x4096xf32>
    %16 = arith.addf %13, %15 : vector<8x4096xf32>
    %cst_11 = arith.constant 0.000000e+00 : f32
    %17 = vector.broadcast %cst_11 : f32 to vector<8x4096xf32>
    %18 = arith.maximumf %16, %17 : vector<8x4096xf32>
    %19 = arith.truncf %18 : vector<8x4096xf32> to vector<8x4096xbf16>
    %c0_12 = arith.constant 0 : index
    %c0_13 = arith.constant 0 : index
    %20 = vector.load %arg6[%c0_12, %c0_13] : memref<4096x256xbf16, #tpu.memory_space<vmem>>, vector<4096x256xbf16>
    %cst_14 = arith.constant dense<0.000000e+00> : vector<8x256xf32>
    %21 = tpu.matmul %19, %20, %cst_14 {dimension_numbers = #tpu.dot_dimension_numbers<[1], [0], [0], [1], [0, 0, 1, 1], [], []>} : vector<8x4096xbf16>, vector<4096x256xbf16>, vector<8x256xf32> -> vector<8x256xf32>
    %c0_15 = arith.constant 0 : index
    %c0_16 = arith.constant 0 : index
    %22 = vector.load %arg7[%c0_15, %c0_16] : memref<1x256xf32, #tpu.memory_space<vmem>>, vector<1x256xf32>
    %23 = vector.broadcast %22 : vector<1x256xf32> to vector<8x256xf32>
    %24 = arith.addf %21, %23 : vector<8x256xf32>
    %c0_17 = arith.constant 0 : index
    %c0_18 = arith.constant 0 : index
    %25 = vector.load %arg8[%c0_17, %c0_18] : memref<8x256xf32, #tpu.memory_space<vmem>>, vector<8x256xf32>
    tpu.vector_store %arg8[%c0_17, %c0_18], %24 {strides = array<i32>} : memref<8x256xf32, #tpu.memory_space<vmem>>, vector<8x256xf32>,
    return
  }
  func.func @transform_0(%arg0: i32) -> (i32, i32) {
    %c0_i32 = arith.constant 0 : i32
    %c0_i32_0 = arith.constant 0 : i32
    return %arg0, %c0_i32 : i32, i32
  }
  func.func @transform_1(%arg0: i32) -> (i32, i32) {
    %c0_i32 = arith.constant 0 : i32
    %c0_i32_0 = arith.constant 0 : i32
    %c0_i32_1 = arith.constant 0 : i32
    return %c0_i32, %c0_i32_0 : i32, i32
  }
  func.func @transform_2(%arg0: i32) -> (i32, i32) {
    %c0_i32 = arith.constant 0 : i32
    %c0_i32_0 = arith.constant 0 : i32
    %c0_i32_1 = arith.constant 0 : i32
    return %c0_i32, %c0_i32_0 : i32, i32
  }
  func.func @transform_3(%arg0: i32) -> (i32, i32) {
    %c0_i32 = arith.constant 0 : i32
    %c0_i32_0 = arith.constant 0 : i32
    %c0_i32_1 = arith.constant 0 : i32
    return %c0_i32, %c0_i32_0 : i32, i32
  }
  func.func @transform_4(%arg0: i32) -> (i32, i32) {
    %c0_i32 = arith.constant 0 : i32
    %c0_i32_0 = arith.constant 0 : i32
    %c0_i32_1 = arith.constant 0 : i32
    return %c0_i32, %c0_i32_0 : i32, i32
  }
  func.func @transform_5(%arg0: i32) -> (i32, i32) {
    %c0_i32 = arith.constant 0 : i32
    %c0_i32_0 = arith.constant 0 : i32
    %c0_i32_1 = arith.constant 0 : i32
    return %c0_i32, %c0_i32_0 : i32, i32
  }
  func.func @transform_6(%arg0: i32) -> (i32, i32) {
    %c0_i32 = arith.constant 0 : i32
    %c0_i32_0 = arith.constant 0 : i32
    %c0_i32_1 = arith.constant 0 : i32
    return %c0_i32, %c0_i32_0 : i32, i32
  }
  func.func @transform_7(%arg0: i32) -> (i32, i32) {
    %c0_i32 = arith.constant 0 : i32
    %c0_i32_0 = arith.constant 0 : i32
    return %arg0, %c0_i32 : i32, i32
  }
}

</mosaic_0001>

<llo_original>
// kernel: mycnn1_forward.1
$region0: #{mycnn1_forward.1}
  #allocation0 [shape = 'u32[]', space=smem, size = 0x4, offset = 0x4, fixed_abs, tag = 'smem constant byte address 0x4 - core index']
  #allocation1 [shape = 'u32[144,128]{1,0:T(1,128)}', space=vmem, size = 0x12000, scoped, tag = 'internal scratch']
  %s0 = inlined_call_operand.vmem [shape: f32[8,12], index: 0, kind: input, shape index: {}]
  %s1 = inlined_call_operand.hbm [shape: f32[12,64], index: 1, kind: input, shape index: {}]
  %s2 = inlined_call_operand.hbm [shape: f32[1,32], index: 2, kind: input, shape index: {}]
  %s3 = inlined_call_operand.hbm [shape: bf16[32,4096], index: 3, kind: input, shape index: {}]
  %s4 = inlined_call_operand.hbm [shape: f32[1,4096], index: 4, kind: input, shape index: {}]
  %s5 = inlined_call_operand.hbm [shape: bf16[4096,256], index: 5, kind: input, shape index: {}]
  %s6 = inlined_call_operand.hbm [shape: f32[1,256], index: 6, kind: input, shape index: {}]
  %s7 = inlined_call_operand.vmem [shape: f32[8,256], index: 7, kind: output, shape index: {}]
  %s8 = sld [smem:[#allocation0]]
  $region62: #{mycnn1_forward.1} parent=0
    _
  %s10 = ssub.s32 1, %s8
  %s11 = scalar_select 0, %s10, %s8
  $region1: #{mycnn1_forward.1} parent=0
    #allocation2 [shape = 'u8[8192]{0}', space=vmem, size = 0x2000, scoped, tag = 'input window, operand 1, single buffered']
    #allocation3 [shape = 's32[1]{0}', space=sflag, size = 0x4, scoped, tag = 'scoped memory for mycnn1_forward.1']
    #allocation4 [shape = 'u8[512]{0}', space=vmem, size = 0x400, scoped, tag = 'input window, operand 2, single buffered']
    #allocation5 [shape = 's32[1]{0}', space=sflag, size = 0x4, scoped, tag = 'scoped memory for mycnn1_forward.1']
    #allocation6 [shape = 'u8[262144]{0}', space=vmem, size = 0x40000, scoped, tag = 'input window, operand 3, single buffered']
    #allocation7 [shape = 'u8[16384]{0}', space=vmem, size = 0x4000, scoped, tag = 'input window, operand 4, single buffered']
    #allocation8 [shape = 's32[1]{0}', space=sflag, size = 0x4, scoped, tag = 'scoped memory for mycnn1_forward.1']
    #allocation9 [shape = 'u8[2097152]{0}', space=vmem, size = 0x200000, scoped, tag = 'input window, operand 5, single buffered']
    #allocation10 [shape = 'u8[1024]{0}', space=vmem, size = 0x400, scoped, tag = 'input window, operand 6, single buffered']
    #allocation11 [shape = 's32[1]{0}', space=sflag, size = 0x4, scoped, tag = 'scoped memory for mycnn1_forward.1']
    %12 = vsyncpa [#allocation3], 0
    %13 = vsyncpa [#allocation5], 0
    %14 = vsyncpa [#allocation8], 0
    %15 = vsyncpa [#allocation11], 0
    // Predicated region
    $region2: #{mycnn1_forward.1} parent=1 // pred_check
      _
    $region3: #{mycnn1_forward.1} parent=1 // pred_check_branch
      %17 = sbr.rel (0) target = $region5
    $region4: #{mycnn1_forward.1} parent=1 // pred_region
      _
    $region5: #{mycnn1_forward.1} parent=1 // pred_fallthru
      _
    // Predicated region
    $region6: #{mycnn1_forward.1} parent=1 // pred_check
      _
    $region7: #{mycnn1_forward.1} parent=1 // pred_check_branch
      %19 = sbr.rel (0) target = $region9
    $region8: #{mycnn1_forward.1} parent=1 // pred_region
      %s21 = ssub.s32 256, 256
      %22 = vsyncadd [#allocation3], %s21
      %s23 = sshll.u32 [#allocation2], 4
      %s24 = int_to_ptr.vmem [resolvable:$true] %s23
      %29 = dma.hbm_to_vmem [thread:$0]  %s1, 256, %s24, [#allocation3], 128, 128, 8
    $region9: #{mycnn1_forward.1} parent=1 // pred_fallthru
      _
    // Predicated region
    $region10: #{mycnn1_forward.1} parent=1 // pred_check
      _
    $region11: #{mycnn1_forward.1} parent=1 // pred_check_branch
      %31 = sbr.rel (0) target = $region13
    $region12: #{mycnn1_forward.1} parent=1 // pred_region
      %s33 = ssub.s32 16, 16
      %34 = vsyncadd [#allocation5], %s33
      %s36 = sshll.u32 [#allocation4], 4
      %s37 = int_to_ptr.vmem [resolvable:$true] %s36
      %39 = dma.hbm_to_vmem [thread:$0]  %s2, 16, %s37, [#allocation5]
    $region13: #{mycnn1_forward.1} parent=1 // pred_fallthru
      _
    // Predicated region
    $region14: #{mycnn1_forward.1} parent=1 // pred_check
      _
    $region15: #{mycnn1_forward.1} parent=1 // pred_check_branch
      %41 = sbr.rel (0) target = $region17
    $region16: #{mycnn1_forward.1} parent=1 // pred_region
      %s43 = ssub.s32 8192, 8192
      %44 = vsyncadd [#allocation5], %s43
      %s45 = sshll.u32 [#allocation6], 4
      %s46 = int_to_ptr.vmem [resolvable:$true] %s45
      %51 = dma.hbm_to_vmem [thread:$0]  %s3, 8192, %s46, [#allocation5], 2048, 2048, 128
    $region17: #{mycnn1_forward.1} parent=1 // pred_fallthru
      _
    // Predicated region
    $region18: #{mycnn1_forward.1} parent=1 // pred_check
      _
    $region19: #{mycnn1_forward.1} parent=1 // pred_check_branch
      %53 = sbr.rel (0) target = $region21
    $region20: #{mycnn1_forward.1} parent=1 // pred_region
      %s55 = ssub.s32 512, 512
      %56 = vsyncadd [#allocation8], %s55
      %s58 = sshll.u32 [#allocation7], 4
      %s59 = int_to_ptr.vmem [resolvable:$true] %s58
      %61 = dma.hbm_to_vmem [thread:$0]  %s4, 512, %s59, [#allocation8]
    $region21: #{mycnn1_forward.1} parent=1 // pred_fallthru
      _
    // Predicated region
    $region22: #{mycnn1_forward.1} parent=1 // pred_check
      _
    $region23: #{mycnn1_forward.1} parent=1 // pred_check_branch
      %63 = sbr.rel (0) target = $region25
    $region24: #{mycnn1_forward.1} parent=1 // pred_region
      %s65 = ssub.s32 65536, 65536
      %66 = vsyncadd [#allocation8], %s65
      %s67 = sshll.u32 [#allocation9], 4
      %s68 = int_to_ptr.vmem [resolvable:$true] %s67
      %73 = dma.hbm_to_vmem [thread:$0]  %s5, 65536, %s68, [#allocation8], 128, 128, 8
    $region25: #{mycnn1_forward.1} parent=1 // pred_fallthru
      _
    // Predicated region
    $region26: #{mycnn1_forward.1} parent=1 // pred_check
      _
    $region27: #{mycnn1_forward.1} parent=1 // pred_check_branch
      %75 = sbr.rel (0) target = $region29
    $region28: #{mycnn1_forward.1} parent=1 // pred_region
      %s77 = ssub.s32 32, 32
      %78 = vsyncadd [#allocation11], %s77
      %s80 = sshll.u32 [#allocation10], 4
      %s81 = int_to_ptr.vmem [resolvable:$true] %s80
      %83 = dma.hbm_to_vmem [thread:$0]  %s6, 32, %s81, [#allocation11]
    $region29: #{mycnn1_forward.1} parent=1 // pred_fallthru
      _
    // Predicated region
    $region30: #{mycnn1_forward.1} parent=1 // pred_check
      _
    $region31: #{mycnn1_forward.1} parent=1 // pred_check_branch
      %85 = sbr.rel (0) target = $region33
    $region32: #{mycnn1_forward.1} parent=1 // pred_region
      %86 = dma.done [#allocation3], 256
    $region33: #{mycnn1_forward.1} parent=1 // pred_fallthru
      _
    // Predicated region
    $region34: #{mycnn1_forward.1} parent=1 // pred_check
      _
    $region35: #{mycnn1_forward.1} parent=1 // pred_check_branch
      %88 = sbr.rel (0) target = $region37
    $region36: #{mycnn1_forward.1} parent=1 // pred_region
      %89 = dma.done [#allocation5], 16
    $region37: #{mycnn1_forward.1} parent=1 // pred_fallthru
      _
    // Predicated region
    $region38: #{mycnn1_forward.1} parent=1 // pred_check
      _
    $region39: #{mycnn1_forward.1} parent=1 // pred_check_branch
      %91 = sbr.rel (0) target = $region41
    $region40: #{mycnn1_forward.1} parent=1 // pred_region
      %92 = dma.done [#allocation5], 8192
    $region41: #{mycnn1_forward.1} parent=1 // pred_fallthru
      _
    // Predicated region
    $region42: #{mycnn1_forward.1} parent=1 // pred_check
      _
    $region43: #{mycnn1_forward.1} parent=1 // pred_check_branch
      %94 = sbr.rel (0) target = $region45
    $region44: #{mycnn1_forward.1} parent=1 // pred_region
      %95 = dma.done [#allocation8], 512
    $region45: #{mycnn1_forward.1} parent=1 // pred_fallthru
      _
    // Predicated region
    $region46: #{mycnn1_forward.1} parent=1 // pred_check
      _
    $region47: #{mycnn1_forward.1} parent=1 // pred_check_branch
      %97 = sbr.rel (0) target = $region49
    $region48: #{mycnn1_forward.1} parent=1 // pred_region
      %98 = dma.done [#allocation8], 65536
    $region49: #{mycnn1_forward.1} parent=1 // pred_fallthru
      _
    // Predicated region
    $region50: #{mycnn1_forward.1} parent=1 // pred_check
      _
    $region51: #{mycnn1_forward.1} parent=1 // pred_check_branch
      %100 = sbr.rel (0) target = $region53
    $region52: #{mycnn1_forward.1} parent=1 // pred_region
      %101 = dma.done [#allocation11], 32
    $region53: #{mycnn1_forward.1} parent=1 // pred_fallthru
      _
    %v103 = vld [vmem:[%s0] sm:$0xff]
    %v104 = vld [vmem:[#allocation2] sm:$0xff]
    %v105 = vld [vmem:[#allocation2 + $0x8] sm:$0xf]
    %vm106 = vcmask 97280
    %v108 = vsel %vm106, %v103, 0
    %vm110 = vcmask 1043456
    %v112 = vsel %vm110, %v105, 0
    %114 = vmatprep.subr.mxu0 0.0
    %115 = vmatpush1.msra.mxu0 %v104
    %116 = vmatprep.subr.mxu0 0.0
    %117 = vmatpush1.msra.mxu0 %v112
    %118 = vmatprep.subr.mxu0 0.0
    %119 = vmatpush1.msra.mxu0 0.0
    %120 = vmatprep.subr.mxu0 0.0
    %121 = vmatpush1.msra.mxu0 0.0
    %122 = vmatprep.subr.mxu0 0.0
    %123 = vmatpush1.msra.mxu0 0.0
    %124 = vmatprep.subr.mxu0 0.0
    %125 = vmatpush1.msra.mxu0 0.0
    %126 = vmatprep.subr.mxu0 0.0
    %127 = vmatpush1.msra.mxu0 0.0
    %128 = vmatprep.subr.mxu0 0.0
    %129 = vmatpush1.msra.mxu0 0.0
    %130 = vmatprep.subr.mxu0 0.0
    %131 = vmatpush1.msra.mxu0 0.0
    %132 = vmatprep.subr.mxu0 0.0
    %133 = vmatpush1.msra.mxu0 0.0
    %134 = vmatprep.subr.mxu0 0.0
    %135 = vmatpush1.msra.mxu0 0.0
    %136 = vmatprep.subr.mxu0 0.0
    %137 = vmatpush1.msra.mxu0 0.0
    %138 = vmatprep.subr.mxu0 0.0
    %139 = vmatpush1.msra.mxu0 0.0
    %140 = vmatprep.subr.mxu0 0.0
    %141 = vmatpush1.msra.mxu0 0.0
    %142 = vmatprep.subr.mxu0 0.0
    %143 = vmatpush1.msra.mxu0 0.0
    %144 = vmatprep.subr.mxu0 0.0
    %145 = vmatpush1.msra.mxu0 0.0
    %146 = vmatprep.subr.mxu0 0.0
    %147 = vmatpush1.msra.mxu0 0.0
    %148 = vmatprep.subr.mxu0 0.0
    %149 = vmatpush1.msra.mxu0 0.0
    %150 = vmatprep.subr.mxu0 0.0
    %151 = vmatpush1.msra.mxu0 0.0
    %152 = vmatprep.subr.mxu0 0.0
    %153 = vmatpush1.msra.mxu0 0.0
    %154 = vmatprep.subr.mxu0 0.0
    %155 = vmatpush1.msra.mxu0 0.0
    %156 = vmatprep.subr.mxu0 0.0
    %157 = vmatpush1.msra.mxu0 0.0
    %158 = vmatprep.subr.mxu0 0.0
    %159 = vmatpush1.msra.mxu0 0.0
    %160 = vmatprep.subr.mxu0 0.0
    %161 = vmatpush1.msra.mxu0 0.0
    %162 = vmatprep.subr.mxu0 0.0
    %163 = vmatpush1.msra.mxu0 0.0
    %164 = vmatprep.subr.mxu0 0.0
    %165 = vmatpush1.msra.mxu0 0.0
    %166 = vmatprep.subr.mxu0 0.0
    %167 = vmatpush1.msra.mxu0 0.0
    %168 = vmatprep.subr.mxu0 0.0
    %169 = vmatpush1.msra.mxu0 0.0
    %170 = vmatprep.subr.mxu0 0.0
    %171 = vmatpush1.msra.mxu0 0.0
    %172 = vmatprep.subr.mxu0 0.0
    %173 = vmatpush1.msra.mxu0 0.0
    %174 = vmatprep.subr.mxu0 0.0
    %175 = vmatpush1.msra.mxu0 0.0
    %176 = vmatprep.subr.mxu0 0.0
    %177 = vmatpush1.msra.mxu0 0.0
    %178 = vmatprep.mubr.f32.mxu0 0.0
    %179 = vmatmul.mubr.f32.gmra.mrb[0].mxu0 %v108
    %v180 = vpop.f32.mrb[0].mxu0
    %v181 = vadd.f32 0.0, %v180
    %v182 = vpop.f32.mrb[0].mxu0
    %183 = vdwg.mxu0
    %185 = vrot.lane.b32.xlu0 %v181, 96
    %v186 = vpop.permute.xlu0 %185
    %v188 = vmax.f32 %v181, %v186
    %v189 = vld [vmem:[#allocation4] sm:$0x1]
    %v191 = vlaneseq
    %v192 = vshrl.u32 %v191, 7
    %v193 = vsub.s32 0, %v192
    %v194 = vrot.slane %v189, %v193
    %v196 = vadd.f32 %v188, %v194
    %v197 = vmax.f32 %v196, 0.0
    %v198 = vpack.c.bf16 %v197, %v197
    %v199 = vld [vmem:[#allocation6] sm:$0xff]
    %v200 = vld [vmem:[#allocation6 + $0x8] sm:$0xff]
    %v201 = vld [vmem:[#allocation6 + $0x10] sm:$0xff]
    %v202 = vld [vmem:[#allocation6 + $0x18] sm:$0xff]
    %v203 = vld [vmem:[#allocation6 + $0x20] sm:$0xff]
    %v204 = vld [vmem:[#allocation6 + $0x28] sm:$0xff]
    %v205 = vld [vmem:[#allocation6 + $0x30] sm:$0xff]
    %v206 = vld [vmem:[#allocation6 + $0x38] sm:$0xff]
    %v207 = vld [vmem:[#allocation6 + $0x40] sm:$0xff]
    %v208 = vld [vmem:[#allocation6 + $0x48] sm:$0xff]
    %v209 = vld [vmem:[#allocation6 + $0x50] sm:$0xff]
    %v210 = vld [vmem:[#allocation6 + $0x58] sm:$0xff]
    %v211 = vld [vmem:[#allocation6 + $0x60] sm:$0xff]
    %v212 = vld [vmem:[#allocation6 + $0x68] sm:$0xff]
    %v213 = vld [vmem:[#allocation6 + $0x70] sm:$0xff]
    %v214 = vld [vmem:[#allocation6 + $0x78] sm:$0xff]
    %v215 = vld [vmem:[#allocation6 + $0x80] sm:$0xff]
    %v216 = vld [vmem:[#allocation6 + $0x88] sm:$0xff]
    %v217 = vld [vmem:[#allocation6 + $0x90] sm:$0xff]
    %v218 = vld [vmem:[#allocation6 + $0x98] sm:$0xff]
    %v219 = vld [vmem:[#allocation6 + $0xa0] sm:$0xff]
    %v220 = vld [vmem:[#allocation6 + $0xa8] sm:$0xff]
    %v221 = vld [vmem:[#allocation6 + $0xb0] sm:$0xff]
    %v222 = vld [vmem:[#allocation6 + $0xb8] sm:$0xff]
    %v223 = vld [vmem:[#allocation6 + $0xc0] sm:$0xff]
    %v224 = vld [vmem:[#allocation6 + $0xc8] sm:$0xff]
    %v225 = vld [vmem:[#allocation6 + $0xd0] sm:$0xff]
    %v226 = vld [vmem:[#allocation6 + $0xd8] sm:$0xff]
    %v227 = vld [vmem:[#allocation6 + $0xe0] sm:$0xff]
    %v228 = vld [vmem:[#allocation6 + $0xe8] sm:$0xff]
    %v229 = vld [vmem:[#allocation6 + $0xf0] sm:$0xff]
    %v230 = vld [vmem:[#allocation6 + $0xf8] sm:$0xff]
    %v231 = vld [vmem:[#allocation6 + $0x100] sm:$0xff]
    %v232 = vld [vmem:[#allocation6 + $0x108] sm:$0xff]
    %v233 = vld [vmem:[#allocation6 + $0x110] sm:$0xff]
    %v234 = vld [vmem:[#allocation6 + $0x118] sm:$0xff]
    %v235 = vld [vmem:[#allocation6 + $0x120] sm:$0xff]
    %v236 = vld [vmem:[#allocation6 + $0x128] sm:$0xff]
    %v237 = vld [vmem:[#allocation6 + $0x130] sm:$0xff]
    %v238 = vld [vmem:[#allocation6 + $0x138] sm:$0xff]
    %v239 = vld [vmem:[#allocation6 + $0x140] sm:$0xff]
    %v240 = vld [vmem:[#allocation6 + $0x148] sm:$0xff]
    %v241 = vld [vmem:[#allocation6 + $0x150] sm:$0xff]
    %v242 = vld [vmem:[#allocation6 + $0x158] sm:$0xff]
    %v243 = vld [vmem:[#allocation6 + $0x160] sm:$0xff]
    %v244 = vld [vmem:[#allocation6 + $0x168] sm:$0xff]
    %v245 = vld [vmem:[#allocation6 + $0x170] sm:$0xff]
    %v246 = vld [vmem:[#allocation6 + $0x178] sm:$0xff]
    %v247 = vld [vmem:[#allocation6 + $0x180] sm:$0xff]
    %v248 = vld [vmem:[#allocation6 + $0x188] sm:$0xff]
    %v249 = vld [vmem:[#allocation6 + $0x190] sm:$0xff]
    %v250 = vld [vmem:[#allocation6 + $0x198] sm:$0xff]
    %v251 = vld [vmem:[#allocation6 + $0x1a0] sm:$0xff]
    %v252 = vld [vmem:[#allocation6 + $0x1a8] sm:$0xff]
    %v253 = vld [vmem:[#allocation6 + $0x1b0] sm:$0xff]
    %v254 = vld [vmem:[#allocation6 + $0x1b8] sm:$0xff]
    %v255 = vld [vmem:[#allocation6 + $0x1c0] sm:$0xff]
    %v256 = vld [vmem:[#allocation6 + $0x1c8] sm:$0xff]
    %v257 = vld [vmem:[#allocation6 + $0x1d0] sm:$0xff]
    %v258 = vld [vmem:[#allocation6 + $0x1d8] sm:$0xff]
    %v259 = vld [vmem:[#allocation6 + $0x1e0] sm:$0xff]
    %v260 = vld [vmem:[#allocation6 + $0x1e8] sm:$0xff]
    %v261 = vld [vmem:[#allocation6 + $0x1f0] sm:$0xff]
    %v262 = vld [vmem:[#allocation6 + $0x1f8] sm:$0xff]
    %v263 = vld [vmem:[#allocation7] sm:$0xff]
    %v264 = vld [vmem:[#allocation7 + $0x8] sm:$0xff]
    %v265 = vld [vmem:[#allocation7 + $0x10] sm:$0xff]
    %v266 = vld [vmem:[#allocation7 + $0x18] sm:$0xff]
    %v271 = vlaneseq
    %v272 = vshrl.u32 %v271, 7
    %v273 = vsub.s32 0, %v272
    %v274 = vrot.slane %v263, %v273
    %v275 = vlaneseq
    %v276 = vshrl.u32 %v275, 7
    %v277 = vsub.s32 1, %v276
    %v278 = vrot.slane %v263, %v277
    %v279 = vlaneseq
    %v280 = vshrl.u32 %v279, 7
    %v281 = vsub.s32 2, %v280
    %v282 = vrot.slane %v263, %v281
    %v283 = vlaneseq
    %v284 = vshrl.u32 %v283, 7
    %v285 = vsub.s32 3, %v284
    %v286 = vrot.slane %v263, %v285
    %v287 = vlaneseq
    %v288 = vshrl.u32 %v287, 7
    %v289 = vsub.s32 4, %v288
    %v290 = vrot.slane %v263, %v289
    %v291 = vlaneseq
    %v292 = vshrl.u32 %v291, 7
    %v293 = vsub.s32 5, %v292
    %v294 = vrot.slane %v263, %v293
    %v295 = vlaneseq
    %v296 = vshrl.u32 %v295, 7
    %v297 = vsub.s32 6, %v296
    %v298 = vrot.slane %v263, %v297
    %v299 = vlaneseq
    %v300 = vshrl.u32 %v299, 7
    %v301 = vsub.s32 7, %v300
    %v302 = vrot.slane %v263, %v301
    %v303 = vlaneseq
    %v304 = vshrl.u32 %v303, 7
    %v305 = vsub.s32 0, %v304
    %v306 = vrot.slane %v264, %v305
    %v307 = vlaneseq
    %v308 = vshrl.u32 %v307, 7
    %v309 = vsub.s32 1, %v308
    %v310 = vrot.slane %v264, %v309
    %v311 = vlaneseq
    %v312 = vshrl.u32 %v311, 7
    %v313 = vsub.s32 2, %v312
    %v314 = vrot.slane %v264, %v313
    %v315 = vlaneseq
    %v316 = vshrl.u32 %v315, 7
    %v317 = vsub.s32 3, %v316
    %v318 = vrot.slane %v264, %v317
    %v319 = vlaneseq
    %v320 = vshrl.u32 %v319, 7
    %v321 = vsub.s32 4, %v320
    %v322 = vrot.slane %v264, %v321
    %v323 = vlaneseq
    %v324 = vshrl.u32 %v323, 7
    %v325 = vsub.s32 5, %v324
    %v326 = vrot.slane %v264, %v325
    %v327 = vlaneseq
    %v328 = vshrl.u32 %v327, 7
    %v329 = vsub.s32 6, %v328
    %v330 = vrot.slane %v264, %v329
    %v331 = vlaneseq
    %v332 = vshrl.u32 %v331, 7
    %v333 = vsub.s32 7, %v332
    %v334 = vrot.slane %v264, %v333
    %v335 = vlaneseq
    %v336 = vshrl.u32 %v335, 7
    %v337 = vsub.s32 0, %v336
    %v338 = vrot.slane %v265, %v337
    %v339 = vlaneseq
    %v340 = vshrl.u32 %v339, 7
    %v341 = vsub.s32 1, %v340
    %v342 = vrot.slane %v265, %v341
    %v343 = vlaneseq
    %v344 = vshrl.u32 %v343, 7
    %v345 = vsub.s32 2, %v344
    %v346 = vrot.slane %v265, %v345
    %v347 = vlaneseq
    %v348 = vshrl.u32 %v347, 7
    %v349 = vsub.s32 3, %v348
    %v350 = vrot.slane %v265, %v349
    %v351 = vlaneseq
    %v352 = vshrl.u32 %v351, 7
    %v353 = vsub.s32 4, %v352
    %v354 = vrot.slane %v265, %v353
    %v355 = vlaneseq
    %v356 = vshrl.u32 %v355, 7
    %v357 = vsub.s32 5, %v356
    %v358 = vrot.slane %v265, %v357
    %v359 = vlaneseq
    %v360 = vshrl.u32 %v359, 7
    %v361 = vsub.s32 6, %v360
    %v362 = vrot.slane %v265, %v361
    %v363 = vlaneseq
    %v364 = vshrl.u32 %v363, 7
    %v365 = vsub.s32 7, %v364
    %v366 = vrot.slane %v265, %v365
    %v367 = vlaneseq
    %v368 = vshrl.u32 %v367, 7
    %v369 = vsub.s32 0, %v368
    %v370 = vrot.slane %v266, %v369
    %v371 = vlaneseq
    %v372 = vshrl.u32 %v371, 7
    %v373 = vsub.s32 1, %v372
    %v374 = vrot.slane %v266, %v373
    %v375 = vlaneseq
    %v376 = vshrl.u32 %v375, 7
    %v377 = vsub.s32 2, %v376
    %v378 = vrot.slane %v266, %v377
    %v379 = vlaneseq
    %v380 = vshrl.u32 %v379, 7
    %v381 = vsub.s32 3, %v380
    %v382 = vrot.slane %v266, %v381
    %v383 = vlaneseq
    %v384 = vshrl.u32 %v383, 7
    %v385 = vsub.s32 4, %v384
    %v386 = vrot.slane %v266, %v385
    %v387 = vlaneseq
    %v388 = vshrl.u32 %v387, 7
    %v389 = vsub.s32 5, %v388
    %v390 = vrot.slane %v266, %v389
    %v391 = vlaneseq
    %v392 = vshrl.u32 %v391, 7
    %v393 = vsub.s32 6, %v392
    %v394 = vrot.slane %v266, %v393
    %v395 = vlaneseq
    %v396 = vshrl.u32 %v395, 7
    %v397 = vsub.s32 7, %v396
    %v398 = vrot.slane %v266, %v397
    %v495 = vunpack.c.l.b16 %v199
    %v496 = vunpack.c.h.b16 %v199
    %v497 = vunpack.c.l.b16 %v200
    %v498 = vunpack.c.h.b16 %v200
    %v499 = vunpack.c.l.b16 %v201
    %v500 = vunpack.c.h.b16 %v201
    %v501 = vunpack.c.l.b16 %v202
    %v502 = vunpack.c.h.b16 %v202
    %v503 = vunpack.c.l.b16 %v203
    %v504 = vunpack.c.h.b16 %v203
    %v505 = vunpack.c.l.b16 %v204
    %v506 = vunpack.c.h.b16 %v204
    %v507 = vunpack.c.l.b16 %v205
    %v508 = vunpack.c.h.b16 %v205
    %v509 = vunpack.c.l.b16 %v206
    %v510 = vunpack.c.h.b16 %v206
    %v511 = vunpack.c.l.b16 %v207
    %v512 = vunpack.c.h.b16 %v207
    %v513 = vunpack.c.l.b16 %v208
    %v514 = vunpack.c.h.b16 %v208
    %v515 = vunpack.c.l.b16 %v209
    %v516 = vunpack.c.h.b16 %v209
    %v517 = vunpack.c.l.b16 %v210
    %v518 = vunpack.c.h.b16 %v210
    %v519 = vunpack.c.l.b16 %v211
    %v520 = vunpack.c.h.b16 %v211
    %v521 = vunpack.c.l.b16 %v212
    %v522 = vunpack.c.h.b16 %v212
    %v523 = vunpack.c.l.b16 %v213
    %v524 = vunpack.c.h.b16 %v213
    %v525 = vunpack.c.l.b16 %v214
    %v526 = vunpack.c.h.b16 %v214
    %v527 = vunpack.c.l.b16 %v215
    %v528 = vunpack.c.h.b16 %v215
    %v529 = vunpack.c.l.b16 %v216
    %v530 = vunpack.c.h.b16 %v216
    %v531 = vunpack.c.l.b16 %v217
    %v532 = vunpack.c.h.b16 %v217
    %v533 = vunpack.c.l.b16 %v218
    %v534 = vunpack.c.h.b16 %v218
    %v535 = vunpack.c.l.b16 %v219
    %v536 = vunpack.c.h.b16 %v219
    %v537 = vunpack.c.l.b16 %v220
    %v538 = vunpack.c.h.b16 %v220
    %v539 = vunpack.c.l.b16 %v221
    %v540 = vunpack.c.h.b16 %v221
    %v541 = vunpack.c.l.b16 %v222
    %v542 = vunpack.c.h.b16 %v222
    %v543 = vunpack.c.l.b16 %v223
    %v544 = vunpack.c.h.b16 %v223
    %v545 = vunpack.c.l.b16 %v224
    %v546 = vunpack.c.h.b16 %v224
    %v547 = vunpack.c.l.b16 %v225
    %v548 = vunpack.c.h.b16 %v225
    %v549 = vunpack.c.l.b16 %v226
    %v550 = vunpack.c.h.b16 %v226
    %v551 = vunpack.c.l.b16 %v227
    %v552 = vunpack.c.h.b16 %v227
    %v553 = vunpack.c.l.b16 %v228
    %v554 = vunpack.c.h.b16 %v228
    %v555 = vunpack.c.l.b16 %v229
    %v556 = vunpack.c.h.b16 %v229
    %v557 = vunpack.c.l.b16 %v230
    %v558 = vunpack.c.h.b16 %v230
    %v559 = vunpack.c.l.b16 %v231
    %v560 = vunpack.c.h.b16 %v231
    %v561 = vunpack.c.l.b16 %v232
    %v562 = vunpack.c.h.b16 %v232
    %v563 = vunpack.c.l.b16 %v233
    %v564 = vunpack.c.h.b16 %v233
    %v565 = vunpack.c.l.b16 %v234
    %v566 = vunpack.c.h.b16 %v234
    %v567 = vunpack.c.l.b16 %v235
    %v568 = vunpack.c.h.b16 %v235
    %v569 = vunpack.c.l.b16 %v236
    %v570 = vunpack.c.h.b16 %v236
    %v571 = vunpack.c.l.b16 %v237
    %v572 = vunpack.c.h.b16 %v237
    %v573 = vunpack.c.l.b16 %v238
    %v574 = vunpack.c.h.b16 %v238
    %v575 = vunpack.c.l.b16 %v239
    %v576 = vunpack.c.h.b16 %v239
    %v577 = vunpack.c.l.b16 %v240
    %v578 = vunpack.c.h.b16 %v240
    %v579 = vunpack.c.l.b16 %v241
    %v580 = vunpack.c.h.b16 %v241
    %v581 = vunpack.c.l.b16 %v242
    %v582 = vunpack.c.h.b16 %v242
    %v583 = vunpack.c.l.b16 %v243
    %v584 = vunpack.c.h.b16 %v243
    %v585 = vunpack.c.l.b16 %v244
    %v586 = vunpack.c.h.b16 %v244
    %v587 = vunpack.c.l.b16 %v245
    %v588 = vunpack.c.h.b16 %v245
    %v589 = vunpack.c.l.b16 %v246
    %v590 = vunpack.c.h.b16 %v246
    %v591 = vunpack.c.l.b16 %v247
    %v592 = vunpack.c.h.b16 %v247
    %v593 = vunpack.c.l.b16 %v248
    %v594 = vunpack.c.h.b16 %v248
    %v595 = vunpack.c.l.b16 %v249
    %v596 = vunpack.c.h.b16 %v249
    %v597 = vunpack.c.l.b16 %v250
    %v598 = vunpack.c.h.b16 %v250
    %v599 = vunpack.c.l.b16 %v251
    %v600 = vunpack.c.h.b16 %v251
    %v601 = vunpack.c.l.b16 %v252
    %v602 = vunpack.c.h.b16 %v252
    %v603 = vunpack.c.l.b16 %v253
    %v604 = vunpack.c.h.b16 %v253
    %v605 = vunpack.c.l.b16 %v254
    %v606 = vunpack.c.h.b16 %v254
    %v607 = vunpack.c.l.b16 %v255
    %v608 = vunpack.c.h.b16 %v255
    %v609 = vunpack.c.l.b16 %v256
    %v610 = vunpack.c.h.b16 %v256
    %v611 = vunpack.c.l.b16 %v257
    %v612 = vunpack.c.h.b16 %v257
    %v613 = vunpack.c.l.b16 %v258
    %v614 = vunpack.c.h.b16 %v258
    %v615 = vunpack.c.l.b16 %v259
    %v616 = vunpack.c.h.b16 %v259
    %v617 = vunpack.c.l.b16 %v260
    %v618 = vunpack.c.h.b16 %v260
    %v619 = vunpack.c.l.b16 %v261
    %v620 = vunpack.c.h.b16 %v261
    %v621 = vunpack.c.l.b16 %v262
    %v622 = vunpack.c.h.b16 %v262
    %v623 = vpack.c.b16 %v527, %v495
    %v624 = vpack.c.b16 %v528, %v496
    %v625 = vpack.c.b16 %v529, %v497
    %v626 = vpack.c.b16 %v530, %v498
    %v627 = vpack.c.b16 %v531, %v499
    %v628 = vpack.c.b16 %v532, %v500
    %v629 = vpack.c.b16 %v533, %v501
    %v630 = vpack.c.b16 %v534, %v502
    %v631 = vpack.c.b16 %v535, %v503
    %v632 = vpack.c.b16 %v536, %v504
    %v633 = vpack.c.b16 %v537, %v505
    %v634 = vpack.c.b16 %v538, %v506
    %v635 = vpack.c.b16 %v539, %v507
    %v636 = vpack.c.b16 %v540, %v508
    %v637 = vpack.c.b16 %v541, %v509
    %v638 = vpack.c.b16 %v542, %v510
    %v639 = vpack.c.b16 %v543, %v511
    %v640 = vpack.c.b16 %v544, %v512
    %v641 = vpack.c.b16 %v545, %v513
    %v642 = vpack.c.b16 %v546, %v514
    %v643 = vpack.c.b16 %v547, %v515
    %v644 = vpack.c.b16 %v548, %v516
    %v645 = vpack.c.b16 %v549, %v517
    %v646 = vpack.c.b16 %v550, %v518
    %v647 = vpack.c.b16 %v551, %v519
    %v648 = vpack.c.b16 %v552, %v520
    %v649 = vpack.c.b16 %v553, %v521
    %v650 = vpack.c.b16 %v554, %v522
    %v651 = vpack.c.b16 %v555, %v523
    %v652 = vpack.c.b16 %v556, %v524
    %v653 = vpack.c.b16 %v557, %v525
    %v654 = vpack.c.b16 %v558, %v526
    %v655 = vpack.c.b16 %v591, %v559
    %v656 = vpack.c.b16 %v592, %v560
    %v657 = vpack.c.b16 %v593, %v561
    %v658 = vpack.c.b16 %v594, %v562
    %v659 = vpack.c.b16 %v595, %v563
    %v660 = vpack.c.b16 %v596, %v564
    %v661 = vpack.c.b16 %v597, %v565
    %v662 = vpack.c.b16 %v598, %v566
    %v663 = vpack.c.b16 %v599, %v567
    %v664 = vpack.c.b16 %v600, %v568
    %v665 = vpack.c.b16 %v601, %v569
    %v666 = vpack.c.b16 %v602, %v570
    %v667 = vpack.c.b16 %v603, %v571
    %v668 = vpack.c.b16 %v604, %v572
    %v669 = vpack.c.b16 %v605, %v573
    %v670 = vpack.c.b16 %v606, %v574
    %v671 = vpack.c.b16 %v607, %v575
    %v672 = vpack.c.b16 %v608, %v576
    %v673 = vpack.c.b16 %v609, %v577
    %v674 = vpack.c.b16 %v610, %v578
    %v675 = vpack.c.b16 %v611, %v579
    %v676 = vpack.c.b16 %v612, %v580
    %v677 = vpack.c.b16 %v613, %v581
    %v678 = vpack.c.b16 %v614, %v582
    %v679 = vpack.c.b16 %v615, %v583
    %v680 = vpack.c.b16 %v616, %v584
    %v681 = vpack.c.b16 %v617, %v585
    %v682 = vpack.c.b16 %v618, %v586
    %v683 = vpack.c.b16 %v619, %v587
    %v684 = vpack.c.b16 %v620, %v588
    %v685 = vpack.c.b16 %v621, %v589
    %v686 = vpack.c.b16 %v622, %v590
    %vm751 = vcmask 261120
    %v753 = vsel %vm751, %v198, 0
    %755 = vmatprep.subr.bf16.mxu0 %v624
    %756 = vmatpush1.bf16.msra.mxu0 %v623
    %757 = vmatprep.subr.bf16.mxu0 %v656
    %758 = vmatpush1.bf16.msra.mxu0 %v655
    %759 = vmatprep.subr.bf16.mxu0 0
    %760 = vmatpush1.bf16.msra.mxu0 0
    %761 = vmatprep.subr.bf16.mxu0 0
    %762 = vmatpush1.bf16.msra.mxu0 0
    %763 = vmatprep.subr.bf16.mxu0 0
    %764 = vmatpush1.bf16.msra.mxu0 0
    %765 = vmatprep.subr.bf16.mxu0 0
    %766 = vmatpush1.bf16.msra.mxu0 0
    %767 = vmatprep.subr.bf16.mxu0 0
    %768 = vmatpush1.bf16.msra.mxu0 0
    %769 = vmatprep.subr.bf16.mxu0 0
    %770 = vmatpush1.bf16.msra.mxu0 0
    %771 = vmatprep.subr.bf16.mxu0 0
    %772 = vmatpush1.bf16.msra.mxu0 0
    %773 = vmatprep.subr.bf16.mxu0 0
    %774 = vmatpush1.bf16.msra.mxu0 0
    %775 = vmatprep.subr.bf16.mxu0 0
    %776 = vmatpush1.bf16.msra.mxu0 0
    %777 = vmatprep.subr.bf16.mxu0 0
    %778 = vmatpush1.bf16.msra.mxu0 0
    %779 = vmatprep.subr.bf16.mxu0 0
    %780 = vmatpush1.bf16.msra.mxu0 0
    %781 = vmatprep.subr.bf16.mxu0 0
    %782 = vmatpush1.bf16.msra.mxu0 0
    %783 = vmatprep.subr.bf16.mxu0 0
    %784 = vmatpush1.bf16.msra.mxu0 0
    %785 = vmatprep.subr.bf16.mxu0 0
    %786 = vmatpush1.bf16.msra.mxu0 0
    %787 = vmatprep.mubr.bf16.mxu0 0
    %788 = vmatmul.mubr.bf16.gmra.mrb[0].mxu0 %v753
    %v789 = vpop.f32.mrb[0].mxu0
    %v790 = vadd.f32 %v274, %v789
    %v791 = vpop.f32.mrb[0].mxu0
    %v792 = vadd.f32 %v278, %v791
    %v793 = vpop.f32.mrb[0].mxu0
    %v794 = vpop.f32.mrb[0].mxu0
    %795 = vdwg.mxu0
    %796 = vmatprep.subr.bf16.mxu0 %v626
    %797 = vmatpush1.bf16.msra.mxu0 %v625
    %798 = vmatprep.subr.bf16.mxu0 %v658
    %799 = vmatpush1.bf16.msra.mxu0 %v657
    %800 = vmatprep.subr.bf16.mxu0 0
    %801 = vmatpush1.bf16.msra.mxu0 0
    %802 = vmatprep.subr.bf16.mxu0 0
    %803 = vmatpush1.bf16.msra.mxu0 0
    %804 = vmatprep.subr.bf16.mxu0 0
    %805 = vmatpush1.bf16.msra.mxu0 0
    %806 = vmatprep.subr.bf16.mxu0 0
    %807 = vmatpush1.bf16.msra.mxu0 0
    %808 = vmatprep.subr.bf16.mxu0 0
    %809 = vmatpush1.bf16.msra.mxu0 0
    %810 = vmatprep.subr.bf16.mxu0 0
    %811 = vmatpush1.bf16.msra.mxu0 0
    %812 = vmatprep.subr.bf16.mxu0 0
    %813 = vmatpush1.bf16.msra.mxu0 0
    %814 = vmatprep.subr.bf16.mxu0 0
    %815 = vmatpush1.bf16.msra.mxu0 0
    %816 = vmatprep.subr.bf16.mxu0 0
    %817 = vmatpush1.bf16.msra.mxu0 0
    %818 = vmatprep.subr.bf16.mxu0 0
    %819 = vmatpush1.bf16.msra.mxu0 0
    %820 = vmatprep.subr.bf16.mxu0 0
    %821 = vmatpush1.bf16.msra.mxu0 0
    %822 = vmatprep.subr.bf16.mxu0 0
    %823 = vmatpush1.bf16.msra.mxu0 0
    %824 = vmatprep.subr.bf16.mxu0 0
    %825 = vmatpush1.bf16.msra.mxu0 0
    %826 = vmatprep.subr.bf16.mxu0 0
    %827 = vmatpush1.bf16.msra.mxu0 0
    %828 = vmatprep.mubr.bf16.mxu0 0
    %829 = vmatmul.mubr.bf16.gmra.mrb[0].mxu0 %v753
    %v830 = vpop.f32.mrb[0].mxu0
    %v831 = vadd.f32 %v282, %v830
    %v832 = vpop.f32.mrb[0].mxu0
    %v833 = vadd.f32 %v286, %v832
    %v834 = vpop.f32.mrb[0].mxu0
    %v835 = vpop.f32.mrb[0].mxu0
    %836 = vdwg.mxu0
    %837 = vmatprep.subr.bf16.mxu0 %v628
    %838 = vmatpush1.bf16.msra.mxu0 %v627
    %839 = vmatprep.subr.bf16.mxu0 %v660
    %840 = vmatpush1.bf16.msra.mxu0 %v659
    %841 = vmatprep.subr.bf16.mxu0 0
    %842 = vmatpush1.bf16.msra.mxu0 0
    %843 = vmatprep.subr.bf16.mxu0 0
    %844 = vmatpush1.bf16.msra.mxu0 0
    %845 = vmatprep.subr.bf16.mxu0 0
    %846 = vmatpush1.bf16.msra.mxu0 0
    %847 = vmatprep.subr.bf16.mxu0 0
    %848 = vmatpush1.bf16.msra.mxu0 0
    %849 = vmatprep.subr.bf16.mxu0 0
    %850 = vmatpush1.bf16.msra.mxu0 0
    %851 = vmatprep.subr.bf16.mxu0 0
    %852 = vmatpush1.bf16.msra.mxu0 0
    %853 = vmatprep.subr.bf16.mxu0 0
    %854 = vmatpush1.bf16.msra.mxu0 0
    %855 = vmatprep.subr.bf16.mxu0 0
    %856 = vmatpush1.bf16.msra.mxu0 0
    %857 = vmatprep.subr.bf16.mxu0 0
    %858 = vmatpush1.bf16.msra.mxu0 0
    %859 = vmatprep.subr.bf16.mxu0 0
    %860 = vmatpush1.bf16.msra.mxu0 0
    %861 = vmatprep.subr.bf16.mxu0 0
    %862 = vmatpush1.bf16.msra.mxu0 0
    %863 = vmatprep.subr.bf16.mxu0 0
    %864 = vmatpush1.bf16.msra.mxu0 0
    %865 = vmatprep.subr.bf16.mxu0 0
    %866 = vmatpush1.bf16.msra.mxu0 0
    %867 = vmatprep.subr.bf16.mxu0 0
    %868 = vmatpush1.bf16.msra.mxu0 0
    %869 = vmatprep.mubr.bf16.mxu0 0
    %870 = vmatmul.mubr.bf16.gmra.mrb[0].mxu0 %v753
    %v871 = vpop.f32.mrb[0].mxu0
    %v872 = vadd.f32 %v290, %v871
    %v873 = vpop.f32.mrb[0].mxu0
    %v874 = vadd.f32 %v294, %v873
    %v875 = vpop.f32.mrb[0].mxu0
    %v876 = vpop.f32.mrb[0].mxu0
    %877 = vdwg.mxu0
    %878 = vmatprep.subr.bf16.mxu0 %v630
    %879 = vmatpush1.bf16.msra.mxu0 %v629
    %880 = vmatprep.subr.bf16.mxu0 %v662
    %881 = vmatpush1.bf16.msra.mxu0 %v661
    %882 = vmatprep.subr.bf16.mxu0 0
    %883 = vmatpush1.bf16.msra.mxu0 0
    %884 = vmatprep.subr.bf16.mxu0 0
    %885 = vmatpush1.bf16.msra.mxu0 0
    %886 = vmatprep.subr.bf16.mxu0 0
    %887 = vmatpush1.bf16.msra.mxu0 0
    %888 = vmatprep.subr.bf16.mxu0 0
    %889 = vmatpush1.bf16.msra.mxu0 0
    %890 = vmatprep.subr.bf16.mxu0 0
    %891 = vmatpush1.bf16.msra.mxu0 0
    %892 = vmatprep.subr.bf16.mxu0 0
    %893 = vmatpush1.bf16.msra.mxu0 0
    %894 = vmatprep.subr.bf16.mxu0 0
    %895 = vmatpush1.bf16.msra.mxu0 0
    %896 = vmatprep.subr.bf16.mxu0 0
    %897 = vmatpush1.bf16.msra.mxu0 0
    %898 = vmatprep.subr.bf16.mxu0 0
    %899 = vmatpush1.bf16.msra.mxu0 0
    %900 = vmatprep.subr.bf16.mxu0 0
    %901 = vmatpush1.bf16.msra.mxu0 0
    %902 = vmatprep.subr.bf16.mxu0 0
    %903 = vmatpush1.bf16.msra.mxu0 0
    %904 = vmatprep.subr.bf16.mxu0 0
    %905 = vmatpush1.bf16.msra.mxu0 0
    %906 = vmatprep.subr.bf16.mxu0 0
    %907 = vmatpush1.bf16.msra.mxu0 0
    %908 = vmatprep.subr.bf16.mxu0 0
    %909 = vmatpush1.bf16.msra.mxu0 0
    %910 = vmatprep.mubr.bf16.mxu0 0
    %911 = vmatmul.mubr.bf16.gmra.mrb[0].mxu0 %v753
    %v912 = vpop.f32.mrb[0].mxu0
    %v913 = vadd.f32 %v298, %v912
    %v914 = vpop.f32.mrb[0].mxu0
    %v915 = vadd.f32 %v302, %v914
    %v916 = vpop.f32.mrb[0].mxu0
    %v917 = vpop.f32.mrb[0].mxu0
    %918 = vdwg.mxu0
    %919 = vmatprep.subr.bf16.mxu0 %v632
    %920 = vmatpush1.bf16.msra.mxu0 %v631
    %921 = vmatprep.subr.bf16.mxu0 %v664
    %922 = vmatpush1.bf16.msra.mxu0 %v663
    %923 = vmatprep.subr.bf16.mxu0 0
    %924 = vmatpush1.bf16.msra.mxu0 0
    %925 = vmatprep.subr.bf16.mxu0 0
    %926 = vmatpush1.bf16.msra.mxu0 0
    %927 = vmatprep.subr.bf16.mxu0 0
    %928 = vmatpush1.bf16.msra.mxu0 0
    %929 = vmatprep.subr.bf16.mxu0 0
    %930 = vmatpush1.bf16.msra.mxu0 0
    %931 = vmatprep.subr.bf16.mxu0 0
    %932 = vmatpush1.bf16.msra.mxu0 0
    %933 = vmatprep.subr.bf16.mxu0 0
    %934 = vmatpush1.bf16.msra.mxu0 0
    %935 = vmatprep.subr.bf16.mxu0 0
    %936 = vmatpush1.bf16.msra.mxu0 0
    %937 = vmatprep.subr.bf16.mxu0 0
    %938 = vmatpush1.bf16.msra.mxu0 0
    %939 = vmatprep.subr.bf16.mxu0 0
    %940 = vmatpush1.bf16.msra.mxu0 0
    %941 = vmatprep.subr.bf16.mxu0 0
    %942 = vmatpush1.bf16.msra.mxu0 0
    %943 = vmatprep.subr.bf16.mxu0 0
    %944 = vmatpush1.bf16.msra.mxu0 0
    %945 = vmatprep.subr.bf16.mxu0 0
    %946 = vmatpush1.bf16.msra.mxu0 0
    %947 = vmatprep.subr.bf16.mxu0 0
    %948 = vmatpush1.bf16.msra.mxu0 0
    %949 = vmatprep.subr.bf16.mxu0 0
    %950 = vmatpush1.bf16.msra.mxu0 0
    %951 = vmatprep.mubr.bf16.mxu0 0
    %952 = vmatmul.mubr.bf16.gmra.mrb[0].mxu0 %v753
    %v953 = vpop.f32.mrb[0].mxu0
    %v954 = vadd.f32 %v306, %v953
    %v955 = vpop.f32.mrb[0].mxu0
    %v956 = vadd.f32 %v310, %v955
    %v957 = vpop.f32.mrb[0].mxu0
    %v958 = vpop.f32.mrb[0].mxu0
    %959 = vdwg.mxu0
    %960 = vmatprep.subr.bf16.mxu0 %v634
    %961 = vmatpush1.bf16.msra.mxu0 %v633
    %962 = vmatprep.subr.bf16.mxu0 %v666
    %963 = vmatpush1.bf16.msra.mxu0 %v665
    %964 = vmatprep.subr.bf16.mxu0 0
    %965 = vmatpush1.bf16.msra.mxu0 0
    %966 = vmatprep.subr.bf16.mxu0 0
    %967 = vmatpush1.bf16.msra.mxu0 0
    %968 = vmatprep.subr.bf16.mxu0 0
    %969 = vmatpush1.bf16.msra.mxu0 0
    %970 = vmatprep.subr.bf16.mxu0 0
    %971 = vmatpush1.bf16.msra.mxu0 0
    %972 = vmatprep.subr.bf16.mxu0 0
    %973 = vmatpush1.bf16.msra.mxu0 0
    %974 = vmatprep.subr.bf16.mxu0 0
    %975 = vmatpush1.bf16.msra.mxu0 0
    %976 = vmatprep.subr.bf16.mxu0 0
    %977 = vmatpush1.bf16.msra.mxu0 0
    %978 = vmatprep.subr.bf16.mxu0 0
    %979 = vmatpush1.bf16.msra.mxu0 0
    %980 = vmatprep.subr.bf16.mxu0 0
    %981 = vmatpush1.bf16.msra.mxu0 0
    %982 = vmatprep.subr.bf16.mxu0 0
    %983 = vmatpush1.bf16.msra.mxu0 0
    %984 = vmatprep.subr.bf16.mxu0 0
    %985 = vmatpush1.bf16.msra.mxu0 0
    %986 = vmatprep.subr.bf16.mxu0 0
    %987 = vmatpush1.bf16.msra.mxu0 0
    %988 = vmatprep.subr.bf16.mxu0 0
    %989 = vmatpush1.bf16.msra.mxu0 0
    %990 = vmatprep.subr.bf16.mxu0 0
    %991 = vmatpush1.bf16.msra.mxu0 0
    %992 = vmatprep.mubr.bf16.mxu0 0
    %993 = vmatmul.mubr.bf16.gmra.mrb[0].mxu0 %v753
    %v994 = vpop.f32.mrb[0].mxu0
    %v995 = vadd.f32 %v314, %v994
    %v996 = vpop.f32.mrb[0].mxu0
    %v997 = vadd.f32 %v318, %v996
    %v998 = vpop.f32.mrb[0].mxu0
    %v999 = vpop.f32.mrb[0].mxu0
    %1000 = vdwg.mxu0
    %1001 = vmatprep.subr.bf16.mxu0 %v636
    %1002 = vmatpush1.bf16.msra.mxu0 %v635
    %1003 = vmatprep.subr.bf16.mxu0 %v668
    %1004 = vmatpush1.bf16.msra.mxu0 %v667
    %1005 = vmatprep.subr.bf16.mxu0 0
    %1006 = vmatpush1.bf16.msra.mxu0 0
    %1007 = vmatprep.subr.bf16.mxu0 0
    %1008 = vmatpush1.bf16.msra.mxu0 0
    %1009 = vmatprep.subr.bf16.mxu0 0
    %1010 = vmatpush1.bf16.msra.mxu0 0
    %1011 = vmatprep.subr.bf16.mxu0 0
    %1012 = vmatpush1.bf16.msra.mxu0 0
    %1013 = vmatprep.subr.bf16.mxu0 0
    %1014 = vmatpush1.bf16.msra.mxu0 0
    %1015 = vmatprep.subr.bf16.mxu0 0
    %1016 = vmatpush1.bf16.msra.mxu0 0
    %1017 = vmatprep.subr.bf16.mxu0 0
    %1018 = vmatpush1.bf16.msra.mxu0 0
    %1019 = vmatprep.subr.bf16.mxu0 0
    %1020 = vmatpush1.bf16.msra.mxu0 0
    %1021 = vmatprep.subr.bf16.mxu0 0
    %1022 = vmatpush1.bf16.msra.mxu0 0
    %1023 = vmatprep.subr.bf16.mxu0 0
    %1024 = vmatpush1.bf16.msra.mxu0 0
    %1025 = vmatprep.subr.bf16.mxu0 0
    %1026 = vmatpush1.bf16.msra.mxu0 0
    %1027 = vmatprep.subr.bf16.mxu0 0
    %1028 = vmatpush1.bf16.msra.mxu0 0
    %1029 = vmatprep.subr.bf16.mxu0 0
    %1030 = vmatpush1.bf16.msra.mxu0 0
    %1031 = vmatprep.subr.bf16.mxu0 0
    %1032 = vmatpush1.bf16.msra.mxu0 0
    %1033 = vmatprep.mubr.bf16.mxu0 0
    %1034 = vmatmul.mubr.bf16.gmra.mrb[0].mxu0 %v753
    %v1035 = vpop.f32.mrb[0].mxu0
    %v1036 = vadd.f32 %v322, %v1035
    %v1037 = vpop.f32.mrb[0].mxu0
    %v1038 = vadd.f32 %v326, %v1037
    %v1039 = vpop.f32.mrb[0].mxu0
    %v1040 = vpop.f32.mrb[0].mxu0
    %1041 = vdwg.mxu0
    %1042 = vmatprep.subr.bf16.mxu0 %v638
    %1043 = vmatpush1.bf16.msra.mxu0 %v637
    %1044 = vmatprep.subr.bf16.mxu0 %v670
    %1045 = vmatpush1.bf16.msra.mxu0 %v669
    %1046 = vmatprep.subr.bf16.mxu0 0
    %1047 = vmatpush1.bf16.msra.mxu0 0
    %1048 = vmatprep.subr.bf16.mxu0 0
    %1049 = vmatpush1.bf16.msra.mxu0 0
    %1050 = vmatprep.subr.bf16.mxu0 0
    %1051 = vmatpush1.bf16.msra.mxu0 0
    %1052 = vmatprep.subr.bf16.mxu0 0
    %1053 = vmatpush1.bf16.msra.mxu0 0
    %1054 = vmatprep.subr.bf16.mxu0 0
    %1055 = vmatpush1.bf16.msra.mxu0 0
    %1056 = vmatprep.subr.bf16.mxu0 0
    %1057 = vmatpush1.bf16.msra.mxu0 0
    %1058 = vmatprep.subr.bf16.mxu0 0
    %1059 = vmatpush1.bf16.msra.mxu0 0
    %1060 = vmatprep.subr.bf16.mxu0 0
    %1061 = vmatpush1.bf16.msra.mxu0 0
    %1062 = vmatprep.subr.bf16.mxu0 0
    %1063 = vmatpush1.bf16.msra.mxu0 0
    %1064 = vmatprep.subr.bf16.mxu0 0
    %1065 = vmatpush1.bf16.msra.mxu0 0
    %1066 = vmatprep.subr.bf16.mxu0 0
    %1067 = vmatpush1.bf16.msra.mxu0 0
    %1068 = vmatprep.subr.bf16.mxu0 0
    %1069 = vmatpush1.bf16.msra.mxu0 0
    %1070 = vmatprep.subr.bf16.mxu0 0
    %1071 = vmatpush1.bf16.msra.mxu0 0
    %1072 = vmatprep.subr.bf16.mxu0 0
    %1073 = vmatpush1.bf16.msra.mxu0 0
    %1074 = vmatprep.mubr.bf16.mxu0 0
    %1075 = vmatmul.mubr.bf16.gmra.mrb[0].mxu0 %v753
    %v1076 = vpop.f32.mrb[0].mxu0
    %v1077 = vadd.f32 %v330, %v1076
    %v1078 = vpop.f32.mrb[0].mxu0
    %v1079 = vadd.f32 %v334, %v1078
    %v1080 = vpop.f32.mrb[0].mxu0
    %v1081 = vpop.f32.mrb[0].mxu0
    %1082 = vdwg.mxu0
    %1083 = vmatprep.subr.bf16.mxu0 %v640
    %1084 = vmatpush1.bf16.msra.mxu0 %v639
    %1085 = vmatprep.subr.bf16.mxu0 %v672
    %1086 = vmatpush1.bf16.msra.mxu0 %v671
    %1087 = vmatprep.subr.bf16.mxu0 0
    %1088 = vmatpush1.bf16.msra.mxu0 0
    %1089 = vmatprep.subr.bf16.mxu0 0
    %1090 = vmatpush1.bf16.msra.mxu0 0
    %1091 = vmatprep.subr.bf16.mxu0 0
    %1092 = vmatpush1.bf16.msra.mxu0 0
    %1093 = vmatprep.subr.bf16.mxu0 0
    %1094 = vmatpush1.bf16.msra.mxu0 0
    %1095 = vmatprep.subr.bf16.mxu0 0
    %1096 = vmatpush1.bf16.msra.mxu0 0
    %1097 = vmatprep.subr.bf16.mxu0 0
    %1098 = vmatpush1.bf16.msra.mxu0 0
    %1099 = vmatprep.subr.bf16.mxu0 0
    %1100 = vmatpush1.bf16.msra.mxu0 0
    %1101 = vmatprep.subr.bf16.mxu0 0
    %1102 = vmatpush1.bf16.msra.mxu0 0
    %1103 = vmatprep.subr.bf16.mxu0 0
    %1104 = vmatpush1.bf16.msra.mxu0 0
    %1105 = vmatprep.subr.bf16.mxu0 0
    %1106 = vmatpush1.bf16.msra.mxu0 0
    %1107 = vmatprep.subr.bf16.mxu0 0
    %1108 = vmatpush1.bf16.msra.mxu0 0
    %1109 = vmatprep.subr.bf16.mxu0 0
    %1110 = vmatpush1.bf16.msra.mxu0 0
    %1111 = vmatprep.subr.bf16.mxu0 0
    %1112 = vmatpush1.bf16.msra.mxu0 0
    %1113 = vmatprep.subr.bf16.mxu0 0
    %1114 = vmatpush1.bf16.msra.mxu0 0
    %1115 = vmatprep.mubr.bf16.mxu0 0
    %1116 = vmatmul.mubr.bf16.gmra.mrb[0].mxu0 %v753
    %v1117 = vpop.f32.mrb[0].mxu0
    %v1118 = vadd.f32 %v338, %v1117
    %v1119 = vpop.f32.mrb[0].mxu0
    %v1120 = vadd.f32 %v342, %v1119
    %v1121 = vpop.f32.mrb[0].mxu0
    %v1122 = vpop.f32.mrb[0].mxu0
    %1123 = vdwg.mxu0
    %1124 = vmatprep.subr.bf16.mxu0 %v642
    %1125 = vmatpush1.bf16.msra.mxu0 %v641
    %1126 = vmatprep.subr.bf16.mxu0 %v674
    %1127 = vmatpush1.bf16.msra.mxu0 %v673
    %1128 = vmatprep.subr.bf16.mxu0 0
    %1129 = vmatpush1.bf16.msra.mxu0 0
    %1130 = vmatprep.subr.bf16.mxu0 0
    %1131 = vmatpush1.bf16.msra.mxu0 0
    %1132 = vmatprep.subr.bf16.mxu0 0
    %1133 = vmatpush1.bf16.msra.mxu0 0
    %1134 = vmatprep.subr.bf16.mxu0 0
    %1135 = vmatpush1.bf16.msra.mxu0 0
    %1136 = vmatprep.subr.bf16.mxu0 0
    %1137 = vmatpush1.bf16.msra.mxu0 0
    %1138 = vmatprep.subr.bf16.mxu0 0
    %1139 = vmatpush1.bf16.msra.mxu0 0
    %1140 = vmatprep.subr.bf16.mxu0 0
    %1141 = vmatpush1.bf16.msra.mxu0 0
    %1142 = vmatprep.subr.bf16.mxu0 0
    %1143 = vmatpush1.bf16.msra.mxu0 0
    %1144 = vmatprep.subr.bf16.mxu0 0
    %1145 = vmatpush1.bf16.msra.mxu0 0
    %1146 = vmatprep.subr.bf16.mxu0 0
    %1147 = vmatpush1.bf16.msra.mxu0 0
    %1148 = vmatprep.subr.bf16.mxu0 0
    %1149 = vmatpush1.bf16.msra.mxu0 0
    %1150 = vmatprep.subr.bf16.mxu0 0
    %1151 = vmatpush1.bf16.msra.mxu0 0
    %1152 = vmatprep.subr.bf16.mxu0 0
    %1153 = vmatpush1.bf16.msra.mxu0 0
    %1154 = vmatprep.subr.bf16.mxu0 0
    %1155 = vmatpush1.bf16.msra.mxu0 0
    %1156 = vmatprep.mubr.bf16.mxu0 0
    %1157 = vmatmul.mubr.bf16.gmra.mrb[0].mxu0 %v753
    %v1158 = vpop.f32.mrb[0].mxu0
    %v1159 = vadd.f32 %v346, %v1158
    %v1160 = vpop.f32.mrb[0].mxu0
    %v1161 = vadd.f32 %v350, %v1160
    %v1162 = vpop.f32.mrb[0].mxu0
    %v1163 = vpop.f32.mrb[0].mxu0
    %1164 = vdwg.mxu0
    %1165 = vmatprep.subr.bf16.mxu0 %v644
    %1166 = vmatpush1.bf16.msra.mxu0 %v643
    %1167 = vmatprep.subr.bf16.mxu0 %v676
    %1168 = vmatpush1.bf16.msra.mxu0 %v675
    %1169 = vmatprep.subr.bf16.mxu0 0
    %1170 = vmatpush1.bf16.msra.mxu0 0
    %1171 = vmatprep.subr.bf16.mxu0 0
    %1172 = vmatpush1.bf16.msra.mxu0 0
    %1173 = vmatprep.subr.bf16.mxu0 0
    %1174 = vmatpush1.bf16.msra.mxu0 0
    %1175 = vmatprep.subr.bf16.mxu0 0
    %1176 = vmatpush1.bf16.msra.mxu0 0
    %1177 = vmatprep.subr.bf16.mxu0 0
    %1178 = vmatpush1.bf16.msra.mxu0 0
    %1179 = vmatprep.subr.bf16.mxu0 0
    %1180 = vmatpush1.bf16.msra.mxu0 0
    %1181 = vmatprep.subr.bf16.mxu0 0
    %1182 = vmatpush1.bf16.msra.mxu0 0
    %1183 = vmatprep.subr.bf16.mxu0 0
    %1184 = vmatpush1.bf16.msra.mxu0 0
    %1185 = vmatprep.subr.bf16.mxu0 0
    %1186 = vmatpush1.bf16.msra.mxu0 0
    %1187 = vmatprep.subr.bf16.mxu0 0
    %1188 = vmatpush1.bf16.msra.mxu0 0
    %1189 = vmatprep.subr.bf16.mxu0 0
    %1190 = vmatpush1.bf16.msra.mxu0 0
    %1191 = vmatprep.subr.bf16.mxu0 0
    %1192 = vmatpush1.bf16.msra.mxu0 0
    %1193 = vmatprep.subr.bf16.mxu0 0
    %1194 = vmatpush1.bf16.msra.mxu0 0
    %1195 = vmatprep.subr.bf16.mxu0 0
    %1196 = vmatpush1.bf16.msra.mxu0 0
    %1197 = vmatprep.mubr.bf16.mxu0 0
    %1198 = vmatmul.mubr.bf16.gmra.mrb[0].mxu0 %v753
    %v1199 = vpop.f32.mrb[0].mxu0
    %v1200 = vadd.f32 %v354, %v1199
    %v1201 = vpop.f32.mrb[0].mxu0
    %v1202 = vadd.f32 %v358, %v1201
    %v1203 = vpop.f32.mrb[0].mxu0
    %v1204 = vpop.f32.mrb[0].mxu0
    %1205 = vdwg.mxu0
    %1206 = vmatprep.subr.bf16.mxu0 %v646
    %1207 = vmatpush1.bf16.msra.mxu0 %v645
    %1208 = vmatprep.subr.bf16.mxu0 %v678
    %1209 = vmatpush1.bf16.msra.mxu0 %v677
    %1210 = vmatprep.subr.bf16.mxu0 0
    %1211 = vmatpush1.bf16.msra.mxu0 0
    %1212 = vmatprep.subr.bf16.mxu0 0
    %1213 = vmatpush1.bf16.msra.mxu0 0
    %1214 = vmatprep.subr.bf16.mxu0 0
    %1215 = vmatpush1.bf16.msra.mxu0 0
    %1216 = vmatprep.subr.bf16.mxu0 0
    %1217 = vmatpush1.bf16.msra.mxu0 0
    %1218 = vmatprep.subr.bf16.mxu0 0
    %1219 = vmatpush1.bf16.msra.mxu0 0
    %1220 = vmatprep.subr.bf16.mxu0 0
    %1221 = vmatpush1.bf16.msra.mxu0 0
    %1222 = vmatprep.subr.bf16.mxu0 0
    %1223 = vmatpush1.bf16.msra.mxu0 0
    %1224 = vmatprep.subr.bf16.mxu0 0
    %1225 = vmatpush1.bf16.msra.mxu0 0
    %1226 = vmatprep.subr.bf16.mxu0 0
    %1227 = vmatpush1.bf16.msra.mxu0 0
    %1228 = vmatprep.subr.bf16.mxu0 0
    %1229 = vmatpush1.bf16.msra.mxu0 0
    %1230 = vmatprep.subr.bf16.mxu0 0
    %1231 = vmatpush1.bf16.msra.mxu0 0
    %1232 = vmatprep.subr.bf16.mxu0 0
    %1233 = vmatpush1.bf16.msra.mxu0 0
    %1234 = vmatprep.subr.bf16.mxu0 0
    %1235 = vmatpush1.bf16.msra.mxu0 0
    %1236 = vmatprep.subr.bf16.mxu0 0
    %1237 = vmatpush1.bf16.msra.mxu0 0
    %1238 = vmatprep.mubr.bf16.mxu0 0
    %1239 = vmatmul.mubr.bf16.gmra.mrb[0].mxu0 %v753
    %v1240 = vpop.f32.mrb[0].mxu0
    %v1241 = vadd.f32 %v362, %v1240
    %v1242 = vpop.f32.mrb[0].mxu0
    %v1243 = vadd.f32 %v366, %v1242
    %v1244 = vpop.f32.mrb[0].mxu0
    %v1245 = vpop.f32.mrb[0].mxu0
    %1246 = vdwg.mxu0
    %1247 = vmatprep.subr.bf16.mxu0 %v648
    %1248 = vmatpush1.bf16.msra.mxu0 %v647
    %1249 = vmatprep.subr.bf16.mxu0 %v680
    %1250 = vmatpush1.bf16.msra.mxu0 %v679
    %1251 = vmatprep.subr.bf16.mxu0 0
    %1252 = vmatpush1.bf16.msra.mxu0 0
    %1253 = vmatprep.subr.bf16.mxu0 0
    %1254 = vmatpush1.bf16.msra.mxu0 0
    %1255 = vmatprep.subr.bf16.mxu0 0
    %1256 = vmatpush1.bf16.msra.mxu0 0
    %1257 = vmatprep.subr.bf16.mxu0 0
    %1258 = vmatpush1.bf16.msra.mxu0 0
    %1259 = vmatprep.subr.bf16.mxu0 0
    %1260 = vmatpush1.bf16.msra.mxu0 0
    %1261 = vmatprep.subr.bf16.mxu0 0
    %1262 = vmatpush1.bf16.msra.mxu0 0
    %1263 = vmatprep.subr.bf16.mxu0 0
    %1264 = vmatpush1.bf16.msra.mxu0 0
    %1265 = vmatprep.subr.bf16.mxu0 0
    %1266 = vmatpush1.bf16.msra.mxu0 0
    %1267 = vmatprep.subr.bf16.mxu0 0
    %1268 = vmatpush1.bf16.msra.mxu0 0
    %1269 = vmatprep.subr.bf16.mxu0 0
    %1270 = vmatpush1.bf16.msra.mxu0 0
    %1271 = vmatprep.subr.bf16.mxu0 0
    %1272 = vmatpush1.bf16.msra.mxu0 0
    %1273 = vmatprep.subr.bf16.mxu0 0
    %1274 = vmatpush1.bf16.msra.mxu0 0
    %1275 = vmatprep.subr.bf16.mxu0 0
    %1276 = vmatpush1.bf16.msra.mxu0 0
    %1277 = vmatprep.subr.bf16.mxu0 0
    %1278 = vmatpush1.bf16.msra.mxu0 0
    %1279 = vmatprep.mubr.bf16.mxu0 0
    %1280 = vmatmul.mubr.bf16.gmra.mrb[0].mxu0 %v753
    %v1281 = vpop.f32.mrb[0].mxu0
    %v1282 = vadd.f32 %v370, %v1281
    %v1283 = vpop.f32.mrb[0].mxu0
    %v1284 = vadd.f32 %v374, %v1283
    %v1285 = vpop.f32.mrb[0].mxu0
    %v1286 = vpop.f32.mrb[0].mxu0
    %1287 = vdwg.mxu0
    %1288 = vmatprep.subr.bf16.mxu0 %v650
    %1289 = vmatpush1.bf16.msra.mxu0 %v649
    %1290 = vmatprep.subr.bf16.mxu0 %v682
    %1291 = vmatpush1.bf16.msra.mxu0 %v681
    %1292 = vmatprep.subr.bf16.mxu0 0
    %1293 = vmatpush1.bf16.msra.mxu0 0
    %1294 = vmatprep.subr.bf16.mxu0 0
    %1295 = vmatpush1.bf16.msra.mxu0 0
    %1296 = vmatprep.subr.bf16.mxu0 0
    %1297 = vmatpush1.bf16.msra.mxu0 0
    %1298 = vmatprep.subr.bf16.mxu0 0
    %1299 = vmatpush1.bf16.msra.mxu0 0
    %1300 = vmatprep.subr.bf16.mxu0 0
    %1301 = vmatpush1.bf16.msra.mxu0 0
    %1302 = vmatprep.subr.bf16.mxu0 0
    %1303 = vmatpush1.bf16.msra.mxu0 0
    %1304 = vmatprep.subr.bf16.mxu0 0
    %1305 = vmatpush1.bf16.msra.mxu0 0
    %1306 = vmatprep.subr.bf16.mxu0 0
    %1307 = vmatpush1.bf16.msra.mxu0 0
    %1308 = vmatprep.subr.bf16.mxu0 0
    %1309 = vmatpush1.bf16.msra.mxu0 0
    %1310 = vmatprep.subr.bf16.mxu0 0
    %1311 = vmatpush1.bf16.msra.mxu0 0
    %1312 = vmatprep.subr.bf16.mxu0 0
    %1313 = vmatpush1.bf16.msra.mxu0 0
    %1314 = vmatprep.subr.bf16.mxu0 0
    %1315 = vmatpush1.bf16.msra.mxu0 0
    %1316 = vmatprep.subr.bf16.mxu0 0
    %1317 = vmatpush1.bf16.msra.mxu0 0
    %1318 = vmatprep.subr.bf16.mxu0 0
    %1319 = vmatpush1.bf16.msra.mxu0 0
    %1320 = vmatprep.mubr.bf16.mxu0 0
    %1321 = vmatmul.mubr.bf16.gmra.mrb[0].mxu0 %v753
    %v1322 = vpop.f32.mrb[0].mxu0
    %v1323 = vadd.f32 %v378, %v1322
    %v1324 = vpop.f32.mrb[0].mxu0
    %v1325 = vadd.f32 %v382, %v1324
    %v1326 = vpop.f32.mrb[0].mxu0
    %v1327 = vpop.f32.mrb[0].mxu0
    %1328 = vdwg.mxu0
    %1329 = vmatprep.subr.bf16.mxu0 %v652
    %1330 = vmatpush1.bf16.msra.mxu0 %v651
    %1331 = vmatprep.subr.bf16.mxu0 %v684
    %1332 = vmatpush1.bf16.msra.mxu0 %v683
    %1333 = vmatprep.subr.bf16.mxu0 0
    %1334 = vmatpush1.bf16.msra.mxu0 0
    %1335 = vmatprep.subr.bf16.mxu0 0
    %1336 = vmatpush1.bf16.msra.mxu0 0
    %1337 = vmatprep.subr.bf16.mxu0 0
    %1338 = vmatpush1.bf16.msra.mxu0 0
    %1339 = vmatprep.subr.bf16.mxu0 0
    %1340 = vmatpush1.bf16.msra.mxu0 0
    %1341 = vmatprep.subr.bf16.mxu0 0
    %1342 = vmatpush1.bf16.msra.mxu0 0
    %1343 = vmatprep.subr.bf16.mxu0 0
    %1344 = vmatpush1.bf16.msra.mxu0 0
    %1345 = vmatprep.subr.bf16.mxu0 0
    %1346 = vmatpush1.bf16.msra.mxu0 0
    %1347 = vmatprep.subr.bf16.mxu0 0
    %1348 = vmatpush1.bf16.msra.mxu0 0
    %1349 = vmatprep.subr.bf16.mxu0 0
    %1350 = vmatpush1.bf16.msra.mxu0 0
    %1351 = vmatprep.subr.bf16.mxu0 0
    %1352 = vmatpush1.bf16.msra.mxu0 0
    %1353 = vmatprep.subr.bf16.mxu0 0
    %1354 = vmatpush1.bf16.msra.mxu0 0
    %1355 = vmatprep.subr.bf16.mxu0 0
    %1356 = vmatpush1.bf16.msra.mxu0 0
    %1357 = vmatprep.subr.bf16.mxu0 0
    %1358 = vmatpush1.bf16.msra.mxu0 0
    %1359 = vmatprep.subr.bf16.mxu0 0
    %1360 = vmatpush1.bf16.msra.mxu0 0
    %1361 = vmatprep.mubr.bf16.mxu0 0
    %1362 = vmatmul.mubr.bf16.gmra.mrb[0].mxu0 %v753
    %v1363 = vpop.f32.mrb[0].mxu0
    %v1364 = vadd.f32 %v386, %v1363
    %v1365 = vpop.f32.mrb[0].mxu0
    %v1366 = vadd.f32 %v390, %v1365
    %v1367 = vpop.f32.mrb[0].mxu0
    %v1368 = vpop.f32.mrb[0].mxu0
    %1369 = vdwg.mxu0
    %1370 = vmatprep.subr.bf16.mxu0 %v654
    %1371 = vmatpush1.bf16.msra.mxu0 %v653
    %1372 = vmatprep.subr.bf16.mxu0 %v686
    %1373 = vmatpush1.bf16.msra.mxu0 %v685
    %1374 = vmatprep.subr.bf16.mxu0 0
    %1375 = vmatpush1.bf16.msra.mxu0 0
    %1376 = vmatprep.subr.bf16.mxu0 0
    %1377 = vmatpush1.bf16.msra.mxu0 0
    %1378 = vmatprep.subr.bf16.mxu0 0
    %1379 = vmatpush1.bf16.msra.mxu0 0
    %1380 = vmatprep.subr.bf16.mxu0 0
    %1381 = vmatpush1.bf16.msra.mxu0 0
    %1382 = vmatprep.subr.bf16.mxu0 0
    %1383 = vmatpush1.bf16.msra.mxu0 0
    %1384 = vmatprep.subr.bf16.mxu0 0
    %1385 = vmatpush1.bf16.msra.mxu0 0
    %1386 = vmatprep.subr.bf16.mxu0 0
    %1387 = vmatpush1.bf16.msra.mxu0 0
    %1388 = vmatprep.subr.bf16.mxu0 0
    %1389 = vmatpush1.bf16.msra.mxu0 0
    %1390 = vmatprep.subr.bf16.mxu0 0
    %1391 = vmatpush1.bf16.msra.mxu0 0
    %1392 = vmatprep.subr.bf16.mxu0 0
    %1393 = vmatpush1.bf16.msra.mxu0 0
    %1394 = vmatprep.subr.bf16.mxu0 0
    %1395 = vmatpush1.bf16.msra.mxu0 0
    %1396 = vmatprep.subr.bf16.mxu0 0
    %1397 = vmatpush1.bf16.msra.mxu0 0
    %1398 = vmatprep.subr.bf16.mxu0 0
    %1399 = vmatpush1.bf16.msra.mxu0 0
    %1400 = vmatprep.subr.bf16.mxu0 0
    %1401 = vmatpush1.bf16.msra.mxu0 0
    %1402 = vmatprep.mubr.bf16.mxu0 0
    %1403 = vmatmul.mubr.bf16.gmra.mrb[0].mxu0 %v753
    %v1404 = vpop.f32.mrb[0].mxu0
    %v1405 = vadd.f32 %v394, %v1404
    %v1406 = vpop.f32.mrb[0].mxu0
    %v1407 = vadd.f32 %v398, %v1406
    %v1408 = vpop.f32.mrb[0].mxu0
    %v1409 = vpop.f32.mrb[0].mxu0
    %1410 = vdwg.mxu0
    %v1411 = vmax.f32 %v790, 0.0
    %v1412 = vmax.f32 %v792, 0.0
    %v1413 = vmax.f32 %v831, 0.0
    %v1414 = vmax.f32 %v833, 0.0
    %v1415 = vmax.f32 %v872, 0.0
    %v1416 = vmax.f32 %v874, 0.0
    %v1417 = vmax.f32 %v913, 0.0
    %v1418 = vmax.f32 %v915, 0.0
    %v1419 = vmax.f32 %v954, 0.0
    %v1420 = vmax.f32 %v956, 0.0
    %v1421 = vmax.f32 %v995, 0.0
    %v1422 = vmax.f32 %v997, 0.0
    %v1423 = vmax.f32 %v1036, 0.0
    %v1424 = vmax.f32 %v1038, 0.0
    %v1425 = vmax.f32 %v1077, 0.0
    %v1426 = vmax.f32 %v1079, 0.0
    %v1427 = vmax.f32 %v1118, 0.0
    %v1428 = vmax.f32 %v1120, 0.0
    %v1429 = vmax.f32 %v1159, 0.0
    %v1430 = vmax.f32 %v1161, 0.0
    %v1431 = vmax.f32 %v1200, 0.0
    %v1432 = vmax.f32 %v1202, 0.0
    %v1433 = vmax.f32 %v1241, 0.0
    %v1434 = vmax.f32 %v1243, 0.0
    %v1435 = vmax.f32 %v1282, 0.0
    %v1436 = vmax.f32 %v1284, 0.0
    %v1437 = vmax.f32 %v1323, 0.0
    %v1438 = vmax.f32 %v1325, 0.0
    %v1439 = vmax.f32 %v1364, 0.0
    %v1440 = vmax.f32 %v1366, 0.0
    %v1441 = vmax.f32 %v1405, 0.0
    %v1442 = vmax.f32 %v1407, 0.0
    %v1443 = vpack.c.bf16 %v1411, %v1411
    %v1444 = vpack.c.bf16 %v1412, %v1412
    %v1445 = vpack.c.bf16 %v1413, %v1413
    %v1446 = vpack.c.bf16 %v1414, %v1414
    %v1447 = vpack.c.bf16 %v1415, %v1415
    %v1448 = vpack.c.bf16 %v1416, %v1416
    %v1449 = vpack.c.bf16 %v1417, %v1417
    %v1450 = vpack.c.bf16 %v1418, %v1418
    %v1451 = vpack.c.bf16 %v1419, %v1419
    %v1452 = vpack.c.bf16 %v1420, %v1420
    %v1453 = vpack.c.bf16 %v1421, %v1421
    %v1454 = vpack.c.bf16 %v1422, %v1422
    %v1455 = vpack.c.bf16 %v1423, %v1423
    %v1456 = vpack.c.bf16 %v1424, %v1424
    %v1457 = vpack.c.bf16 %v1425, %v1425
    %v1458 = vpack.c.bf16 %v1426, %v1426
    %v1459 = vpack.c.bf16 %v1427, %v1427
    %v1460 = vpack.c.bf16 %v1428, %v1428
    %v1461 = vpack.c.bf16 %v1429, %v1429
    %v1462 = vpack.c.bf16 %v1430, %v1430
    %v1463 = vpack.c.bf16 %v1431, %v1431
    %v1464 = vpack.c.bf16 %v1432, %v1432
    %v1465 = vpack.c.bf16 %v1433, %v1433
    %v1466 = vpack.c.bf16 %v1434, %v1434
    %v1467 = vpack.c.bf16 %v1435, %v1435
    %v1468 = vpack.c.bf16 %v1436, %v1436
    %v1469 = vpack.c.bf16 %v1437, %v1437
    %v1470 = vpack.c.bf16 %v1438, %v1438
    %v1471 = vpack.c.bf16 %v1439, %v1439
    %v1472 = vpack.c.bf16 %v1440, %v1440
    %v1473 = vpack.c.bf16 %v1441, %v1441
    %v1474 = vpack.c.bf16 %v1442, %v1442
    %v1475 = vld [vmem:[#allocation9] sm:$0xff]
    %v1476 = vld [vmem:[#allocation9 + $0x8] sm:$0xff]
    %v1477 = vld [vmem:[#allocation9 + $0x10] sm:$0xff]
    %v1478 = vld [vmem:[#allocation9 + $0x18] sm:$0xff]
    %v1479 = vld [vmem:[#allocation9 + $0x20] sm:$0xff]
    %v1480 = vld [vmem:[#allocation9 + $0x28] sm:$0xff]
    %v1481 = vld [vmem:[#allocation9 + $0x30] sm:$0xff]
    %v1482 = vld [vmem:[#allocation9 + $0x38] sm:$0xff]
    %v1483 = vld [vmem:[#allocation9 + $0x40] sm:$0xff]
    %v1484 = vld [vmem:[#allocation9 + $0x48] sm:$0xff]
    %v1485 = vld [vmem:[#allocation9 + $0x50] sm:$0xff]
    %v1486 = vld [vmem:[#allocation9 + $0x58] sm:$0xff]
    %v1487 = vld [vmem:[#allocation9 + $0x60] sm:$0xff]
    %v1488 = vld [vmem:[#allocation9 + $0x68] sm:$0xff]
    %v1489 = vld [vmem:[#allocation9 + $0x70] sm:$0xff]
    %v1490 = vld [vmem:[#allocation9 + $0x78] sm:$0xff]
    %v1491 = vld [vmem:[#allocation9 + $0x80] sm:$0xff]
    %v1492 = vld [vmem:[#allocation9 + $0x88] sm:$0xff]
    %v1493 = vld [vmem:[#allocation9 + $0x90] sm:$0xff]
    %v1494 = vld [vmem:[#allocation9 + $0x98] sm:$0xff]
    %v1495 = vld [vmem:[#allocation9 + $0xa0] sm:$0xff]
    %v1496 = vld [vmem:[#allocation9 + $0xa8] sm:$0xff]
    %v1497 = vld [vmem:[#allocation9 + $0xb0] sm:$0xff]
    %v1498 = vld [vmem:[#allocation9 + $0xb8] sm:$0xff]
    %v1499 = vld [vmem:[#allocation9 + $0xc0] sm:$0xff]
    %v1500 = vld [vmem:[#allocation9 + $0xc8] sm:$0xff]
    %v1501 = vld [vmem:[#allocation9 + $0xd0] sm:$0xff]
    %v1502 = vld [vmem:[#allocation9 + $0xd8] sm:$0xff]
    %v1503 = vld [vmem:[#allocation9 + $0xe0] sm:$0xff]
    %v1504 = vld [vmem:[#allocation9 + $0xe8] sm:$0xff]
    %v1505 = vld [vmem:[#allocation9 + $0xf0] sm:$0xff]
    %v1506 = vld [vmem:[#allocation9 + $0xf8] sm:$0xff]
    %v1507 = vld [vmem:[#allocation9 + $0x100] sm:$0xff]
    %v1508 = vld [vmem:[#allocation9 + $0x108] sm:$0xff]
    %v1509 = vld [vmem:[#allocation9 + $0x110] sm:$0xff]
    %v1510 = vld [vmem:[#allocation9 + $0x118] sm:$0xff]
    %v1511 = vld [vmem:[#allocation9 + $0x120] sm:$0xff]
    %v1512 = vld [vmem:[#allocation9 + $0x128] sm:$0xff]
    %v1513 = vld [vmem:[#allocation9 + $0x130] sm:$0xff]
    %v1514 = vld [vmem:[#allocation9 + $0x138] sm:$0xff]
    %v1515 = vld [vmem:[#allocation9 + $0x140] sm:$0xff]
    %v1516 = vld [vmem:[#allocation9 + $0x148] sm:$0xff]
    %v1517 = vld [vmem:[#allocation9 + $0x150] sm:$0xff]
    %v1518 = vld [vmem:[#allocation9 + $0x158] sm:$0xff]
    %v1519 = vld [vmem:[#allocation9 + $0x160] sm:$0xff]
    %v1520 = vld [vmem:[#allocation9 + $0x168] sm:$0xff]
    %v1521 = vld [vmem:[#allocation9 + $0x170] sm:$0xff]
    %v1522 = vld [vmem:[#allocation9 + $0x178] sm:$0xff]
    %v1523 = vld [vmem:[#allocation9 + $0x180] sm:$0xff]
    %v1524 = vld [vmem:[#allocation9 + $0x188] sm:$0xff]
    %v1525 = vld [vmem:[#allocation9 + $0x190] sm:$0xff]
    %v1526 = vld [vmem:[#allocation9 + $0x198] sm:$0xff]
    %v1527 = vld [vmem:[#allocation9 + $0x1a0] sm:$0xff]
    %v1528 = vld [vmem:[#allocation9 + $0x1a8] sm:$0xff]
    %v1529 = vld [vmem:[#allocation9 + $0x1b0] sm:$0xff]
    %v1530 = vld [vmem:[#allocation9 + $0x1b8] sm:$0xff]
    %v1531 = vld [vmem:[#allocation9 + $0x1c0] sm:$0xff]
    %v1532 = vld [vmem:[#allocation9 + $0x1c8] sm:$0xff]
    %v1533 = vld [vmem:[#allocation9 + $0x1d0] sm:$0xff]
    %v1534 = vld [vmem:[#allocation9 + $0x1d8] sm:$0xff]
    %v1535 = vld [vmem:[#allocation9 + $0x1e0] sm:$0xff]
    %v1536 = vld [vmem:[#allocation9 + $0x1e8] sm:$0xff]
    %v1537 = vld [vmem:[#allocation9 + $0x1f0] sm:$0xff]
    %v1538 = vld [vmem:[#allocation9 + $0x1f8] sm:$0xff]
    %v1539 = vld [vmem:[#allocation9 + $0x200] sm:$0xff]
    %v1540 = vld [vmem:[#allocation9 + $0x208] sm:$0xff]
    %v1541 = vld [vmem:[#allocation9 + $0x210] sm:$0xff]
    %v1542 = vld [vmem:[#allocation9 + $0x218] sm:$0xff]
    %v1543 = vld [vmem:[#allocation9 + $0x220] sm:$0xff]
    %v1544 = vld [vmem:[#allocation9 + $0x228] sm:$0xff]
    %v1545 = vld [vmem:[#allocation9 + $0x230] sm:$0xff]
    %v1546 = vld [vmem:[#allocation9 + $0x238] sm:$0xff]
    %v1547 = vld [vmem:[#allocation9 + $0x240] sm:$0xff]
    %v1548 = vld [vmem:[#allocation9 + $0x248] sm:$0xff]
    %v1549 = vld [vmem:[#allocation9 + $0x250] sm:$0xff]
    %v1550 = vld [vmem:[#allocation9 + $0x258] sm:$0xff]
    %v1551 = vld [vmem:[#allocation9 + $0x260] sm:$0xff]
    %v1552 = vld [vmem:[#allocation9 + $0x268] sm:$0xff]
    %v1553 = vld [vmem:[#allocation9 + $0x270] sm:$0xff]
    %v1554 = vld [vmem:[#allocation9 + $0x278] sm:$0xff]
    %v1555 = vld [vmem:[#allocation9 + $0x280] sm:$0xff]
    %v1556 = vld [vmem:[#allocation9 + $0x288] sm:$0xff]
    %v1557 = vld [vmem:[#allocation9 + $0x290] sm:$0xff]
    %v1558 = vld [vmem:[#allocation9 + $0x298] sm:$0xff]
    %v1559 = vld [vmem:[#allocation9 + $0x2a0] sm:$0xff]
    %v1560 = vld [vmem:[#allocation9 + $0x2a8] sm:$0xff]
    %v1561 = vld [vmem:[#allocation9 + $0x2b0] sm:$0xff]
    %v1562 = vld [vmem:[#allocation9 + $0x2b8] sm:$0xff]
    %v1563 = vld [vmem:[#allocation9 + $0x2c0] sm:$0xff]
    %v1564 = vld [vmem:[#allocation9 + $0x2c8] sm:$0xff]
    %v1565 = vld [vmem:[#allocation9 + $0x2d0] sm:$0xff]
    %v1566 = vld [vmem:[#allocation9 + $0x2d8] sm:$0xff]
    %v1567 = vld [vmem:[#allocation9 + $0x2e0] sm:$0xff]
    %v1568 = vld [vmem:[#allocation9 + $0x2e8] sm:$0xff]
    %v1569 = vld [vmem:[#allocation9 + $0x2f0] sm:$0xff]
    %v1570 = vld [vmem:[#allocation9 + $0x2f8] sm:$0xff]
    %v1571 = vld [vmem:[#allocation9 + $0x300] sm:$0xff]
    %v1572 = vld [vmem:[#allocation9 + $0x308] sm:$0xff]
    %v1573 = vld [vmem:[#allocation9 + $0x310] sm:$0xff]
    %v1574 = vld [vmem:[#allocation9 + $0x318] sm:$0xff]
    %v1575 = vld [vmem:[#allocation9 + $0x320] sm:$0xff]
    %v1576 = vld [vmem:[#allocation9 + $0x328] sm:$0xff]
    %v1577 = vld [vmem:[#allocation9 + $0x330] sm:$0xff]
    %v1578 = vld [vmem:[#allocation9 + $0x338] sm:$0xff]
    %v1579 = vld [vmem:[#allocation9 + $0x340] sm:$0xff]
    %v1580 = vld [vmem:[#allocation9 + $0x348] sm:$0xff]
    %v1581 = vld [vmem:[#allocation9 + $0x350] sm:$0xff]
    %v1582 = vld [vmem:[#allocation9 + $0x358] sm:$0xff]
    %v1583 = vld [vmem:[#allocation9 + $0x360] sm:$0xff]
    %v1584 = vld [vmem:[#allocation9 + $0x368] sm:$0xff]
    %v1585 = vld [vmem:[#allocation9 + $0x370] sm:$0xff]
    %v1586 = vld [vmem:[#allocation9 + $0x378] sm:$0xff]
    %v1587 = vld [vmem:[#allocation9 + $0x380] sm:$0xff]
    %v1588 = vld [vmem:[#allocation9 + $0x388] sm:$0xff]
    %v1589 = vld [vmem:[#allocation9 + $0x390] sm:$0xff]
    %v1590 = vld [vmem:[#allocation9 + $0x398] sm:$0xff]
    %v1591 = vld [vmem:[#allocation9 + $0x3a0] sm:$0xff]
    %v1592 = vld [vmem:[#allocation9 + $0x3a8] sm:$0xff]
    %v1593 = vld [vmem:[#allocation9 + $0x3b0] sm:$0xff]
    %v1594 = vld [vmem:[#allocation9 + $0x3b8] sm:$0xff]
    %v1595 = vld [vmem:[#allocation9 + $0x3c0] sm:$0xff]
    %v1596 = vld [vmem:[#allocation9 + $0x3c8] sm:$0xff]
    %v1597 = vld [vmem:[#allocation9 + $0x3d0] sm:$0xff]
    %v1598 = vld [vmem:[#allocation9 + $0x3d8] sm:$0xff]
    %v1599 = vld [vmem:[#allocation9 + $0x3e0] sm:$0xff]
    %v1600 = vld [vmem:[#allocation9 + $0x3e8] sm:$0xff]
    %v1601 = vld [vmem:[#allocation9 + $0x3f0] sm:$0xff]
    %v1602 = vld [vmem:[#allocation9 + $0x3f8] sm:$0xff]
    %v1603 = vld [vmem:[#allocation9 + $0x400] sm:$0xff]
    %v1604 = vld [vmem:[#allocation9 + $0x408] sm:$0xff]
    %v1605 = vld [vmem:[#allocation9 + $0x410] sm:$0xff]
    %v1606 = vld [vmem:[#allocation9 + $0x418] sm:$0xff]
    %v1607 = vld [vmem:[#allocation9 + $0x420] sm:$0xff]
    %v1608 = vld [vmem:[#allocation9 + $0x428] sm:$0xff]
    %v1609 = vld [vmem:[#allocation9 + $0x430] sm:$0xff]
    %v1610 = vld [vmem:[#allocation9 + $0x438] sm:$0xff]
    %v1611 = vld [vmem:[#allocation9 + $0x440] sm:$0xff]
    %v1612 = vld [vmem:[#allocation9 + $0x448] sm:$0xff]
    %v1613 = vld [vmem:[#allocation9 + $0x450] sm:$0xff]
    %v1614 = vld [vmem:[#allocation9 + $0x458] sm:$0xff]
    %v1615 = vld [vmem:[#allocation9 + $0x460] sm:$0xff]
    %v1616 = vld [vmem:[#allocation9 + $0x468] sm:$0xff]
    %v1617 = vld [vmem:[#allocation9 + $0x470] sm:$0xff]
    %v1618 = vld [vmem:[#allocation9 + $0x478] sm:$0xff]
    %v1619 = vld [vmem:[#allocation9 + $0x480] sm:$0xff]
    %v1620 = vld [vmem:[#allocation9 + $0x488] sm:$0xff]
    %v1621 = vld [vmem:[#allocation9 + $0x490] sm:$0xff]
    %v1622 = vld [vmem:[#allocation9 + $0x498] sm:$0xff]
    %v1623 = vld [vmem:[#allocation9 + $0x4a0] sm:$0xff]
    %v1624 = vld [vmem:[#allocation9 + $0x4a8] sm:$0xff]
    %v1625 = vld [vmem:[#allocation9 + $0x4b0] sm:$0xff]
    %v1626 = vld [vmem:[#allocation9 + $0x4b8] sm:$0xff]
    %v1627 = vld [vmem:[#allocation9 + $0x4c0] sm:$0xff]
    %v1628 = vld [vmem:[#allocation9 + $0x4c8] sm:$0xff]
    %v1629 = vld [vmem:[#allocation9 + $0x4d0] sm:$0xff]
    %v1630 = vld [vmem:[#allocation9 + $0x4d8] sm:$0xff]
    %v1631 = vld [vmem:[#allocation9 + $0x4e0] sm:$0xff]
    %v1632 = vld [vmem:[#allocation9 + $0x4e8] sm:$0xff]
    %v1633 = vld [vmem:[#allocation9 + $0x4f0] sm:$0xff]
    %v1634 = vld [vmem:[#allocation9 + $0x4f8] sm:$0xff]
    %v1635 = vld [vmem:[#allocation9 + $0x500] sm:$0xff]
    %v1636 = vld [vmem:[#allocation9 + $0x508] sm:$0xff]
    %v1637 = vld [vmem:[#allocation9 + $0x510] sm:$0xff]
    %v1638 = vld [vmem:[#allocation9 + $0x518] sm:$0xff]
    %v1639 = vld [vmem:[#allocation9 + $0x520] sm:$0xff]
    %v1640 = vld [vmem:[#allocation9 + $0x528] sm:$0xff]
    %v1641 = vld [vmem:[#allocation9 + $0x530] sm:$0xff]
    %v1642 = vld [vmem:[#allocation9 + $0x538] sm:$0xff]
    %v1643 = vld [vmem:[#allocation9 + $0x540] sm:$0xff]
    %v1644 = vld [vmem:[#allocation9 + $0x548] sm:$0xff]
    %v1645 = vld [vmem:[#allocation9 + $0x550] sm:$0xff]
    %v1646 = vld [vmem:[#allocation9 + $0x558] sm:$0xff]
    %v1647 = vld [vmem:[#allocation9 + $0x560] sm:$0xff]
    %v1648 = vld [vmem:[#allocation9 + $0x568] sm:$0xff]
    %v1649 = vld [vmem:[#allocation9 + $0x570] sm:$0xff]
    %v1650 = vld [vmem:[#allocation9 + $0x578] sm:$0xff]
    %v1651 = vld [vmem:[#allocation9 + $0x580] sm:$0xff]
    %v1652 = vld [vmem:[#allocation9 + $0x588] sm:$0xff]
    %v1653 = vld [vmem:[#allocation9 + $0x590] sm:$0xff]
    %v1654 = vld [vmem:[#allocation9 + $0x598] sm:$0xff]
    %v1655 = vld [vmem:[#allocation9 + $0x5a0] sm:$0xff]
    %v1656 = vld [vmem:[#allocation9 + $0x5a8] sm:$0xff]
    %v1657 = vld [vmem:[#allocation9 + $0x5b0] sm:$0xff]
    %v1658 = vld [vmem:[#allocation9 + $0x5b8] sm:$0xff]
    %v1659 = vld [vmem:[#allocation9 + $0x5c0] sm:$0xff]
    %v1660 = vld [vmem:[#allocation9 + $0x5c8] sm:$0xff]
    %v1661 = vld [vmem:[#allocation9 + $0x5d0] sm:$0xff]
    %v1662 = vld [vmem:[#allocation9 + $0x5d8] sm:$0xff]
    %v1663 = vld [vmem:[#allocation9 + $0x5e0] sm:$0xff]
    %v1664 = vld [vmem:[#allocation9 + $0x5e8] sm:$0xff]
    %v1665 = vld [vmem:[#allocation9 + $0x5f0] sm:$0xff]
    %v1666 = vld [vmem:[#allocation9 + $0x5f8] sm:$0xff]
    %v1667 = vld [vmem:[#allocation9 + $0x600] sm:$0xff]
    %v1668 = vld [vmem:[#allocation9 + $0x608] sm:$0xff]
    %v1669 = vld [vmem:[#allocation9 + $0x610] sm:$0xff]
    %v1670 = vld [vmem:[#allocation9 + $0x618] sm:$0xff]
    %v1671 = vld [vmem:[#allocation9 + $0x620] sm:$0xff]
    %v1672 = vld [vmem:[#allocation9 + $0x628] sm:$0xff]
    %v1673 = vld [vmem:[#allocation9 + $0x630] sm:$0xff]
    %v1674 = vld [vmem:[#allocation9 + $0x638] sm:$0xff]
    %v1675 = vld [vmem:[#allocation9 + $0x640] sm:$0xff]
    %v1676 = vld [vmem:[#allocation9 + $0x648] sm:$0xff]
    %v1677 = vld [vmem:[#allocation9 + $0x650] sm:$0xff]
    %v1678 = vld [vmem:[#allocation9 + $0x658] sm:$0xff]
    %v1679 = vld [vmem:[#allocation9 + $0x660] sm:$0xff]
    %v1680 = vld [vmem:[#allocation9 + $0x668] sm:$0xff]
    %v1681 = vld [vmem:[#allocation9 + $0x670] sm:$0xff]
    %v1682 = vld [vmem:[#allocation9 + $0x678] sm:$0xff]
    %v1683 = vld [vmem:[#allocation9 + $0x680] sm:$0xff]
    %v1684 = vld [vmem:[#allocation9 + $0x688] sm:$0xff]
    %v1685 = vld [vmem:[#allocation9 + $0x690] sm:$0xff]
    %v1686 = vld [vmem:[#allocation9 + $0x698] sm:$0xff]
    %v1687 = vld [vmem:[#allocation9 + $0x6a0] sm:$0xff]
    %v1688 = vld [vmem:[#allocation9 + $0x6a8] sm:$0xff]
    %v1689 = vld [vmem:[#allocation9 + $0x6b0] sm:$0xff]
    %v1690 = vld [vmem:[#allocation9 + $0x6b8] sm:$0xff]
    %v1691 = vld [vmem:[#allocation9 + $0x6c0] sm:$0xff]
    %v1692 = vld [vmem:[#allocation9 + $0x6c8] sm:$0xff]
    %v1693 = vld [vmem:[#allocation9 + $0x6d0] sm:$0xff]
    %v1694 = vld [vmem:[#allocation9 + $0x6d8] sm:$0xff]
    %v1695 = vld [vmem:[#allocation9 + $0x6e0] sm:$0xff]
    %v1696 = vld [vmem:[#allocation9 + $0x6e8] sm:$0xff]
    %v1697 = vld [vmem:[#allocation9 + $0x6f0] sm:$0xff]
    %v1698 = vld [vmem:[#allocation9 + $0x6f8] sm:$0xff]
    %v1699 = vld [vmem:[#allocation9 + $0x700] sm:$0xff]
    %v1700 = vld [vmem:[#allocation9 + $0x708] sm:$0xff]
    %v1701 = vld [vmem:[#allocation9 + $0x710] sm:$0xff]
    %v1702 = vld [vmem:[#allocation9 + $0x718] sm:$0xff]
    %v1703 = vld [vmem:[#allocation9 + $0x720] sm:$0xff]
    %v1704 = vld [vmem:[#allocation9 + $0x728] sm:$0xff]
    %v1705 = vld [vmem:[#allocation9 + $0x730] sm:$0xff]
    %v1706 = vld [vmem:[#allocation9 + $0x738] sm:$0xff]
    %v1707 = vld [vmem:[#allocation9 + $0x740] sm:$0xff]
    %v1708 = vld [vmem:[#allocation9 + $0x748] sm:$0xff]
    %v1709 = vld [vmem:[#allocation9 + $0x750] sm:$0xff]
    %v1710 = vld [vmem:[#allocation9 + $0x758] sm:$0xff]
    %v1711 = vld [vmem:[#allocation9 + $0x760] sm:$0xff]
    %v1712 = vld [vmem:[#allocation9 + $0x768] sm:$0xff]
    %v1713 = vld [vmem:[#allocation9 + $0x770] sm:$0xff]
    %v1714 = vld [vmem:[#allocation9 + $0x778] sm:$0xff]
    %v1715 = vld [vmem:[#allocation9 + $0x780] sm:$0xff]
    %v1716 = vld [vmem:[#allocation9 + $0x788] sm:$0xff]
    %v1717 = vld [vmem:[#allocation9 + $0x790] sm:$0xff]
    %v1718 = vld [vmem:[#allocation9 + $0x798] sm:$0xff]
    %v1719 = vld [vmem:[#allocation9 + $0x7a0] sm:$0xff]
    %v1720 = vld [vmem:[#allocation9 + $0x7a8] sm:$0xff]
    %v1721 = vld [vmem:[#allocation9 + $0x7b0] sm:$0xff]
    %v1722 = vld [vmem:[#allocation9 + $0x7b8] sm:$0xff]
    %v1723 = vld [vmem:[#allocation9 + $0x7c0] sm:$0xff]
    %v1724 = vld [vmem:[#allocation9 + $0x7c8] sm:$0xff]
    %v1725 = vld [vmem:[#allocation9 + $0x7d0] sm:$0xff]
    %v1726 = vld [vmem:[#allocation9 + $0x7d8] sm:$0xff]
    %v1727 = vld [vmem:[#allocation9 + $0x7e0] sm:$0xff]
    %v1728 = vld [vmem:[#allocation9 + $0x7e8] sm:$0xff]
    %v1729 = vld [vmem:[#allocation9 + $0x7f0] sm:$0xff]
    %v1730 = vld [vmem:[#allocation9 + $0x7f8] sm:$0xff]
    %v1731 = vld [vmem:[#allocation9 + $0x800] sm:$0xff]
    %v1732 = vld [vmem:[#allocation9 + $0x808] sm:$0xff]
    %v1733 = vld [vmem:[#allocation9 + $0x810] sm:$0xff]
    %v1734 = vld [vmem:[#allocation9 + $0x818] sm:$0xff]
    %v1735 = vld [vmem:[#allocation9 + $0x820] sm:$0xff]
    %v1736 = vld [vmem:[#allocation9 + $0x828] sm:$0xff]
    %v1737 = vld [vmem:[#allocation9 + $0x830] sm:$0xff]
    %v1738 = vld [vmem:[#allocation9 + $0x838] sm:$0xff]
    %v1739 = vld [vmem:[#allocation9 + $0x840] sm:$0xff]
    %v1740 = vld [vmem:[#allocation9 + $0x848] sm:$0xff]
    %v1741 = vld [vmem:[#allocation9 + $0x850] sm:$0xff]
    %v1742 = vld [vmem:[#allocation9 + $0x858] sm:$0xff]
    %v1743 = vld [vmem:[#allocation9 + $0x860] sm:$0xff]
    %v1744 = vld [vmem:[#allocation9 + $0x868] sm:$0xff]
    %v1745 = vld [vmem:[#allocation9 + $0x870] sm:$0xff]
    %v1746 = vld [vmem:[#allocation9 + $0x878] sm:$0xff]
    %v1747 = vld [vmem:[#allocation9 + $0x880] sm:$0xff]
    %v1748 = vld [vmem:[#allocation9 + $0x888] sm:$0xff]
    %v1749 = vld [vmem:[#allocation9 + $0x890] sm:$0xff]
    %v1750 = vld [vmem:[#allocation9 + $0x898] sm:$0xff]
    %v1751 = vld [vmem:[#allocation9 + $0x8a0] sm:$0xff]
    %v1752 = vld [vmem:[#allocation9 + $0x8a8] sm:$0xff]
    %v1753 = vld [vmem:[#allocation9 + $0x8b0] sm:$0xff]
    %v1754 = vld [vmem:[#allocation9 + $0x8b8] sm:$0xff]
    %v1755 = vld [vmem:[#allocation9 + $0x8c0] sm:$0xff]
    %v1756 = vld [vmem:[#allocation9 + $0x8c8] sm:$0xff]
    %v1757 = vld [vmem:[#allocation9 + $0x8d0] sm:$0xff]
    %v1758 = vld [vmem:[#allocation9 + $0x8d8] sm:$0xff]
    %v1759 = vld [vmem:[#allocation9 + $0x8e0] sm:$0xff]
    %v1760 = vld [vmem:[#allocation9 + $0x8e8] sm:$0xff]
    %v1761 = vld [vmem:[#allocation9 + $0x8f0] sm:$0xff]
    %v1762 = vld [vmem:[#allocation9 + $0x8f8] sm:$0xff]
    %v1763 = vld [vmem:[#allocation9 + $0x900] sm:$0xff]
    %v1764 = vld [vmem:[#allocation9 + $0x908] sm:$0xff]
    %v1765 = vld [vmem:[#allocation9 + $0x910] sm:$0xff]
    %v1766 = vld [vmem:[#allocation9 + $0x918] sm:$0xff]
    %v1767 = vld [vmem:[#allocation9 + $0x920] sm:$0xff]
    %v1768 = vld [vmem:[#allocation9 + $0x928] sm:$0xff]
    %v1769 = vld [vmem:[#allocation9 + $0x930] sm:$0xff]
    %v1770 = vld [vmem:[#allocation9 + $0x938] sm:$0xff]
    %v1771 = vld [vmem:[#allocation9 + $0x940] sm:$0xff]
    %v1772 = vld [vmem:[#allocation9 + $0x948] sm:$0xff]
    %v1773 = vld [vmem:[#allocation9 + $0x950] sm:$0xff]
    %v1774 = vld [vmem:[#allocation9 + $0x958] sm:$0xff]
    %v1775 = vld [vmem:[#allocation9 + $0x960] sm:$0xff]
    %v1776 = vld [vmem:[#allocation9 + $0x968] sm:$0xff]
    %v1777 = vld [vmem:[#allocation9 + $0x970] sm:$0xff]
    %v1778 = vld [vmem:[#allocation9 + $0x978] sm:$0xff]
    %v1779 = vld [vmem:[#allocation9 + $0x980] sm:$0xff]
    %v1780 = vld [vmem:[#allocation9 + $0x988] sm:$0xff]
    %v1781 = vld [vmem:[#allocation9 + $0x990] sm:$0xff]
    %v1782 = vld [vmem:[#allocation9 + $0x998] sm:$0xff]
    %v1783 = vld [vmem:[#allocation9 + $0x9a0] sm:$0xff]
    %v1784 = vld [vmem:[#allocation9 + $0x9a8] sm:$0xff]
    %v1785 = vld [vmem:[#allocation9 + $0x9b0] sm:$0xff]
    %v1786 = vld [vmem:[#allocation9 + $0x9b8] sm:$0xff]
    %v1787 = vld [vmem:[#allocation9 + $0x9c0] sm:$0xff]
    %v1788 = vld [vmem:[#allocation9 + $0x9c8] sm:$0xff]
    %v1789 = vld [vmem:[#allocation9 + $0x9d0] sm:$0xff]
    %v1790 = vld [vmem:[#allocation9 + $0x9d8] sm:$0xff]
    %v1791 = vld [vmem:[#allocation9 + $0x9e0] sm:$0xff]
    %v1792 = vld [vmem:[#allocation9 + $0x9e8] sm:$0xff]
    %v1793 = vld [vmem:[#allocation9 + $0x9f0] sm:$0xff]
    %v1794 = vld [vmem:[#allocation9 + $0x9f8] sm:$0xff]
    %v1795 = vld [vmem:[#allocation9 + $0xa00] sm:$0xff]
    %v1796 = vld [vmem:[#allocation9 + $0xa08] sm:$0xff]
    %v1797 = vld [vmem:[#allocation9 + $0xa10] sm:$0xff]
    %v1798 = vld [vmem:[#allocation9 + $0xa18] sm:$0xff]
    %v1799 = vld [vmem:[#allocation9 + $0xa20] sm:$0xff]
    %v1800 = vld [vmem:[#allocation9 + $0xa28] sm:$0xff]
    %v1801 = vld [vmem:[#allocation9 + $0xa30] sm:$0xff]
    %v1802 = vld [vmem:[#allocation9 + $0xa38] sm:$0xff]
    %v1803 = vld [vmem:[#allocation9 + $0xa40] sm:$0xff]
    %v1804 = vld [vmem:[#allocation9 + $0xa48] sm:$0xff]
    %v1805 = vld [vmem:[#allocation9 + $0xa50] sm:$0xff]
    %v1806 = vld [vmem:[#allocation9 + $0xa58] sm:$0xff]
    %v1807 = vld [vmem:[#allocation9 + $0xa60] sm:$0xff]
    %v1808 = vld [vmem:[#allocation9 + $0xa68] sm:$0xff]
    %v1809 = vld [vmem:[#allocation9 + $0xa70] sm:$0xff]
    %v1810 = vld [vmem:[#allocation9 + $0xa78] sm:$0xff]
    %v1811 = vld [vmem:[#allocation9 + $0xa80] sm:$0xff]
    %v1812 = vld [vmem:[#allocation9 + $0xa88] sm:$0xff]
    %v1813 = vld [vmem:[#allocation9 + $0xa90] sm:$0xff]
    %v1814 = vld [vmem:[#allocation9 + $0xa98] sm:$0xff]
    %v1815 = vld [vmem:[#allocation9 + $0xaa0] sm:$0xff]
    %v1816 = vld [vmem:[#allocation9 + $0xaa8] sm:$0xff]
    %v1817 = vld [vmem:[#allocation9 + $0xab0] sm:$0xff]
    %v1818 = vld [vmem:[#allocation9 + $0xab8] sm:$0xff]
    %v1819 = vld [vmem:[#allocation9 + $0xac0] sm:$0xff]
    %v1820 = vld [vmem:[#allocation9 + $0xac8] sm:$0xff]
    %v1821 = vld [vmem:[#allocation9 + $0xad0] sm:$0xff]
    %v1822 = vld [vmem:[#allocation9 + $0xad8] sm:$0xff]
    %v1823 = vld [vmem:[#allocation9 + $0xae0] sm:$0xff]
    %v1824 = vld [vmem:[#allocation9 + $0xae8] sm:$0xff]
    %v1825 = vld [vmem:[#allocation9 + $0xaf0] sm:$0xff]
    %v1826 = vld [vmem:[#allocation9 + $0xaf8] sm:$0xff]
    %v1827 = vld [vmem:[#allocation9 + $0xb00] sm:$0xff]
    %v1828 = vld [vmem:[#allocation9 + $0xb08] sm:$0xff]
    %v1829 = vld [vmem:[#allocation9 + $0xb10] sm:$0xff]
    %v1830 = vld [vmem:[#allocation9 + $0xb18] sm:$0xff]
    %v1831 = vld [vmem:[#allocation9 + $0xb20] sm:$0xff]
    %v1832 = vld [vmem:[#allocation9 + $0xb28] sm:$0xff]
    %v1833 = vld [vmem:[#allocation9 + $0xb30] sm:$0xff]
    %v1834 = vld [vmem:[#allocation9 + $0xb38] sm:$0xff]
    %v1835 = vld [vmem:[#allocation9 + $0xb40] sm:$0xff]
    %v1836 = vld [vmem:[#allocation9 + $0xb48] sm:$0xff]
    %v1837 = vld [vmem:[#allocation9 + $0xb50] sm:$0xff]
    %v1838 = vld [vmem:[#allocation9 + $0xb58] sm:$0xff]
    %v1839 = vld [vmem:[#allocation9 + $0xb60] sm:$0xff]
    %v1840 = vld [vmem:[#allocation9 + $0xb68] sm:$0xff]
    %v1841 = vld [vmem:[#allocation9 + $0xb70] sm:$0xff]
    %v1842 = vld [vmem:[#allocation9 + $0xb78] sm:$0xff]
    %v1843 = vld [vmem:[#allocation9 + $0xb80] sm:$0xff]
    %v1844 = vld [vmem:[#allocation9 + $0xb88] sm:$0xff]
    %v1845 = vld [vmem:[#allocation9 + $0xb90] sm:$0xff]
    %v1846 = vld [vmem:[#allocation9 + $0xb98] sm:$0xff]
    %v1847 = vld [vmem:[#allocation9 + $0xba0] sm:$0xff]
    %v1848 = vld [vmem:[#allocation9 + $0xba8] sm:$0xff]
    %v1849 = vld [vmem:[#allocation9 + $0xbb0] sm:$0xff]
    %v1850 = vld [vmem:[#allocation9 + $0xbb8] sm:$0xff]
    %v1851 = vld [vmem:[#allocation9 + $0xbc0] sm:$0xff]
    %v1852 = vld [vmem:[#allocation9 + $0xbc8] sm:$0xff]
    %v1853 = vld [vmem:[#allocation9 + $0xbd0] sm:$0xff]
    %v1854 = vld [vmem:[#allocation9 + $0xbd8] sm:$0xff]
    %v1855 = vld [vmem:[#allocation9 + $0xbe0] sm:$0xff]
    %v1856 = vld [vmem:[#allocation9 + $0xbe8] sm:$0xff]
    %v1857 = vld [vmem:[#allocation9 + $0xbf0] sm:$0xff]
    %v1858 = vld [vmem:[#allocation9 + $0xbf8] sm:$0xff]
    %v1859 = vld [vmem:[#allocation9 + $0xc00] sm:$0xff]
    %v1860 = vld [vmem:[#allocation9 + $0xc08] sm:$0xff]
    %v1861 = vld [vmem:[#allocation9 + $0xc10] sm:$0xff]
    %v1862 = vld [vmem:[#allocation9 + $0xc18] sm:$0xff]
    %v1863 = vld [vmem:[#allocation9 + $0xc20] sm:$0xff]
    %v1864 = vld [vmem:[#allocation9 + $0xc28] sm:$0xff]
    %v1865 = vld [vmem:[#allocation9 + $0xc30] sm:$0xff]
    %v1866 = vld [vmem:[#allocation9 + $0xc38] sm:$0xff]
    %v1867 = vld [vmem:[#allocation9 + $0xc40] sm:$0xff]
    %v1868 = vld [vmem:[#allocation9 + $0xc48] sm:$0xff]
    %v1869 = vld [vmem:[#allocation9 + $0xc50] sm:$0xff]
    %v1870 = vld [vmem:[#allocation9 + $0xc58] sm:$0xff]
    %v1871 = vld [vmem:[#allocation9 + $0xc60] sm:$0xff]
    %v1872 = vld [vmem:[#allocation9 + $0xc68] sm:$0xff]
    %v1873 = vld [vmem:[#allocation9 + $0xc70] sm:$0xff]
    %v1874 = vld [vmem:[#allocation9 + $0xc78] sm:$0xff]
    %v1875 = vld [vmem:[#allocation9 + $0xc80] sm:$0xff]
    %v1876 = vld [vmem:[#allocation9 + $0xc88] sm:$0xff]
    %v1877 = vld [vmem:[#allocation9 + $0xc90] sm:$0xff]
    %v1878 = vld [vmem:[#allocation9 + $0xc98] sm:$0xff]
    %v1879 = vld [vmem:[#allocation9 + $0xca0] sm:$0xff]
    %v1880 = vld [vmem:[#allocation9 + $0xca8] sm:$0xff]
    %v1881 = vld [vmem:[#allocation9 + $0xcb0] sm:$0xff]
    %v1882 = vld [vmem:[#allocation9 + $0xcb8] sm:$0xff]
    %v1883 = vld [vmem:[#allocation9 + $0xcc0] sm:$0xff]
    %v1884 = vld [vmem:[#allocation9 + $0xcc8] sm:$0xff]
    %v1885 = vld [vmem:[#allocation9 + $0xcd0] sm:$0xff]
    %v1886 = vld [vmem:[#allocation9 + $0xcd8] sm:$0xff]
    %v1887 = vld [vmem:[#allocation9 + $0xce0] sm:$0xff]
    %v1888 = vld [vmem:[#allocation9 + $0xce8] sm:$0xff]
    %v1889 = vld [vmem:[#allocation9 + $0xcf0] sm:$0xff]
    %v1890 = vld [vmem:[#allocation9 + $0xcf8] sm:$0xff]
    %v1891 = vld [vmem:[#allocation9 + $0xd00] sm:$0xff]
    %v1892 = vld [vmem:[#allocation9 + $0xd08] sm:$0xff]
    %v1893 = vld [vmem:[#allocation9 + $0xd10] sm:$0xff]
    %v1894 = vld [vmem:[#allocation9 + $0xd18] sm:$0xff]
    %v1895 = vld [vmem:[#allocation9 + $0xd20] sm:$0xff]
    %v1896 = vld [vmem:[#allocation9 + $0xd28] sm:$0xff]
    %v1897 = vld [vmem:[#allocation9 + $0xd30] sm:$0xff]
    %v1898 = vld [vmem:[#allocation9 + $0xd38] sm:$0xff]
    %v1899 = vld [vmem:[#allocation9 + $0xd40] sm:$0xff]
    %v1900 = vld [vmem:[#allocation9 + $0xd48] sm:$0xff]
    %v1901 = vld [vmem:[#allocation9 + $0xd50] sm:$0xff]
    %v1902 = vld [vmem:[#allocation9 + $0xd58] sm:$0xff]
    %v1903 = vld [vmem:[#allocation9 + $0xd60] sm:$0xff]
    %v1904 = vld [vmem:[#allocation9 + $0xd68] sm:$0xff]
    %v1905 = vld [vmem:[#allocation9 + $0xd70] sm:$0xff]
    %v1906 = vld [vmem:[#allocation9 + $0xd78] sm:$0xff]
    %v1907 = vld [vmem:[#allocation9 + $0xd80] sm:$0xff]
    %v1908 = vld [vmem:[#allocation9 + $0xd88] sm:$0xff]
    %v1909 = vld [vmem:[#allocation9 + $0xd90] sm:$0xff]
    %v1910 = vld [vmem:[#allocation9 + $0xd98] sm:$0xff]
    %v1911 = vld [vmem:[#allocation9 + $0xda0] sm:$0xff]
    %v1912 = vld [vmem:[#allocation9 + $0xda8] sm:$0xff]
    %v1913 = vld [vmem:[#allocation9 + $0xdb0] sm:$0xff]
    %v1914 = vld [vmem:[#allocation9 + $0xdb8] sm:$0xff]
    %v1915 = vld [vmem:[#allocation9 + $0xdc0] sm:$0xff]
    %v1916 = vld [vmem:[#allocation9 + $0xdc8] sm:$0xff]
    %v1917 = vld [vmem:[#allocation9 + $0xdd0] sm:$0xff]
    %v1918 = vld [vmem:[#allocation9 + $0xdd8] sm:$0xff]
    %v1919 = vld [vmem:[#allocation9 + $0xde0] sm:$0xff]
    %v1920 = vld [vmem:[#allocation9 + $0xde8] sm:$0xff]
    %v1921 = vld [vmem:[#allocation9 + $0xdf0] sm:$0xff]
    %v1922 = vld [vmem:[#allocation9 + $0xdf8] sm:$0xff]
    %v1923 = vld [vmem:[#allocation9 + $0xe00] sm:$0xff]
    %v1924 = vld [vmem:[#allocation9 + $0xe08] sm:$0xff]
    %v1925 = vld [vmem:[#allocation9 + $0xe10] sm:$0xff]
    %v1926 = vld [vmem:[#allocation9 + $0xe18] sm:$0xff]
    %v1927 = vld [vmem:[#allocation9 + $0xe20] sm:$0xff]
    %v1928 = vld [vmem:[#allocation9 + $0xe28] sm:$0xff]
    %v1929 = vld [vmem:[#allocation9 + $0xe30] sm:$0xff]
    %v1930 = vld [vmem:[#allocation9 + $0xe38] sm:$0xff]
    %v1931 = vld [vmem:[#allocation9 + $0xe40] sm:$0xff]
    %v1932 = vld [vmem:[#allocation9 + $0xe48] sm:$0xff]
    %v1933 = vld [vmem:[#allocation9 + $0xe50] sm:$0xff]
    %v1934 = vld [vmem:[#allocation9 + $0xe58] sm:$0xff]
    %v1935 = vld [vmem:[#allocation9 + $0xe60] sm:$0xff]
    %v1936 = vld [vmem:[#allocation9 + $0xe68] sm:$0xff]
    %v1937 = vld [vmem:[#allocation9 + $0xe70] sm:$0xff]
    %v1938 = vld [vmem:[#allocation9 + $0xe78] sm:$0xff]
    %v1939 = vld [vmem:[#allocation9 + $0xe80] sm:$0xff]
    %v1940 = vld [vmem:[#allocation9 + $0xe88] sm:$0xff]
    %v1941 = vld [vmem:[#allocation9 + $0xe90] sm:$0xff]
    %v1942 = vld [vmem:[#allocation9 + $0xe98] sm:$0xff]
    %v1943 = vld [vmem:[#allocation9 + $0xea0] sm:$0xff]
    %v1944 = vld [vmem:[#allocation9 + $0xea8] sm:$0xff]
    %v1945 = vld [vmem:[#allocation9 + $0xeb0] sm:$0xff]
    %v1946 = vld [vmem:[#allocation9 + $0xeb8] sm:$0xff]
    %v1947 = vld [vmem:[#allocation9 + $0xec0] sm:$0xff]
    %v1948 = vld [vmem:[#allocation9 + $0xec8] sm:$0xff]
    %v1949 = vld [vmem:[#allocation9 + $0xed0] sm:$0xff]
    %v1950 = vld [vmem:[#allocation9 + $0xed8] sm:$0xff]
    %v1951 = vld [vmem:[#allocation9 + $0xee0] sm:$0xff]
    %v1952 = vld [vmem:[#allocation9 + $0xee8] sm:$0xff]
    %v1953 = vld [vmem:[#allocation9 + $0xef0] sm:$0xff]
    %v1954 = vld [vmem:[#allocation9 + $0xef8] sm:$0xff]
    %v1955 = vld [vmem:[#allocation9 + $0xf00] sm:$0xff]
    %v1956 = vld [vmem:[#allocation9 + $0xf08] sm:$0xff]
    %v1957 = vld [vmem:[#allocation9 + $0xf10] sm:$0xff]
    %v1958 = vld [vmem:[#allocation9 + $0xf18] sm:$0xff]
    %v1959 = vld [vmem:[#allocation9 + $0xf20] sm:$0xff]
    %v1960 = vld [vmem:[#allocation9 + $0xf28] sm:$0xff]
    %v1961 = vld [vmem:[#allocation9 + $0xf30] sm:$0xff]
    %v1962 = vld [vmem:[#allocation9 + $0xf38] sm:$0xff]
    %v1963 = vld [vmem:[#allocation9 + $0xf40] sm:$0xff]
    %v1964 = vld [vmem:[#allocation9 + $0xf48] sm:$0xff]
    %v1965 = vld [vmem:[#allocation9 + $0xf50] sm:$0xff]
    %v1966 = vld [vmem:[#allocation9 + $0xf58] sm:$0xff]
    %v1967 = vld [vmem:[#allocation9 + $0xf60] sm:$0xff]
    %v1968 = vld [vmem:[#allocation9 + $0xf68] sm:$0xff]
    %v1969 = vld [vmem:[#allocation9 + $0xf70] sm:$0xff]
    %v1970 = vld [vmem:[#allocation9 + $0xf78] sm:$0xff]
    %v1971 = vld [vmem:[#allocation9 + $0xf80] sm:$0xff]
    %v1972 = vld [vmem:[#allocation9 + $0xf88] sm:$0xff]
    %v1973 = vld [vmem:[#allocation9 + $0xf90] sm:$0xff]
    %v1974 = vld [vmem:[#allocation9 + $0xf98] sm:$0xff]
    %v1975 = vld [vmem:[#allocation9 + $0xfa0] sm:$0xff]
    %v1976 = vld [vmem:[#allocation9 + $0xfa8] sm:$0xff]
    %v1977 = vld [vmem:[#allocation9 + $0xfb0] sm:$0xff]
    %v1978 = vld [vmem:[#allocation9 + $0xfb8] sm:$0xff]
    %v1979 = vld [vmem:[#allocation9 + $0xfc0] sm:$0xff]
    %v1980 = vld [vmem:[#allocation9 + $0xfc8] sm:$0xff]
    %v1981 = vld [vmem:[#allocation9 + $0xfd0] sm:$0xff]
    %v1982 = vld [vmem:[#allocation9 + $0xfd8] sm:$0xff]
    %v1983 = vld [vmem:[#allocation9 + $0xfe0] sm:$0xff]
    %v1984 = vld [vmem:[#allocation9 + $0xfe8] sm:$0xff]
    %v1985 = vld [vmem:[#allocation9 + $0xff0] sm:$0xff]
    %v1986 = vld [vmem:[#allocation9 + $0xff8] sm:$0xff]
    %v1987 = vld [vmem:[#allocation10] sm:$0x3]
    %v1989 = vlaneseq
    %v1990 = vshrl.u32 %v1989, 7
    %v1991 = vsub.s32 0, %v1990
    %v1992 = vrot.slane %v1987, %v1991
    %v1993 = vlaneseq
    %v1994 = vshrl.u32 %v1993, 7
    %v1995 = vsub.s32 1, %v1994
    %v1996 = vrot.slane %v1987, %v1995
    %v2511 = vunpack.c.l.b16 %v1475
    %v2512 = vunpack.c.h.b16 %v1475
    %v2513 = vunpack.c.l.b16 %v1476
    %v2514 = vunpack.c.h.b16 %v1476
    %v2515 = vunpack.c.l.b16 %v1477
    %v2516 = vunpack.c.h.b16 %v1477
    %v2517 = vunpack.c.l.b16 %v1478
    %v2518 = vunpack.c.h.b16 %v1478
    %v2519 = vunpack.c.l.b16 %v1479
    %v2520 = vunpack.c.h.b16 %v1479
    %v2521 = vunpack.c.l.b16 %v1480
    %v2522 = vunpack.c.h.b16 %v1480
    %v2523 = vunpack.c.l.b16 %v1481
    %v2524 = vunpack.c.h.b16 %v1481
    %v2525 = vunpack.c.l.b16 %v1482
    %v2526 = vunpack.c.h.b16 %v1482
    %v2527 = vunpack.c.l.b16 %v1483
    %v2528 = vunpack.c.h.b16 %v1483
    %v2529 = vunpack.c.l.b16 %v1484
    %v2530 = vunpack.c.h.b16 %v1484
    %v2531 = vunpack.c.l.b16 %v1485
    %v2532 = vunpack.c.h.b16 %v1485
    %v2533 = vunpack.c.l.b16 %v1486
    %v2534 = vunpack.c.h.b16 %v1486
    %v2535 = vunpack.c.l.b16 %v1487
    %v2536 = vunpack.c.h.b16 %v1487
    %v2537 = vunpack.c.l.b16 %v1488
    %v2538 = vunpack.c.h.b16 %v1488
    %v2539 = vunpack.c.l.b16 %v1489
    %v2540 = vunpack.c.h.b16 %v1489
    %v2541 = vunpack.c.l.b16 %v1490
    %v2542 = vunpack.c.h.b16 %v1490
    %v2543 = vunpack.c.l.b16 %v1491
    %v2544 = vunpack.c.h.b16 %v1491
    %v2545 = vunpack.c.l.b16 %v1492
    %v2546 = vunpack.c.h.b16 %v1492
    %v2547 = vunpack.c.l.b16 %v1493
    %v2548 = vunpack.c.h.b16 %v1493
    %v2549 = vunpack.c.l.b16 %v1494
    %v2550 = vunpack.c.h.b16 %v1494
    %v2551 = vunpack.c.l.b16 %v1495
    %v2552 = vunpack.c.h.b16 %v1495
    %v2553 = vunpack.c.l.b16 %v1496
    %v2554 = vunpack.c.h.b16 %v1496
    %v2555 = vunpack.c.l.b16 %v1497
    %v2556 = vunpack.c.h.b16 %v1497
    %v2557 = vunpack.c.l.b16 %v1498
    %v2558 = vunpack.c.h.b16 %v1498
    %v2559 = vunpack.c.l.b16 %v1499
    %v2560 = vunpack.c.h.b16 %v1499
    %v2561 = vunpack.c.l.b16 %v1500
    %v2562 = vunpack.c.h.b16 %v1500
    %v2563 = vunpack.c.l.b16 %v1501
    %v2564 = vunpack.c.h.b16 %v1501
    %v2565 = vunpack.c.l.b16 %v1502
    %v2566 = vunpack.c.h.b16 %v1502
    %v2567 = vunpack.c.l.b16 %v1503
    %v2568 = vunpack.c.h.b16 %v1503
    %v2569 = vunpack.c.l.b16 %v1504
    %v2570 = vunpack.c.h.b16 %v1504
    %v2571 = vunpack.c.l.b16 %v1505
    %v2572 = vunpack.c.h.b16 %v1505
    %v2573 = vunpack.c.l.b16 %v1506
    %v2574 = vunpack.c.h.b16 %v1506
    %v2575 = vunpack.c.l.b16 %v1507
    %v2576 = vunpack.c.h.b16 %v1507
    %v2577 = vunpack.c.l.b16 %v1508
    %v2578 = vunpack.c.h.b16 %v1508
    %v2579 = vunpack.c.l.b16 %v1509
    %v2580 = vunpack.c.h.b16 %v1509
    %v2581 = vunpack.c.l.b16 %v1510
    %v2582 = vunpack.c.h.b16 %v1510
    %v2583 = vunpack.c.l.b16 %v1511
    %v2584 = vunpack.c.h.b16 %v1511
    %v2585 = vunpack.c.l.b16 %v1512
    %v2586 = vunpack.c.h.b16 %v1512
    %v2587 = vunpack.c.l.b16 %v1513
    %v2588 = vunpack.c.h.b16 %v1513
    %v2589 = vunpack.c.l.b16 %v1514
    %v2590 = vunpack.c.h.b16 %v1514
    %v2591 = vunpack.c.l.b16 %v1515
    %v2592 = vunpack.c.h.b16 %v1515
    %v2593 = vunpack.c.l.b16 %v1516
    %v2594 = vunpack.c.h.b16 %v1516
    %v2595 = vunpack.c.l.b16 %v1517
    %v2596 = vunpack.c.h.b16 %v1517
    %v2597 = vunpack.c.l.b16 %v1518
    %v2598 = vunpack.c.h.b16 %v1518
    %v2599 = vunpack.c.l.b16 %v1519
    %v2600 = vunpack.c.h.b16 %v1519
    %v2601 = vunpack.c.l.b16 %v1520
    %v2602 = vunpack.c.h.b16 %v1520
    %v2603 = vunpack.c.l.b16 %v1521
    %v2604 = vunpack.c.h.b16 %v1521
    %v2605 = vunpack.c.l.b16 %v1522
    %v2606 = vunpack.c.h.b16 %v1522
    %v2607 = vunpack.c.l.b16 %v1523
    %v2608 = vunpack.c.h.b16 %v1523
    %v2609 = vunpack.c.l.b16 %v1524
    %v2610 = vunpack.c.h.b16 %v1524
    %v2611 = vunpack.c.l.b16 %v1525
    %v2612 = vunpack.c.h.b16 %v1525
    %v2613 = vunpack.c.l.b16 %v1526
    %v2614 = vunpack.c.h.b16 %v1526
    %v2615 = vunpack.c.l.b16 %v1527
    %v2616 = vunpack.c.h.b16 %v1527
    %v2617 = vunpack.c.l.b16 %v1528
    %v2618 = vunpack.c.h.b16 %v1528
    %v2619 = vunpack.c.l.b16 %v1529
    %v2620 = vunpack.c.h.b16 %v1529
    %v2621 = vunpack.c.l.b16 %v1530
    %v2622 = vunpack.c.h.b16 %v1530
    %v2623 = vunpack.c.l.b16 %v1531
    %v2624 = vunpack.c.h.b16 %v1531
    %v2625 = vunpack.c.l.b16 %v1532
    %v2626 = vunpack.c.h.b16 %v1532
    %v2627 = vunpack.c.l.b16 %v1533
    %v2628 = vunpack.c.h.b16 %v1533
    %v2629 = vunpack.c.l.b16 %v1534
    %v2630 = vunpack.c.h.b16 %v1534
    %v2631 = vunpack.c.l.b16 %v1535
    %v2632 = vunpack.c.h.b16 %v1535
    %v2633 = vunpack.c.l.b16 %v1536
    %v2634 = vunpack.c.h.b16 %v1536
    %v2635 = vunpack.c.l.b16 %v1537
    %v2636 = vunpack.c.h.b16 %v1537
    %v2637 = vunpack.c.l.b16 %v1538
    %v2638 = vunpack.c.h.b16 %v1538
    %v2639 = vunpack.c.l.b16 %v1539
    %v2640 = vunpack.c.h.b16 %v1539
    %v2641 = vunpack.c.l.b16 %v1540
    %v2642 = vunpack.c.h.b16 %v1540
    %v2643 = vunpack.c.l.b16 %v1541
    %v2644 = vunpack.c.h.b16 %v1541
    %v2645 = vunpack.c.l.b16 %v1542
    %v2646 = vunpack.c.h.b16 %v1542
    %v2647 = vunpack.c.l.b16 %v1543
    %v2648 = vunpack.c.h.b16 %v1543
    %v2649 = vunpack.c.l.b16 %v1544
    %v2650 = vunpack.c.h.b16 %v1544
    %v2651 = vunpack.c.l.b16 %v1545
    %v2652 = vunpack.c.h.b16 %v1545
    %v2653 = vunpack.c.l.b16 %v1546
    %v2654 = vunpack.c.h.b16 %v1546
    %v2655 = vunpack.c.l.b16 %v1547
    %v2656 = vunpack.c.h.b16 %v1547
    %v2657 = vunpack.c.l.b16 %v1548
    %v2658 = vunpack.c.h.b16 %v1548
    %v2659 = vunpack.c.l.b16 %v1549
    %v2660 = vunpack.c.h.b16 %v1549
    %v2661 = vunpack.c.l.b16 %v1550
    %v2662 = vunpack.c.h.b16 %v1550
    %v2663 = vunpack.c.l.b16 %v1551
    %v2664 = vunpack.c.h.b16 %v1551
    %v2665 = vunpack.c.l.b16 %v1552
    %v2666 = vunpack.c.h.b16 %v1552
    %v2667 = vunpack.c.l.b16 %v1553
    %v2668 = vunpack.c.h.b16 %v1553
    %v2669 = vunpack.c.l.b16 %v1554
    %v2670 = vunpack.c.h.b16 %v1554
    %v2671 = vunpack.c.l.b16 %v1555
    %v2672 = vunpack.c.h.b16 %v1555
    %v2673 = vunpack.c.l.b16 %v1556
    %v2674 = vunpack.c.h.b16 %v1556
    %v2675 = vunpack.c.l.b16 %v1557
    %v2676 = vunpack.c.h.b16 %v1557
    %v2677 = vunpack.c.l.b16 %v1558
    %v2678 = vunpack.c.h.b16 %v1558
    %v2679 = vunpack.c.l.b16 %v1559
    %v2680 = vunpack.c.h.b16 %v1559
    %v2681 = vunpack.c.l.b16 %v1560
    %v2682 = vunpack.c.h.b16 %v1560
    %v2683 = vunpack.c.l.b16 %v1561
    %v2684 = vunpack.c.h.b16 %v1561
    %v2685 = vunpack.c.l.b16 %v1562
    %v2686 = vunpack.c.h.b16 %v1562
    %v2687 = vunpack.c.l.b16 %v1563
    %v2688 = vunpack.c.h.b16 %v1563
    %v2689 = vunpack.c.l.b16 %v1564
    %v2690 = vunpack.c.h.b16 %v1564
    %v2691 = vunpack.c.l.b16 %v1565
    %v2692 = vunpack.c.h.b16 %v1565
    %v2693 = vunpack.c.l.b16 %v1566
    %v2694 = vunpack.c.h.b16 %v1566
    %v2695 = vunpack.c.l.b16 %v1567
    %v2696 = vunpack.c.h.b16 %v1567
    %v2697 = vunpack.c.l.b16 %v1568
    %v2698 = vunpack.c.h.b16 %v1568
    %v2699 = vunpack.c.l.b16 %v1569
    %v2700 = vunpack.c.h.b16 %v1569
    %v2701 = vunpack.c.l.b16 %v1570
    %v2702 = vunpack.c.h.b16 %v1570
    %v2703 = vunpack.c.l.b16 %v1571
    %v2704 = vunpack.c.h.b16 %v1571
    %v2705 = vunpack.c.l.b16 %v1572
    %v2706 = vunpack.c.h.b16 %v1572
    %v2707 = vunpack.c.l.b16 %v1573
    %v2708 = vunpack.c.h.b16 %v1573
    %v2709 = vunpack.c.l.b16 %v1574
    %v2710 = vunpack.c.h.b16 %v1574
    %v2711 = vunpack.c.l.b16 %v1575
    %v2712 = vunpack.c.h.b16 %v1575
    %v2713 = vunpack.c.l.b16 %v1576
    %v2714 = vunpack.c.h.b16 %v1576
    %v2715 = vunpack.c.l.b16 %v1577
    %v2716 = vunpack.c.h.b16 %v1577
    %v2717 = vunpack.c.l.b16 %v1578
    %v2718 = vunpack.c.h.b16 %v1578
    %v2719 = vunpack.c.l.b16 %v1579
    %v2720 = vunpack.c.h.b16 %v1579
    %v2721 = vunpack.c.l.b16 %v1580
    %v2722 = vunpack.c.h.b16 %v1580
    %v2723 = vunpack.c.l.b16 %v1581
    %v2724 = vunpack.c.h.b16 %v1581
    %v2725 = vunpack.c.l.b16 %v1582
    %v2726 = vunpack.c.h.b16 %v1582
    %v2727 = vunpack.c.l.b16 %v1583
    %v2728 = vunpack.c.h.b16 %v1583
    %v2729 = vunpack.c.l.b16 %v1584
    %v2730 = vunpack.c.h.b16 %v1584
    %v2731 = vunpack.c.l.b16 %v1585
    %v2732 = vunpack.c.h.b16 %v1585
    %v2733 = vunpack.c.l.b16 %v1586
    %v2734 = vunpack.c.h.b16 %v1586
    %v2735 = vunpack.c.l.b16 %v1587
    %v2736 = vunpack.c.h.b16 %v1587
    %v2737 = vunpack.c.l.b16 %v1588
    %v2738 = vunpack.c.h.b16 %v1588
    %v2739 = vunpack.c.l.b16 %v1589
    %v2740 = vunpack.c.h.b16 %v1589
    %v2741 = vunpack.c.l.b16 %v1590
    %v2742 = vunpack.c.h.b16 %v1590
    %v2743 = vunpack.c.l.b16 %v1591
    %v2744 = vunpack.c.h.b16 %v1591
    %v2745 = vunpack.c.l.b16 %v1592
    %v2746 = vunpack.c.h.b16 %v1592
    %v2747 = vunpack.c.l.b16 %v1593
    %v2748 = vunpack.c.h.b16 %v1593
    %v2749 = vunpack.c.l.b16 %v1594
    %v2750 = vunpack.c.h.b16 %v1594
    %v2751 = vunpack.c.l.b16 %v1595
    %v2752 = vunpack.c.h.b16 %v1595
    %v2753 = vunpack.c.l.b16 %v1596
    %v2754 = vunpack.c.h.b16 %v1596
    %v2755 = vunpack.c.l.b16 %v1597
    %v2756 = vunpack.c.h.b16 %v1597
    %v2757 = vunpack.c.l.b16 %v1598
    %v2758 = vunpack.c.h.b16 %v1598
    %v2759 = vunpack.c.l.b16 %v1599
    %v2760 = vunpack.c.h.b16 %v1599
    %v2761 = vunpack.c.l.b16 %v1600
    %v2762 = vunpack.c.h.b16 %v1600
    %v2763 = vunpack.c.l.b16 %v1601
    %v2764 = vunpack.c.h.b16 %v1601
    %v2765 = vunpack.c.l.b16 %v1602
    %v2766 = vunpack.c.h.b16 %v1602
    %v2767 = vunpack.c.l.b16 %v1603
    %v2768 = vunpack.c.h.b16 %v1603
    %v2769 = vunpack.c.l.b16 %v1604
    %v2770 = vunpack.c.h.b16 %v1604
    %v2771 = vunpack.c.l.b16 %v1605
    %v2772 = vunpack.c.h.b16 %v1605
    %v2773 = vunpack.c.l.b16 %v1606
    %v2774 = vunpack.c.h.b16 %v1606
    %v2775 = vunpack.c.l.b16 %v1607
    %v2776 = vunpack.c.h.b16 %v1607
    %v2777 = vunpack.c.l.b16 %v1608
    %v2778 = vunpack.c.h.b16 %v1608
    %v2779 = vunpack.c.l.b16 %v1609
    %v2780 = vunpack.c.h.b16 %v1609
    %v2781 = vunpack.c.l.b16 %v1610
    %v2782 = vunpack.c.h.b16 %v1610
    %v2783 = vunpack.c.l.b16 %v1611
    %v2784 = vunpack.c.h.b16 %v1611
    %v2785 = vunpack.c.l.b16 %v1612
    %v2786 = vunpack.c.h.b16 %v1612
    %v2787 = vunpack.c.l.b16 %v1613
    %v2788 = vunpack.c.h.b16 %v1613
    %v2789 = vunpack.c.l.b16 %v1614
    %v2790 = vunpack.c.h.b16 %v1614
    %v2791 = vunpack.c.l.b16 %v1615
    %v2792 = vunpack.c.h.b16 %v1615
    %v2793 = vunpack.c.l.b16 %v1616
    %v2794 = vunpack.c.h.b16 %v1616
    %v2795 = vunpack.c.l.b16 %v1617
    %v2796 = vunpack.c.h.b16 %v1617
    %v2797 = vunpack.c.l.b16 %v1618
    %v2798 = vunpack.c.h.b16 %v1618
    %v2799 = vunpack.c.l.b16 %v1619
    %v2800 = vunpack.c.h.b16 %v1619
    %v2801 = vunpack.c.l.b16 %v1620
    %v2802 = vunpack.c.h.b16 %v1620
    %v2803 = vunpack.c.l.b16 %v1621
    %v2804 = vunpack.c.h.b16 %v1621
    %v2805 = vunpack.c.l.b16 %v1622
    %v2806 = vunpack.c.h.b16 %v1622
    %v2807 = vunpack.c.l.b16 %v1623
    %v2808 = vunpack.c.h.b16 %v1623
    %v2809 = vunpack.c.l.b16 %v1624
    %v2810 = vunpack.c.h.b16 %v1624
    %v2811 = vunpack.c.l.b16 %v1625
    %v2812 = vunpack.c.h.b16 %v1625
    %v2813 = vunpack.c.l.b16 %v1626
    %v2814 = vunpack.c.h.b16 %v1626
    %v2815 = vunpack.c.l.b16 %v1627
    %v2816 = vunpack.c.h.b16 %v1627
    %v2817 = vunpack.c.l.b16 %v1628
    %v2818 = vunpack.c.h.b16 %v1628
    %v2819 = vunpack.c.l.b16 %v1629
    %v2820 = vunpack.c.h.b16 %v1629
    %v2821 = vunpack.c.l.b16 %v1630
    %v2822 = vunpack.c.h.b16 %v1630
    %v2823 = vunpack.c.l.b16 %v1631
    %v2824 = vunpack.c.h.b16 %v1631
    %v2825 = vunpack.c.l.b16 %v1632
    %v2826 = vunpack.c.h.b16 %v1632
    %v2827 = vunpack.c.l.b16 %v1633
    %v2828 = vunpack.c.h.b16 %v1633
    %v2829 = vunpack.c.l.b16 %v1634
    %v2830 = vunpack.c.h.b16 %v1634
    %v2831 = vunpack.c.l.b16 %v1635
    %v2832 = vunpack.c.h.b16 %v1635
    %v2833 = vunpack.c.l.b16 %v1636
    %v2834 = vunpack.c.h.b16 %v1636
    %v2835 = vunpack.c.l.b16 %v1637
    %v2836 = vunpack.c.h.b16 %v1637
    %v2837 = vunpack.c.l.b16 %v1638
    %v2838 = vunpack.c.h.b16 %v1638
    %v2839 = vunpack.c.l.b16 %v1639
    %v2840 = vunpack.c.h.b16 %v1639
    %v2841 = vunpack.c.l.b16 %v1640
    %v2842 = vunpack.c.h.b16 %v1640
    %v2843 = vunpack.c.l.b16 %v1641
    %v2844 = vunpack.c.h.b16 %v1641
    %v2845 = vunpack.c.l.b16 %v1642
    %v2846 = vunpack.c.h.b16 %v1642
    %v2847 = vunpack.c.l.b16 %v1643
    %v2848 = vunpack.c.h.b16 %v1643
    %v2849 = vunpack.c.l.b16 %v1644
    %v2850 = vunpack.c.h.b16 %v1644
    %v2851 = vunpack.c.l.b16 %v1645
    %v2852 = vunpack.c.h.b16 %v1645
    %v2853 = vunpack.c.l.b16 %v1646
    %v2854 = vunpack.c.h.b16 %v1646
    %v2855 = vunpack.c.l.b16 %v1647
    %v2856 = vunpack.c.h.b16 %v1647
    %v2857 = vunpack.c.l.b16 %v1648
    %v2858 = vunpack.c.h.b16 %v1648
    %v2859 = vunpack.c.l.b16 %v1649
    %v2860 = vunpack.c.h.b16 %v1649
    %v2861 = vunpack.c.l.b16 %v1650
    %v2862 = vunpack.c.h.b16 %v1650
    %v2863 = vunpack.c.l.b16 %v1651
    %v2864 = vunpack.c.h.b16 %v1651
    %v2865 = vunpack.c.l.b16 %v1652
    %v2866 = vunpack.c.h.b16 %v1652
    %v2867 = vunpack.c.l.b16 %v1653
    %v2868 = vunpack.c.h.b16 %v1653
    %v2869 = vunpack.c.l.b16 %v1654
    %v2870 = vunpack.c.h.b16 %v1654
    %v2871 = vunpack.c.l.b16 %v1655
    %v2872 = vunpack.c.h.b16 %v1655
    %v2873 = vunpack.c.l.b16 %v1656
    %v2874 = vunpack.c.h.b16 %v1656
    %v2875 = vunpack.c.l.b16 %v1657
    %v2876 = vunpack.c.h.b16 %v1657
    %v2877 = vunpack.c.l.b16 %v1658
    %v2878 = vunpack.c.h.b16 %v1658
    %v2879 = vunpack.c.l.b16 %v1659
    %v2880 = vunpack.c.h.b16 %v1659
    %v2881 = vunpack.c.l.b16 %v1660
    %v2882 = vunpack.c.h.b16 %v1660
    %v2883 = vunpack.c.l.b16 %v1661
    %v2884 = vunpack.c.h.b16 %v1661
    %v2885 = vunpack.c.l.b16 %v1662
    %v2886 = vunpack.c.h.b16 %v1662
    %v2887 = vunpack.c.l.b16 %v1663
    %v2888 = vunpack.c.h.b16 %v1663
    %v2889 = vunpack.c.l.b16 %v1664
    %v2890 = vunpack.c.h.b16 %v1664
    %v2891 = vunpack.c.l.b16 %v1665
    %v2892 = vunpack.c.h.b16 %v1665
    %v2893 = vunpack.c.l.b16 %v1666
    %v2894 = vunpack.c.h.b16 %v1666
    %v2895 = vunpack.c.l.b16 %v1667
    %v2896 = vunpack.c.h.b16 %v1667
    %v2897 = vunpack.c.l.b16 %v1668
    %v2898 = vunpack.c.h.b16 %v1668
    %v2899 = vunpack.c.l.b16 %v1669
    %v2900 = vunpack.c.h.b16 %v1669
    %v2901 = vunpack.c.l.b16 %v1670
    %v2902 = vunpack.c.h.b16 %v1670
    %v2903 = vunpack.c.l.b16 %v1671
    %v2904 = vunpack.c.h.b16 %v1671
    %v2905 = vunpack.c.l.b16 %v1672
    %v2906 = vunpack.c.h.b16 %v1672
    %v2907 = vunpack.c.l.b16 %v1673
    %v2908 = vunpack.c.h.b16 %v1673
    %v2909 = vunpack.c.l.b16 %v1674
    %v2910 = vunpack.c.h.b16 %v1674
    %v2911 = vunpack.c.l.b16 %v1675
    %v2912 = vunpack.c.h.b16 %v1675
    %v2913 = vunpack.c.l.b16 %v1676
    %v2914 = vunpack.c.h.b16 %v1676
    %v2915 = vunpack.c.l.b16 %v1677
    %v2916 = vunpack.c.h.b16 %v1677
    %v2917 = vunpack.c.l.b16 %v1678
    %v2918 = vunpack.c.h.b16 %v1678
    %v2919 = vunpack.c.l.b16 %v1679
    %v2920 = vunpack.c.h.b16 %v1679
    %v2921 = vunpack.c.l.b16 %v1680
    %v2922 = vunpack.c.h.b16 %v1680
    %v2923 = vunpack.c.l.b16 %v1681
    %v2924 = vunpack.c.h.b16 %v1681
    %v2925 = vunpack.c.l.b16 %v1682
    %v2926 = vunpack.c.h.b16 %v1682
    %v2927 = vunpack.c.l.b16 %v1683
    %v2928 = vunpack.c.h.b16 %v1683
    %v2929 = vunpack.c.l.b16 %v1684
    %v2930 = vunpack.c.h.b16 %v1684
    %v2931 = vunpack.c.l.b16 %v1685
    %v2932 = vunpack.c.h.b16 %v1685
    %v2933 = vunpack.c.l.b16 %v1686
    %v2934 = vunpack.c.h.b16 %v1686
    %v2935 = vunpack.c.l.b16 %v1687
    %v2936 = vunpack.c.h.b16 %v1687
    %v2937 = vunpack.c.l.b16 %v1688
    %v2938 = vunpack.c.h.b16 %v1688
    %v2939 = vunpack.c.l.b16 %v1689
    %v2940 = vunpack.c.h.b16 %v1689
    %v2941 = vunpack.c.l.b16 %v1690
    %v2942 = vunpack.c.h.b16 %v1690
    %v2943 = vunpack.c.l.b16 %v1691
    %v2944 = vunpack.c.h.b16 %v1691
    %v2945 = vunpack.c.l.b16 %v1692
    %v2946 = vunpack.c.h.b16 %v1692
    %v2947 = vunpack.c.l.b16 %v1693
    %v2948 = vunpack.c.h.b16 %v1693
    %v2949 = vunpack.c.l.b16 %v1694
    %v2950 = vunpack.c.h.b16 %v1694
    %v2951 = vunpack.c.l.b16 %v1695
    %v2952 = vunpack.c.h.b16 %v1695
    %v2953 = vunpack.c.l.b16 %v1696
    %v2954 = vunpack.c.h.b16 %v1696
    %v2955 = vunpack.c.l.b16 %v1697
    %v2956 = vunpack.c.h.b16 %v1697
    %v2957 = vunpack.c.l.b16 %v1698
    %v2958 = vunpack.c.h.b16 %v1698
    %v2959 = vunpack.c.l.b16 %v1699
    %v2960 = vunpack.c.h.b16 %v1699
    %v2961 = vunpack.c.l.b16 %v1700
    %v2962 = vunpack.c.h.b16 %v1700
    %v2963 = vunpack.c.l.b16 %v1701
    %v2964 = vunpack.c.h.b16 %v1701
    %v2965 = vunpack.c.l.b16 %v1702
    %v2966 = vunpack.c.h.b16 %v1702
    %v2967 = vunpack.c.l.b16 %v1703
    %v2968 = vunpack.c.h.b16 %v1703
    %v2969 = vunpack.c.l.b16 %v1704
    %v2970 = vunpack.c.h.b16 %v1704
    %v2971 = vunpack.c.l.b16 %v1705
    %v2972 = vunpack.c.h.b16 %v1705
    %v2973 = vunpack.c.l.b16 %v1706
    %v2974 = vunpack.c.h.b16 %v1706
    %v2975 = vunpack.c.l.b16 %v1707
    %v2976 = vunpack.c.h.b16 %v1707
    %v2977 = vunpack.c.l.b16 %v1708
    %v2978 = vunpack.c.h.b16 %v1708
    %v2979 = vunpack.c.l.b16 %v1709
    %v2980 = vunpack.c.h.b16 %v1709
    %v2981 = vunpack.c.l.b16 %v1710
    %v2982 = vunpack.c.h.b16 %v1710
    %v2983 = vunpack.c.l.b16 %v1711
    %v2984 = vunpack.c.h.b16 %v1711
    %v2985 = vunpack.c.l.b16 %v1712
    %v2986 = vunpack.c.h.b16 %v1712
    %v2987 = vunpack.c.l.b16 %v1713
    %v2988 = vunpack.c.h.b16 %v1713
    %v2989 = vunpack.c.l.b16 %v1714
    %v2990 = vunpack.c.h.b16 %v1714
    %v2991 = vunpack.c.l.b16 %v1715
    %v2992 = vunpack.c.h.b16 %v1715
    %v2993 = vunpack.c.l.b16 %v1716
    %v2994 = vunpack.c.h.b16 %v1716
    %v2995 = vunpack.c.l.b16 %v1717
    %v2996 = vunpack.c.h.b16 %v1717
    %v2997 = vunpack.c.l.b16 %v1718
    %v2998 = vunpack.c.h.b16 %v1718
    %v2999 = vunpack.c.l.b16 %v1719
    %v3000 = vunpack.c.h.b16 %v1719
    %v3001 = vunpack.c.l.b16 %v1720
    %v3002 = vunpack.c.h.b16 %v1720
    %v3003 = vunpack.c.l.b16 %v1721
    %v3004 = vunpack.c.h.b16 %v1721
    %v3005 = vunpack.c.l.b16 %v1722
    %v3006 = vunpack.c.h.b16 %v1722
    %v3007 = vunpack.c.l.b16 %v1723
    %v3008 = vunpack.c.h.b16 %v1723
    %v3009 = vunpack.c.l.b16 %v1724
    %v3010 = vunpack.c.h.b16 %v1724
    %v3011 = vunpack.c.l.b16 %v1725
    %v3012 = vunpack.c.h.b16 %v1725
    %v3013 = vunpack.c.l.b16 %v1726
    %v3014 = vunpack.c.h.b16 %v1726
    %v3015 = vunpack.c.l.b16 %v1727
    %v3016 = vunpack.c.h.b16 %v1727
    %v3017 = vunpack.c.l.b16 %v1728
    %v3018 = vunpack.c.h.b16 %v1728
    %v3019 = vunpack.c.l.b16 %v1729
    %v3020 = vunpack.c.h.b16 %v1729
    %v3021 = vunpack.c.l.b16 %v1730
    %v3022 = vunpack.c.h.b16 %v1730
    %v3023 = vunpack.c.l.b16 %v1731
    %v3024 = vunpack.c.h.b16 %v1731
    %v3025 = vunpack.c.l.b16 %v1732
    %v3026 = vunpack.c.h.b16 %v1732
    %v3027 = vunpack.c.l.b16 %v1733
    %v3028 = vunpack.c.h.b16 %v1733
    %v3029 = vunpack.c.l.b16 %v1734
    %v3030 = vunpack.c.h.b16 %v1734
    %v3031 = vunpack.c.l.b16 %v1735
    %v3032 = vunpack.c.h.b16 %v1735
    %v3033 = vunpack.c.l.b16 %v1736
    %v3034 = vunpack.c.h.b16 %v1736
    %v3035 = vunpack.c.l.b16 %v1737
    %v3036 = vunpack.c.h.b16 %v1737
    %v3037 = vunpack.c.l.b16 %v1738
    %v3038 = vunpack.c.h.b16 %v1738
    %v3039 = vunpack.c.l.b16 %v1739
    %v3040 = vunpack.c.h.b16 %v1739
    %v3041 = vunpack.c.l.b16 %v1740
    %v3042 = vunpack.c.h.b16 %v1740
    %v3043 = vunpack.c.l.b16 %v1741
    %v3044 = vunpack.c.h.b16 %v1741
    %v3045 = vunpack.c.l.b16 %v1742
    %v3046 = vunpack.c.h.b16 %v1742
    %v3047 = vunpack.c.l.b16 %v1743
    %v3048 = vunpack.c.h.b16 %v1743
    %v3049 = vunpack.c.l.b16 %v1744
    %v3050 = vunpack.c.h.b16 %v1744
    %v3051 = vunpack.c.l.b16 %v1745
    %v3052 = vunpack.c.h.b16 %v1745
    %v3053 = vunpack.c.l.b16 %v1746
    %v3054 = vunpack.c.h.b16 %v1746
    %v3055 = vunpack.c.l.b16 %v1747
    %v3056 = vunpack.c.h.b16 %v1747
    %v3057 = vunpack.c.l.b16 %v1748
    %v3058 = vunpack.c.h.b16 %v1748
    %v3059 = vunpack.c.l.b16 %v1749
    %v3060 = vunpack.c.h.b16 %v1749
    %v3061 = vunpack.c.l.b16 %v1750
    %v3062 = vunpack.c.h.b16 %v1750
    %v3063 = vunpack.c.l.b16 %v1751
    %v3064 = vunpack.c.h.b16 %v1751
    %v3065 = vunpack.c.l.b16 %v1752
    %v3066 = vunpack.c.h.b16 %v1752
    %v3067 = vunpack.c.l.b16 %v1753
    %v3068 = vunpack.c.h.b16 %v1753
    %v3069 = vunpack.c.l.b16 %v1754
    %v3070 = vunpack.c.h.b16 %v1754
    %v3071 = vunpack.c.l.b16 %v1755
    %v3072 = vunpack.c.h.b16 %v1755
    %v3073 = vunpack.c.l.b16 %v1756
    %v3074 = vunpack.c.h.b16 %v1756
    %v3075 = vunpack.c.l.b16 %v1757
    %v3076 = vunpack.c.h.b16 %v1757
    %v3077 = vunpack.c.l.b16 %v1758
    %v3078 = vunpack.c.h.b16 %v1758
    %v3079 = vunpack.c.l.b16 %v1759
    %v3080 = vunpack.c.h.b16 %v1759
    %v3081 = vunpack.c.l.b16 %v1760
    %v3082 = vunpack.c.h.b16 %v1760
    %v3083 = vunpack.c.l.b16 %v1761
    %v3084 = vunpack.c.h.b16 %v1761
    %v3085 = vunpack.c.l.b16 %v1762
    %v3086 = vunpack.c.h.b16 %v1762
    %v3087 = vunpack.c.l.b16 %v1763
    %v3088 = vunpack.c.h.b16 %v1763
    %v3089 = vunpack.c.l.b16 %v1764
    %v3090 = vunpack.c.h.b16 %v1764
    %v3091 = vunpack.c.l.b16 %v1765
    %v3092 = vunpack.c.h.b16 %v1765
    %v3093 = vunpack.c.l.b16 %v1766
    %v3094 = vunpack.c.h.b16 %v1766
    %v3095 = vunpack.c.l.b16 %v1767
    %v3096 = vunpack.c.h.b16 %v1767
    %v3097 = vunpack.c.l.b16 %v1768
    %v3098 = vunpack.c.h.b16 %v1768
    %v3099 = vunpack.c.l.b16 %v1769
    %v3100 = vunpack.c.h.b16 %v1769
    %v3101 = vunpack.c.l.b16 %v1770
    %v3102 = vunpack.c.h.b16 %v1770
    %v3103 = vunpack.c.l.b16 %v1771
    %v3104 = vunpack.c.h.b16 %v1771
    %v3105 = vunpack.c.l.b16 %v1772
    %v3106 = vunpack.c.h.b16 %v1772
    %v3107 = vunpack.c.l.b16 %v1773
    %v3108 = vunpack.c.h.b16 %v1773
    %v3109 = vunpack.c.l.b16 %v1774
    %v3110 = vunpack.c.h.b16 %v1774
    %v3111 = vunpack.c.l.b16 %v1775
    %v3112 = vunpack.c.h.b16 %v1775
    %v3113 = vunpack.c.l.b16 %v1776
    %v3114 = vunpack.c.h.b16 %v1776
    %v3115 = vunpack.c.l.b16 %v1777
    %v3116 = vunpack.c.h.b16 %v1777
    %v3117 = vunpack.c.l.b16 %v1778
    %v3118 = vunpack.c.h.b16 %v1778
    %v3119 = vunpack.c.l.b16 %v1779
    %v3120 = vunpack.c.h.b16 %v1779
    %v3121 = vunpack.c.l.b16 %v1780
    %v3122 = vunpack.c.h.b16 %v1780
    %v3123 = vunpack.c.l.b16 %v1781
    %v3124 = vunpack.c.h.b16 %v1781
    %v3125 = vunpack.c.l.b16 %v1782
    %v3126 = vunpack.c.h.b16 %v1782
    %v3127 = vunpack.c.l.b16 %v1783
    %v3128 = vunpack.c.h.b16 %v1783
    %v3129 = vunpack.c.l.b16 %v1784
    %v3130 = vunpack.c.h.b16 %v1784
    %v3131 = vunpack.c.l.b16 %v1785
    %v3132 = vunpack.c.h.b16 %v1785
    %v3133 = vunpack.c.l.b16 %v1786
    %v3134 = vunpack.c.h.b16 %v1786
    %v3135 = vunpack.c.l.b16 %v1787
    %v3136 = vunpack.c.h.b16 %v1787
    %v3137 = vunpack.c.l.b16 %v1788
    %v3138 = vunpack.c.h.b16 %v1788
    %v3139 = vunpack.c.l.b16 %v1789
    %v3140 = vunpack.c.h.b16 %v1789
    %v3141 = vunpack.c.l.b16 %v1790
    %v3142 = vunpack.c.h.b16 %v1790
    %v3143 = vunpack.c.l.b16 %v1791
    %v3144 = vunpack.c.h.b16 %v1791
    %v3145 = vunpack.c.l.b16 %v1792
    %v3146 = vunpack.c.h.b16 %v1792
    %v3147 = vunpack.c.l.b16 %v1793
    %v3148 = vunpack.c.h.b16 %v1793
    %v3149 = vunpack.c.l.b16 %v1794
    %v3150 = vunpack.c.h.b16 %v1794
    %v3151 = vunpack.c.l.b16 %v1795
    %v3152 = vunpack.c.h.b16 %v1795
    %v3153 = vunpack.c.l.b16 %v1796
    %v3154 = vunpack.c.h.b16 %v1796
    %v3155 = vunpack.c.l.b16 %v1797
    %v3156 = vunpack.c.h.b16 %v1797
    %v3157 = vunpack.c.l.b16 %v1798
    %v3158 = vunpack.c.h.b16 %v1798
    %v3159 = vunpack.c.l.b16 %v1799
    %v3160 = vunpack.c.h.b16 %v1799
    %v3161 = vunpack.c.l.b16 %v1800
    %v3162 = vunpack.c.h.b16 %v1800
    %v3163 = vunpack.c.l.b16 %v1801
    %v3164 = vunpack.c.h.b16 %v1801
    %v3165 = vunpack.c.l.b16 %v1802
    %v3166 = vunpack.c.h.b16 %v1802
    %v3167 = vunpack.c.l.b16 %v1803
    %v3168 = vunpack.c.h.b16 %v1803
    %v3169 = vunpack.c.l.b16 %v1804
    %v3170 = vunpack.c.h.b16 %v1804
    %v3171 = vunpack.c.l.b16 %v1805
    %v3172 = vunpack.c.h.b16 %v1805
    %v3173 = vunpack.c.l.b16 %v1806
    %v3174 = vunpack.c.h.b16 %v1806
    %v3175 = vunpack.c.l.b16 %v1807
    %v3176 = vunpack.c.h.b16 %v1807
    %v3177 = vunpack.c.l.b16 %v1808
    %v3178 = vunpack.c.h.b16 %v1808
    %v3179 = vunpack.c.l.b16 %v1809
    %v3180 = vunpack.c.h.b16 %v1809
    %v3181 = vunpack.c.l.b16 %v1810
    %v3182 = vunpack.c.h.b16 %v1810
    %v3183 = vunpack.c.l.b16 %v1811
    %v3184 = vunpack.c.h.b16 %v1811
    %v3185 = vunpack.c.l.b16 %v1812
    %v3186 = vunpack.c.h.b16 %v1812
    %v3187 = vunpack.c.l.b16 %v1813
    %v3188 = vunpack.c.h.b16 %v1813
    %v3189 = vunpack.c.l.b16 %v1814
    %v3190 = vunpack.c.h.b16 %v1814
    %v3191 = vunpack.c.l.b16 %v1815
    %v3192 = vunpack.c.h.b16 %v1815
    %v3193 = vunpack.c.l.b16 %v1816
    %v3194 = vunpack.c.h.b16 %v1816
    %v3195 = vunpack.c.l.b16 %v1817
    %v3196 = vunpack.c.h.b16 %v1817
    %v3197 = vunpack.c.l.b16 %v1818
    %v3198 = vunpack.c.h.b16 %v1818
    %v3199 = vunpack.c.l.b16 %v1819
    %v3200 = vunpack.c.h.b16 %v1819
    %v3201 = vunpack.c.l.b16 %v1820
    %v3202 = vunpack.c.h.b16 %v1820
    %v3203 = vunpack.c.l.b16 %v1821
    %v3204 = vunpack.c.h.b16 %v1821
    %v3205 = vunpack.c.l.b16 %v1822
    %v3206 = vunpack.c.h.b16 %v1822
    %v3207 = vunpack.c.l.b16 %v1823
    %v3208 = vunpack.c.h.b16 %v1823
    %v3209 = vunpack.c.l.b16 %v1824
    %v3210 = vunpack.c.h.b16 %v1824
    %v3211 = vunpack.c.l.b16 %v1825
    %v3212 = vunpack.c.h.b16 %v1825
    %v3213 = vunpack.c.l.b16 %v1826
    %v3214 = vunpack.c.h.b16 %v1826
    %v3215 = vunpack.c.l.b16 %v1827
    %v3216 = vunpack.c.h.b16 %v1827
    %v3217 = vunpack.c.l.b16 %v1828
    %v3218 = vunpack.c.h.b16 %v1828
    %v3219 = vunpack.c.l.b16 %v1829
    %v3220 = vunpack.c.h.b16 %v1829
    %v3221 = vunpack.c.l.b16 %v1830
    %v3222 = vunpack.c.h.b16 %v1830
    %v3223 = vunpack.c.l.b16 %v1831
    %v3224 = vunpack.c.h.b16 %v1831
    %v3225 = vunpack.c.l.b16 %v1832
    %v3226 = vunpack.c.h.b16 %v1832
    %v3227 = vunpack.c.l.b16 %v1833
    %v3228 = vunpack.c.h.b16 %v1833
    %v3229 = vunpack.c.l.b16 %v1834
    %v3230 = vunpack.c.h.b16 %v1834
    %v3231 = vunpack.c.l.b16 %v1835
    %v3232 = vunpack.c.h.b16 %v1835
    %v3233 = vunpack.c.l.b16 %v1836
    %v3234 = vunpack.c.h.b16 %v1836
    %v3235 = vunpack.c.l.b16 %v1837
    %v3236 = vunpack.c.h.b16 %v1837
    %v3237 = vunpack.c.l.b16 %v1838
    %v3238 = vunpack.c.h.b16 %v1838
    %v3239 = vunpack.c.l.b16 %v1839
    %v3240 = vunpack.c.h.b16 %v1839
    %v3241 = vunpack.c.l.b16 %v1840
    %v3242 = vunpack.c.h.b16 %v1840
    %v3243 = vunpack.c.l.b16 %v1841
    %v3244 = vunpack.c.h.b16 %v1841
    %v3245 = vunpack.c.l.b16 %v1842
    %v3246 = vunpack.c.h.b16 %v1842
    %v3247 = vunpack.c.l.b16 %v1843
    %v3248 = vunpack.c.h.b16 %v1843
    %v3249 = vunpack.c.l.b16 %v1844
    %v3250 = vunpack.c.h.b16 %v1844
    %v3251 = vunpack.c.l.b16 %v1845
    %v3252 = vunpack.c.h.b16 %v1845
    %v3253 = vunpack.c.l.b16 %v1846
    %v3254 = vunpack.c.h.b16 %v1846
    %v3255 = vunpack.c.l.b16 %v1847
    %v3256 = vunpack.c.h.b16 %v1847
    %v3257 = vunpack.c.l.b16 %v1848
    %v3258 = vunpack.c.h.b16 %v1848
    %v3259 = vunpack.c.l.b16 %v1849
    %v3260 = vunpack.c.h.b16 %v1849
    %v3261 = vunpack.c.l.b16 %v1850
    %v3262 = vunpack.c.h.b16 %v1850
    %v3263 = vunpack.c.l.b16 %v1851
    %v3264 = vunpack.c.h.b16 %v1851
    %v3265 = vunpack.c.l.b16 %v1852
    %v3266 = vunpack.c.h.b16 %v1852
    %v3267 = vunpack.c.l.b16 %v1853
    %v3268 = vunpack.c.h.b16 %v1853
    %v3269 = vunpack.c.l.b16 %v1854
    %v3270 = vunpack.c.h.b16 %v1854
    %v3271 = vunpack.c.l.b16 %v1855
    %v3272 = vunpack.c.h.b16 %v1855
    %v3273 = vunpack.c.l.b16 %v1856
    %v3274 = vunpack.c.h.b16 %v1856
    %v3275 = vunpack.c.l.b16 %v1857
    %v3276 = vunpack.c.h.b16 %v1857
    %v3277 = vunpack.c.l.b16 %v1858
    %v3278 = vunpack.c.h.b16 %v1858
    %v3279 = vunpack.c.l.b16 %v1859
    %v3280 = vunpack.c.h.b16 %v1859
    %v3281 = vunpack.c.l.b16 %v1860
    %v3282 = vunpack.c.h.b16 %v1860
    %v3283 = vunpack.c.l.b16 %v1861
    %v3284 = vunpack.c.h.b16 %v1861
    %v3285 = vunpack.c.l.b16 %v1862
    %v3286 = vunpack.c.h.b16 %v1862
    %v3287 = vunpack.c.l.b16 %v1863
    %v3288 = vunpack.c.h.b16 %v1863
    %v3289 = vunpack.c.l.b16 %v1864
    %v3290 = vunpack.c.h.b16 %v1864
    %v3291 = vunpack.c.l.b16 %v1865
    %v3292 = vunpack.c.h.b16 %v1865
    %v3293 = vunpack.c.l.b16 %v1866
    %v3294 = vunpack.c.h.b16 %v1866
    %v3295 = vunpack.c.l.b16 %v1867
    %v3296 = vunpack.c.h.b16 %v1867
    %v3297 = vunpack.c.l.b16 %v1868
    %v3298 = vunpack.c.h.b16 %v1868
    %v3299 = vunpack.c.l.b16 %v1869
    %v3300 = vunpack.c.h.b16 %v1869
    %v3301 = vunpack.c.l.b16 %v1870
    %v3302 = vunpack.c.h.b16 %v1870
    %v3303 = vunpack.c.l.b16 %v1871
    %v3304 = vunpack.c.h.b16 %v1871
    %v3305 = vunpack.c.l.b16 %v1872
    %v3306 = vunpack.c.h.b16 %v1872
    %v3307 = vunpack.c.l.b16 %v1873
    %v3308 = vunpack.c.h.b16 %v1873
    %v3309 = vunpack.c.l.b16 %v1874
    %v3310 = vunpack.c.h.b16 %v1874
    %v3311 = vunpack.c.l.b16 %v1875
    %v3312 = vunpack.c.h.b16 %v1875
    %v3313 = vunpack.c.l.b16 %v1876
    %v3314 = vunpack.c.h.b16 %v1876
    %v3315 = vunpack.c.l.b16 %v1877
    %v3316 = vunpack.c.h.b16 %v1877
    %v3317 = vunpack.c.l.b16 %v1878
    %v3318 = vunpack.c.h.b16 %v1878
    %v3319 = vunpack.c.l.b16 %v1879
    %v3320 = vunpack.c.h.b16 %v1879
    %v3321 = vunpack.c.l.b16 %v1880
    %v3322 = vunpack.c.h.b16 %v1880
    %v3323 = vunpack.c.l.b16 %v1881
    %v3324 = vunpack.c.h.b16 %v1881
    %v3325 = vunpack.c.l.b16 %v1882
    %v3326 = vunpack.c.h.b16 %v1882
    %v3327 = vunpack.c.l.b16 %v1883
    %v3328 = vunpack.c.h.b16 %v1883
    %v3329 = vunpack.c.l.b16 %v1884
    %v3330 = vunpack.c.h.b16 %v1884
    %v3331 = vunpack.c.l.b16 %v1885
    %v3332 = vunpack.c.h.b16 %v1885
    %v3333 = vunpack.c.l.b16 %v1886
    %v3334 = vunpack.c.h.b16 %v1886
    %v3335 = vunpack.c.l.b16 %v1887
    %v3336 = vunpack.c.h.b16 %v1887
    %v3337 = vunpack.c.l.b16 %v1888
    %v3338 = vunpack.c.h.b16 %v1888
    %v3339 = vunpack.c.l.b16 %v1889
    %v3340 = vunpack.c.h.b16 %v1889
    %v3341 = vunpack.c.l.b16 %v1890
    %v3342 = vunpack.c.h.b16 %v1890
    %v3343 = vunpack.c.l.b16 %v1891
    %v3344 = vunpack.c.h.b16 %v1891
    %v3345 = vunpack.c.l.b16 %v1892
    %v3346 = vunpack.c.h.b16 %v1892
    %v3347 = vunpack.c.l.b16 %v1893
    %v3348 = vunpack.c.h.b16 %v1893
    %v3349 = vunpack.c.l.b16 %v1894
    %v3350 = vunpack.c.h.b16 %v1894
    %v3351 = vunpack.c.l.b16 %v1895
    %v3352 = vunpack.c.h.b16 %v1895
    %v3353 = vunpack.c.l.b16 %v1896
    %v3354 = vunpack.c.h.b16 %v1896
    %v3355 = vunpack.c.l.b16 %v1897
    %v3356 = vunpack.c.h.b16 %v1897
    %v3357 = vunpack.c.l.b16 %v1898
    %v3358 = vunpack.c.h.b16 %v1898
    %v3359 = vunpack.c.l.b16 %v1899
    %v3360 = vunpack.c.h.b16 %v1899
    %v3361 = vunpack.c.l.b16 %v1900
    %v3362 = vunpack.c.h.b16 %v1900
    %v3363 = vunpack.c.l.b16 %v1901
    %v3364 = vunpack.c.h.b16 %v1901
    %v3365 = vunpack.c.l.b16 %v1902
    %v3366 = vunpack.c.h.b16 %v1902
    %v3367 = vunpack.c.l.b16 %v1903
    %v3368 = vunpack.c.h.b16 %v1903
    %v3369 = vunpack.c.l.b16 %v1904
    %v3370 = vunpack.c.h.b16 %v1904
    %v3371 = vunpack.c.l.b16 %v1905
    %v3372 = vunpack.c.h.b16 %v1905
    %v3373 = vunpack.c.l.b16 %v1906
    %v3374 = vunpack.c.h.b16 %v1906
    %v3375 = vunpack.c.l.b16 %v1907
    %v3376 = vunpack.c.h.b16 %v1907
    %v3377 = vunpack.c.l.b16 %v1908
    %v3378 = vunpack.c.h.b16 %v1908
    %v3379 = vunpack.c.l.b16 %v1909
    %v3380 = vunpack.c.h.b16 %v1909
    %v3381 = vunpack.c.l.b16 %v1910
    %v3382 = vunpack.c.h.b16 %v1910
    %v3383 = vunpack.c.l.b16 %v1911
    %v3384 = vunpack.c.h.b16 %v1911
    %v3385 = vunpack.c.l.b16 %v1912
    %v3386 = vunpack.c.h.b16 %v1912
    %v3387 = vunpack.c.l.b16 %v1913
    %v3388 = vunpack.c.h.b16 %v1913
    %v3389 = vunpack.c.l.b16 %v1914
    %v3390 = vunpack.c.h.b16 %v1914
    %v3391 = vunpack.c.l.b16 %v1915
    %v3392 = vunpack.c.h.b16 %v1915
    %v3393 = vunpack.c.l.b16 %v1916
    %v3394 = vunpack.c.h.b16 %v1916
    %v3395 = vunpack.c.l.b16 %v1917
    %v3396 = vunpack.c.h.b16 %v1917
    %v3397 = vunpack.c.l.b16 %v1918
    %v3398 = vunpack.c.h.b16 %v1918
    %v3399 = vunpack.c.l.b16 %v1919
    %v3400 = vunpack.c.h.b16 %v1919
    %v3401 = vunpack.c.l.b16 %v1920
    %v3402 = vunpack.c.h.b16 %v1920
    %v3403 = vunpack.c.l.b16 %v1921
    %v3404 = vunpack.c.h.b16 %v1921
    %v3405 = vunpack.c.l.b16 %v1922
    %v3406 = vunpack.c.h.b16 %v1922
    %v3407 = vunpack.c.l.b16 %v1923
    %v3408 = vunpack.c.h.b16 %v1923
    %v3409 = vunpack.c.l.b16 %v1924
    %v3410 = vunpack.c.h.b16 %v1924
    %v3411 = vunpack.c.l.b16 %v1925
    %v3412 = vunpack.c.h.b16 %v1925
    %v3413 = vunpack.c.l.b16 %v1926
    %v3414 = vunpack.c.h.b16 %v1926
    %v3415 = vunpack.c.l.b16 %v1927
    %v3416 = vunpack.c.h.b16 %v1927
    %v3417 = vunpack.c.l.b16 %v1928
    %v3418 = vunpack.c.h.b16 %v1928
    %v3419 = vunpack.c.l.b16 %v1929
    %v3420 = vunpack.c.h.b16 %v1929
    %v3421 = vunpack.c.l.b16 %v1930
    %v3422 = vunpack.c.h.b16 %v1930
    %v3423 = vunpack.c.l.b16 %v1931
    %v3424 = vunpack.c.h.b16 %v1931
    %v3425 = vunpack.c.l.b16 %v1932
    %v3426 = vunpack.c.h.b16 %v1932
    %v3427 = vunpack.c.l.b16 %v1933
    %v3428 = vunpack.c.h.b16 %v1933
    %v3429 = vunpack.c.l.b16 %v1934
    %v3430 = vunpack.c.h.b16 %v1934
    %v3431 = vunpack.c.l.b16 %v1935
    %v3432 = vunpack.c.h.b16 %v1935
    %v3433 = vunpack.c.l.b16 %v1936
    %v3434 = vunpack.c.h.b16 %v1936
    %v3435 = vunpack.c.l.b16 %v1937
    %v3436 = vunpack.c.h.b16 %v1937
    %v3437 = vunpack.c.l.b16 %v1938
    %v3438 = vunpack.c.h.b16 %v1938
    %v3439 = vunpack.c.l.b16 %v1939
    %v3440 = vunpack.c.h.b16 %v1939
    %v3441 = vunpack.c.l.b16 %v1940
    %v3442 = vunpack.c.h.b16 %v1940
    %v3443 = vunpack.c.l.b16 %v1941
    %v3444 = vunpack.c.h.b16 %v1941
    %v3445 = vunpack.c.l.b16 %v1942
    %v3446 = vunpack.c.h.b16 %v1942
    %v3447 = vunpack.c.l.b16 %v1943
    %v3448 = vunpack.c.h.b16 %v1943
    %v3449 = vunpack.c.l.b16 %v1944
    %v3450 = vunpack.c.h.b16 %v1944
    %v3451 = vunpack.c.l.b16 %v1945
    %v3452 = vunpack.c.h.b16 %v1945
    %v3453 = vunpack.c.l.b16 %v1946
    %v3454 = vunpack.c.h.b16 %v1946
    %v3455 = vunpack.c.l.b16 %v1947
    %v3456 = vunpack.c.h.b16 %v1947
    %v3457 = vunpack.c.l.b16 %v1948
    %v3458 = vunpack.c.h.b16 %v1948
    %v3459 = vunpack.c.l.b16 %v1949
    %v3460 = vunpack.c.h.b16 %v1949
    %v3461 = vunpack.c.l.b16 %v1950
    %v3462 = vunpack.c.h.b16 %v1950
    %v3463 = vunpack.c.l.b16 %v1951
    %v3464 = vunpack.c.h.b16 %v1951
    %v3465 = vunpack.c.l.b16 %v1952
    %v3466 = vunpack.c.h.b16 %v1952
    %v3467 = vunpack.c.l.b16 %v1953
    %v3468 = vunpack.c.h.b16 %v1953
    %v3469 = vunpack.c.l.b16 %v1954
    %v3470 = vunpack.c.h.b16 %v1954
    %v3471 = vunpack.c.l.b16 %v1955
    %v3472 = vunpack.c.h.b16 %v1955
    %v3473 = vunpack.c.l.b16 %v1956
    %v3474 = vunpack.c.h.b16 %v1956
    %v3475 = vunpack.c.l.b16 %v1957
    %v3476 = vunpack.c.h.b16 %v1957
    %v3477 = vunpack.c.l.b16 %v1958
    %v3478 = vunpack.c.h.b16 %v1958
    %v3479 = vunpack.c.l.b16 %v1959
    %v3480 = vunpack.c.h.b16 %v1959
    %v3481 = vunpack.c.l.b16 %v1960
    %v3482 = vunpack.c.h.b16 %v1960
    %v3483 = vunpack.c.l.b16 %v1961
    %v3484 = vunpack.c.h.b16 %v1961
    %v3485 = vunpack.c.l.b16 %v1962
    %v3486 = vunpack.c.h.b16 %v1962
    %v3487 = vunpack.c.l.b16 %v1963
    %v3488 = vunpack.c.h.b16 %v1963
    %v3489 = vunpack.c.l.b16 %v1964
    %v3490 = vunpack.c.h.b16 %v1964
    %v3491 = vunpack.c.l.b16 %v1965
    %v3492 = vunpack.c.h.b16 %v1965
    %v3493 = vunpack.c.l.b16 %v1966
    %v3494 = vunpack.c.h.b16 %v1966
    %v3495 = vunpack.c.l.b16 %v1967
    %v3496 = vunpack.c.h.b16 %v1967
    %v3497 = vunpack.c.l.b16 %v1968
    %v3498 = vunpack.c.h.b16 %v1968
    %v3499 = vunpack.c.l.b16 %v1969
    %v3500 = vunpack.c.h.b16 %v1969
    %v3501 = vunpack.c.l.b16 %v1970
    %v3502 = vunpack.c.h.b16 %v1970
    %v3503 = vunpack.c.l.b16 %v1971
    %v3504 = vunpack.c.h.b16 %v1971
    %v3505 = vunpack.c.l.b16 %v1972
    %v3506 = vunpack.c.h.b16 %v1972
    %v3507 = vunpack.c.l.b16 %v1973
    %v3508 = vunpack.c.h.b16 %v1973
    %v3509 = vunpack.c.l.b16 %v1974
    %v3510 = vunpack.c.h.b16 %v1974
    %v3511 = vunpack.c.l.b16 %v1975
    %v3512 = vunpack.c.h.b16 %v1975
    %v3513 = vunpack.c.l.b16 %v1976
    %v3514 = vunpack.c.h.b16 %v1976
    %v3515 = vunpack.c.l.b16 %v1977
    %v3516 = vunpack.c.h.b16 %v1977
    %v3517 = vunpack.c.l.b16 %v1978
    %v3518 = vunpack.c.h.b16 %v1978
    %v3519 = vunpack.c.l.b16 %v1979
    %v3520 = vunpack.c.h.b16 %v1979
    %v3521 = vunpack.c.l.b16 %v1980
    %v3522 = vunpack.c.h.b16 %v1980
    %v3523 = vunpack.c.l.b16 %v1981
    %v3524 = vunpack.c.h.b16 %v1981
    %v3525 = vunpack.c.l.b16 %v1982
    %v3526 = vunpack.c.h.b16 %v1982
    %v3527 = vunpack.c.l.b16 %v1983
    %v3528 = vunpack.c.h.b16 %v1983
    %v3529 = vunpack.c.l.b16 %v1984
    %v3530 = vunpack.c.h.b16 %v1984
    %v3531 = vunpack.c.l.b16 %v1985
    %v3532 = vunpack.c.h.b16 %v1985
    %v3533 = vunpack.c.l.b16 %v1986
    %v3534 = vunpack.c.h.b16 %v1986
    %v3535 = vpack.c.b16 %v2513, %v2511
    %v3536 = vpack.c.b16 %v2514, %v2512
    %v3537 = vpack.c.b16 %v2517, %v2515
    %v3538 = vpack.c.b16 %v2518, %v2516
    %v3539 = vpack.c.b16 %v2521, %v2519
    %v3540 = vpack.c.b16 %v2522, %v2520
    %v3541 = vpack.c.b16 %v2525, %v2523
    %v3542 = vpack.c.b16 %v2526, %v2524
    %v3543 = vpack.c.b16 %v2529, %v2527
    %v3544 = vpack.c.b16 %v2530, %v2528
    %v3545 = vpack.c.b16 %v2533, %v2531
    %v3546 = vpack.c.b16 %v2534, %v2532
    %v3547 = vpack.c.b16 %v2537, %v2535
    %v3548 = vpack.c.b16 %v2538, %v2536
    %v3549 = vpack.c.b16 %v2541, %v2539
    %v3550 = vpack.c.b16 %v2542, %v2540
    %v3551 = vpack.c.b16 %v2545, %v2543
    %v3552 = vpack.c.b16 %v2546, %v2544
    %v3553 = vpack.c.b16 %v2549, %v2547
    %v3554 = vpack.c.b16 %v2550, %v2548
    %v3555 = vpack.c.b16 %v2553, %v2551
    %v3556 = vpack.c.b16 %v2554, %v2552
    %v3557 = vpack.c.b16 %v2557, %v2555
    %v3558 = vpack.c.b16 %v2558, %v2556
    %v3559 = vpack.c.b16 %v2561, %v2559
    %v3560 = vpack.c.b16 %v2562, %v2560
    %v3561 = vpack.c.b16 %v2565, %v2563
    %v3562 = vpack.c.b16 %v2566, %v2564
    %v3563 = vpack.c.b16 %v2569, %v2567
    %v3564 = vpack.c.b16 %v2570, %v2568
    %v3565 = vpack.c.b16 %v2573, %v2571
    %v3566 = vpack.c.b16 %v2574, %v2572
    %v3567 = vpack.c.b16 %v2577, %v2575
    %v3568 = vpack.c.b16 %v2578, %v2576
    %v3569 = vpack.c.b16 %v2581, %v2579
    %v3570 = vpack.c.b16 %v2582, %v2580
    %v3571 = vpack.c.b16 %v2585, %v2583
    %v3572 = vpack.c.b16 %v2586, %v2584
    %v3573 = vpack.c.b16 %v2589, %v2587
    %v3574 = vpack.c.b16 %v2590, %v2588
    %v3575 = vpack.c.b16 %v2593, %v2591
    %v3576 = vpack.c.b16 %v2594, %v2592
    %v3577 = vpack.c.b16 %v2597, %v2595
    %v3578 = vpack.c.b16 %v2598, %v2596
    %v3579 = vpack.c.b16 %v2601, %v2599
    %v3580 = vpack.c.b16 %v2602, %v2600
    %v3581 = vpack.c.b16 %v2605, %v2603
    %v3582 = vpack.c.b16 %v2606, %v2604
    %v3583 = vpack.c.b16 %v2609, %v2607
    %v3584 = vpack.c.b16 %v2610, %v2608
    %v3585 = vpack.c.b16 %v2613, %v2611
    %v3586 = vpack.c.b16 %v2614, %v2612
    %v3587 = vpack.c.b16 %v2617, %v2615
    %v3588 = vpack.c.b16 %v2618, %v2616
    %v3589 = vpack.c.b16 %v2621, %v2619
    %v3590 = vpack.c.b16 %v2622, %v2620
    %v3591 = vpack.c.b16 %v2625, %v2623
    %v3592 = vpack.c.b16 %v2626, %v2624
    %v3593 = vpack.c.b16 %v2629, %v2627
    %v3594 = vpack.c.b16 %v2630, %v2628
    %v3595 = vpack.c.b16 %v2633, %v2631
    %v3596 = vpack.c.b16 %v2634, %v2632
    %v3597 = vpack.c.b16 %v2637, %v2635
    %v3598 = vpack.c.b16 %v2638, %v2636
    %v3599 = vpack.c.b16 %v2641, %v2639
    %v3600 = vpack.c.b16 %v2642, %v2640
    %v3601 = vpack.c.b16 %v2645, %v2643
    %v3602 = vpack.c.b16 %v2646, %v2644
    %v3603 = vpack.c.b16 %v2649, %v2647
    %v3604 = vpack.c.b16 %v2650, %v2648
    %v3605 = vpack.c.b16 %v2653, %v2651
    %v3606 = vpack.c.b16 %v2654, %v2652
    %v3607 = vpack.c.b16 %v2657, %v2655
    %v3608 = vpack.c.b16 %v2658, %v2656
    %v3609 = vpack.c.b16 %v2661, %v2659
    %v3610 = vpack.c.b16 %v2662, %v2660
    %v3611 = vpack.c.b16 %v2665, %v2663
    %v3612 = vpack.c.b16 %v2666, %v2664
    %v3613 = vpack.c.b16 %v2669, %v2667
    %v3614 = vpack.c.b16 %v2670, %v2668
    %v3615 = vpack.c.b16 %v2673, %v2671
    %v3616 = vpack.c.b16 %v2674, %v2672
    %v3617 = vpack.c.b16 %v2677, %v2675
    %v3618 = vpack.c.b16 %v2678, %v2676
    %v3619 = vpack.c.b16 %v2681, %v2679
    %v3620 = vpack.c.b16 %v2682, %v2680
    %v3621 = vpack.c.b16 %v2685, %v2683
    %v3622 = vpack.c.b16 %v2686, %v2684
    %v3623 = vpack.c.b16 %v2689, %v2687
    %v3624 = vpack.c.b16 %v2690, %v2688
    %v3625 = vpack.c.b16 %v2693, %v2691
    %v3626 = vpack.c.b16 %v2694, %v2692
    %v3627 = vpack.c.b16 %v2697, %v2695
    %v3628 = vpack.c.b16 %v2698, %v2696
    %v3629 = vpack.c.b16 %v2701, %v2699
    %v3630 = vpack.c.b16 %v2702, %v2700
    %v3631 = vpack.c.b16 %v2705, %v2703
    %v3632 = vpack.c.b16 %v2706, %v2704
    %v3633 = vpack.c.b16 %v2709, %v2707
    %v3634 = vpack.c.b16 %v2710, %v2708
    %v3635 = vpack.c.b16 %v2713, %v2711
    %v3636 = vpack.c.b16 %v2714, %v2712
    %v3637 = vpack.c.b16 %v2717, %v2715
    %v3638 = vpack.c.b16 %v2718, %v2716
    %v3639 = vpack.c.b16 %v2721, %v2719
    %v3640 = vpack.c.b16 %v2722, %v2720
    %v3641 = vpack.c.b16 %v2725, %v2723
    %v3642 = vpack.c.b16 %v2726, %v2724
    %v3643 = vpack.c.b16 %v2729, %v2727
    %v3644 = vpack.c.b16 %v2730, %v2728
    %v3645 = vpack.c.b16 %v2733, %v2731
    %v3646 = vpack.c.b16 %v2734, %v2732
    %v3647 = vpack.c.b16 %v2737, %v2735
    %v3648 = vpack.c.b16 %v2738, %v2736
    %v3649 = vpack.c.b16 %v2741, %v2739
    %v3650 = vpack.c.b16 %v2742, %v2740
    %v3651 = vpack.c.b16 %v2745, %v2743
    %v3652 = vpack.c.b16 %v2746, %v2744
    %v3653 = vpack.c.b16 %v2749, %v2747
    %v3654 = vpack.c.b16 %v2750, %v2748
    %v3655 = vpack.c.b16 %v2753, %v2751
    %v3656 = vpack.c.b16 %v2754, %v2752
    %v3657 = vpack.c.b16 %v2757, %v2755
    %v3658 = vpack.c.b16 %v2758, %v2756
    %v3659 = vpack.c.b16 %v2761, %v2759
    %v3660 = vpack.c.b16 %v2762, %v2760
    %v3661 = vpack.c.b16 %v2765, %v2763
    %v3662 = vpack.c.b16 %v2766, %v2764
    %v3663 = vpack.c.b16 %v2769, %v2767
    %v3664 = vpack.c.b16 %v2770, %v2768
    %v3665 = vpack.c.b16 %v2773, %v2771
    %v3666 = vpack.c.b16 %v2774, %v2772
    %v3667 = vpack.c.b16 %v2777, %v2775
    %v3668 = vpack.c.b16 %v2778, %v2776
    %v3669 = vpack.c.b16 %v2781, %v2779
    %v3670 = vpack.c.b16 %v2782, %v2780
    %v3671 = vpack.c.b16 %v2785, %v2783
    %v3672 = vpack.c.b16 %v2786, %v2784
    %v3673 = vpack.c.b16 %v2789, %v2787
    %v3674 = vpack.c.b16 %v2790, %v2788
    %v3675 = vpack.c.b16 %v2793, %v2791
    %v3676 = vpack.c.b16 %v2794, %v2792
    %v3677 = vpack.c.b16 %v2797, %v2795
    %v3678 = vpack.c.b16 %v2798, %v2796
    %v3679 = vpack.c.b16 %v2801, %v2799
    %v3680 = vpack.c.b16 %v2802, %v2800
    %v3681 = vpack.c.b16 %v2805, %v2803
    %v3682 = vpack.c.b16 %v2806, %v2804
    %v3683 = vpack.c.b16 %v2809, %v2807
    %v3684 = vpack.c.b16 %v2810, %v2808
    %v3685 = vpack.c.b16 %v2813, %v2811
    %v3686 = vpack.c.b16 %v2814, %v2812
    %v3687 = vpack.c.b16 %v2817, %v2815
    %v3688 = vpack.c.b16 %v2818, %v2816
    %v3689 = vpack.c.b16 %v2821, %v2819
    %v3690 = vpack.c.b16 %v2822, %v2820
    %v3691 = vpack.c.b16 %v2825, %v2823
    %v3692 = vpack.c.b16 %v2826, %v2824
    %v3693 = vpack.c.b16 %v2829, %v2827
    %v3694 = vpack.c.b16 %v2830, %v2828
    %v3695 = vpack.c.b16 %v2833, %v2831
    %v3696 = vpack.c.b16 %v2834, %v2832
    %v3697 = vpack.c.b16 %v2837, %v2835
    %v3698 = vpack.c.b16 %v2838, %v2836
    %v3699 = vpack.c.b16 %v2841, %v2839
    %v3700 = vpack.c.b16 %v2842, %v2840
    %v3701 = vpack.c.b16 %v2845, %v2843
    %v3702 = vpack.c.b16 %v2846, %v2844
    %v3703 = vpack.c.b16 %v2849, %v2847
    %v3704 = vpack.c.b16 %v2850, %v2848
    %v3705 = vpack.c.b16 %v2853, %v2851
    %v3706 = vpack.c.b16 %v2854, %v2852
    %v3707 = vpack.c.b16 %v2857, %v2855
    %v3708 = vpack.c.b16 %v2858, %v2856
    %v3709 = vpack.c.b16 %v2861, %v2859
    %v3710 = vpack.c.b16 %v2862, %v2860
    %v3711 = vpack.c.b16 %v2865, %v2863
    %v3712 = vpack.c.b16 %v2866, %v2864
    %v3713 = vpack.c.b16 %v2869, %v2867
    %v3714 = vpack.c.b16 %v2870, %v2868
    %v3715 = vpack.c.b16 %v2873, %v2871
    %v3716 = vpack.c.b16 %v2874, %v2872
    %v3717 = vpack.c.b16 %v2877, %v2875
    %v3718 = vpack.c.b16 %v2878, %v2876
    %v3719 = vpack.c.b16 %v2881, %v2879
    %v3720 = vpack.c.b16 %v2882, %v2880
    %v3721 = vpack.c.b16 %v2885, %v2883
    %v3722 = vpack.c.b16 %v2886, %v2884
    %v3723 = vpack.c.b16 %v2889, %v2887
    %v3724 = vpack.c.b16 %v2890, %v2888
    %v3725 = vpack.c.b16 %v2893, %v2891
    %v3726 = vpack.c.b16 %v2894, %v2892
    %v3727 = vpack.c.b16 %v2897, %v2895
    %v3728 = vpack.c.b16 %v2898, %v2896
    %v3729 = vpack.c.b16 %v2901, %v2899
    %v3730 = vpack.c.b16 %v2902, %v2900
    %v3731 = vpack.c.b16 %v2905, %v2903
    %v3732 = vpack.c.b16 %v2906, %v2904
    %v3733 = vpack.c.b16 %v2909, %v2907
    %v3734 = vpack.c.b16 %v2910, %v2908
    %v3735 = vpack.c.b16 %v2913, %v2911
    %v3736 = vpack.c.b16 %v2914, %v2912
    %v3737 = vpack.c.b16 %v2917, %v2915
    %v3738 = vpack.c.b16 %v2918, %v2916
    %v3739 = vpack.c.b16 %v2921, %v2919
    %v3740 = vpack.c.b16 %v2922, %v2920
    %v3741 = vpack.c.b16 %v2925, %v2923
    %v3742 = vpack.c.b16 %v2926, %v2924
    %v3743 = vpack.c.b16 %v2929, %v2927
    %v3744 = vpack.c.b16 %v2930, %v2928
    %v3745 = vpack.c.b16 %v2933, %v2931
    %v3746 = vpack.c.b16 %v2934, %v2932
    %v3747 = vpack.c.b16 %v2937, %v2935
    %v3748 = vpack.c.b16 %v2938, %v2936
    %v3749 = vpack.c.b16 %v2941, %v2939
    %v3750 = vpack.c.b16 %v2942, %v2940
    %v3751 = vpack.c.b16 %v2945, %v2943
    %v3752 = vpack.c.b16 %v2946, %v2944
    %v3753 = vpack.c.b16 %v2949, %v2947
    %v3754 = vpack.c.b16 %v2950, %v2948
    %v3755 = vpack.c.b16 %v2953, %v2951
    %v3756 = vpack.c.b16 %v2954, %v2952
    %v3757 = vpack.c.b16 %v2957, %v2955
    %v3758 = vpack.c.b16 %v2958, %v2956
    %v3759 = vpack.c.b16 %v2961, %v2959
    %v3760 = vpack.c.b16 %v2962, %v2960
    %v3761 = vpack.c.b16 %v2965, %v2963
    %v3762 = vpack.c.b16 %v2966, %v2964
    %v3763 = vpack.c.b16 %v2969, %v2967
    %v3764 = vpack.c.b16 %v2970, %v2968
    %v3765 = vpack.c.b16 %v2973, %v2971
    %v3766 = vpack.c.b16 %v2974, %v2972
    %v3767 = vpack.c.b16 %v2977, %v2975
    %v3768 = vpack.c.b16 %v2978, %v2976
    %v3769 = vpack.c.b16 %v2981, %v2979
    %v3770 = vpack.c.b16 %v2982, %v2980
    %v3771 = vpack.c.b16 %v2985, %v2983
    %v3772 = vpack.c.b16 %v2986, %v2984
    %v3773 = vpack.c.b16 %v2989, %v2987
    %v3774 = vpack.c.b16 %v2990, %v2988
    %v3775 = vpack.c.b16 %v2993, %v2991
    %v3776 = vpack.c.b16 %v2994, %v2992
    %v3777 = vpack.c.b16 %v2997, %v2995
    %v3778 = vpack.c.b16 %v2998, %v2996
    %v3779 = vpack.c.b16 %v3001, %v2999
    %v3780 = vpack.c.b16 %v3002, %v3000
    %v3781 = vpack.c.b16 %v3005, %v3003
    %v3782 = vpack.c.b16 %v3006, %v3004
    %v3783 = vpack.c.b16 %v3009, %v3007
    %v3784 = vpack.c.b16 %v3010, %v3008
    %v3785 = vpack.c.b16 %v3013, %v3011
    %v3786 = vpack.c.b16 %v3014, %v3012
    %v3787 = vpack.c.b16 %v3017, %v3015
    %v3788 = vpack.c.b16 %v3018, %v3016
    %v3789 = vpack.c.b16 %v3021, %v3019
    %v3790 = vpack.c.b16 %v3022, %v3020
    %v3791 = vpack.c.b16 %v3025, %v3023
    %v3792 = vpack.c.b16 %v3026, %v3024
    %v3793 = vpack.c.b16 %v3029, %v3027
    %v3794 = vpack.c.b16 %v3030, %v3028
    %v3795 = vpack.c.b16 %v3033, %v3031
    %v3796 = vpack.c.b16 %v3034, %v3032
    %v3797 = vpack.c.b16 %v3037, %v3035
    %v3798 = vpack.c.b16 %v3038, %v3036
    %v3799 = vpack.c.b16 %v3041, %v3039
    %v3800 = vpack.c.b16 %v3042, %v3040
    %v3801 = vpack.c.b16 %v3045, %v3043
    %v3802 = vpack.c.b16 %v3046, %v3044
    %v3803 = vpack.c.b16 %v3049, %v3047
    %v3804 = vpack.c.b16 %v3050, %v3048
    %v3805 = vpack.c.b16 %v3053, %v3051
    %v3806 = vpack.c.b16 %v3054, %v3052
    %v3807 = vpack.c.b16 %v3057, %v3055
    %v3808 = vpack.c.b16 %v3058, %v3056
    %v3809 = vpack.c.b16 %v3061, %v3059
    %v3810 = vpack.c.b16 %v3062, %v3060
    %v3811 = vpack.c.b16 %v3065, %v3063
    %v3812 = vpack.c.b16 %v3066, %v3064
    %v3813 = vpack.c.b16 %v3069, %v3067
    %v3814 = vpack.c.b16 %v3070, %v3068
    %v3815 = vpack.c.b16 %v3073, %v3071
    %v3816 = vpack.c.b16 %v3074, %v3072
    %v3817 = vpack.c.b16 %v3077, %v3075
    %v3818 = vpack.c.b16 %v3078, %v3076
    %v3819 = vpack.c.b16 %v3081, %v3079
    %v3820 = vpack.c.b16 %v3082, %v3080
    %v3821 = vpack.c.b16 %v3085, %v3083
    %v3822 = vpack.c.b16 %v3086, %v3084
    %v3823 = vpack.c.b16 %v3089, %v3087
    %v3824 = vpack.c.b16 %v3090, %v3088
    %v3825 = vpack.c.b16 %v3093, %v3091
    %v3826 = vpack.c.b16 %v3094, %v3092
    %v3827 = vpack.c.b16 %v3097, %v3095
    %v3828 = vpack.c.b16 %v3098, %v3096
    %v3829 = vpack.c.b16 %v3101, %v3099
    %v3830 = vpack.c.b16 %v3102, %v3100
    %v3831 = vpack.c.b16 %v3105, %v3103
    %v3832 = vpack.c.b16 %v3106, %v3104
    %v3833 = vpack.c.b16 %v3109, %v3107
    %v3834 = vpack.c.b16 %v3110, %v3108
    %v3835 = vpack.c.b16 %v3113, %v3111
    %v3836 = vpack.c.b16 %v3114, %v3112
    %v3837 = vpack.c.b16 %v3117, %v3115
    %v3838 = vpack.c.b16 %v3118, %v3116
    %v3839 = vpack.c.b16 %v3121, %v3119
    %v3840 = vpack.c.b16 %v3122, %v3120
    %v3841 = vpack.c.b16 %v3125, %v3123
    %v3842 = vpack.c.b16 %v3126, %v3124
    %v3843 = vpack.c.b16 %v3129, %v3127
    %v3844 = vpack.c.b16 %v3130, %v3128
    %v3845 = vpack.c.b16 %v3133, %v3131
    %v3846 = vpack.c.b16 %v3134, %v3132
    %v3847 = vpack.c.b16 %v3137, %v3135
    %v3848 = vpack.c.b16 %v3138, %v3136
    %v3849 = vpack.c.b16 %v3141, %v3139
    %v3850 = vpack.c.b16 %v3142, %v3140
    %v3851 = vpack.c.b16 %v3145, %v3143
    %v3852 = vpack.c.b16 %v3146, %v3144
    %v3853 = vpack.c.b16 %v3149, %v3147
    %v3854 = vpack.c.b16 %v3150, %v3148
    %v3855 = vpack.c.b16 %v3153, %v3151
    %v3856 = vpack.c.b16 %v3154, %v3152
    %v3857 = vpack.c.b16 %v3157, %v3155
    %v3858 = vpack.c.b16 %v3158, %v3156
    %v3859 = vpack.c.b16 %v3161, %v3159
    %v3860 = vpack.c.b16 %v3162, %v3160
    %v3861 = vpack.c.b16 %v3165, %v3163
    %v3862 = vpack.c.b16 %v3166, %v3164
    %v3863 = vpack.c.b16 %v3169, %v3167
    %v3864 = vpack.c.b16 %v3170, %v3168
    %v3865 = vpack.c.b16 %v3173, %v3171
    %v3866 = vpack.c.b16 %v3174, %v3172
    %v3867 = vpack.c.b16 %v3177, %v3175
    %v3868 = vpack.c.b16 %v3178, %v3176
    %v3869 = vpack.c.b16 %v3181, %v3179
    %v3870 = vpack.c.b16 %v3182, %v3180
    %v3871 = vpack.c.b16 %v3185, %v3183
    %v3872 = vpack.c.b16 %v3186, %v3184
    %v3873 = vpack.c.b16 %v3189, %v3187
    %v3874 = vpack.c.b16 %v3190, %v3188
    %v3875 = vpack.c.b16 %v3193, %v3191
    %v3876 = vpack.c.b16 %v3194, %v3192
    %v3877 = vpack.c.b16 %v3197, %v3195
    %v3878 = vpack.c.b16 %v3198, %v3196
    %v3879 = vpack.c.b16 %v3201, %v3199
    %v3880 = vpack.c.b16 %v3202, %v3200
    %v3881 = vpack.c.b16 %v3205, %v3203
    %v3882 = vpack.c.b16 %v3206, %v3204
    %v3883 = vpack.c.b16 %v3209, %v3207
    %v3884 = vpack.c.b16 %v3210, %v3208
    %v3885 = vpack.c.b16 %v3213, %v3211
    %v3886 = vpack.c.b16 %v3214, %v3212
    %v3887 = vpack.c.b16 %v3217, %v3215
    %v3888 = vpack.c.b16 %v3218, %v3216
    %v3889 = vpack.c.b16 %v3221, %v3219
    %v3890 = vpack.c.b16 %v3222, %v3220
    %v3891 = vpack.c.b16 %v3225, %v3223
    %v3892 = vpack.c.b16 %v3226, %v3224
    %v3893 = vpack.c.b16 %v3229, %v3227
    %v3894 = vpack.c.b16 %v3230, %v3228
    %v3895 = vpack.c.b16 %v3233, %v3231
    %v3896 = vpack.c.b16 %v3234, %v3232
    %v3897 = vpack.c.b16 %v3237, %v3235
    %v3898 = vpack.c.b16 %v3238, %v3236
    %v3899 = vpack.c.b16 %v3241, %v3239
    %v3900 = vpack.c.b16 %v3242, %v3240
    %v3901 = vpack.c.b16 %v3245, %v3243
    %v3902 = vpack.c.b16 %v3246, %v3244
    %v3903 = vpack.c.b16 %v3249, %v3247
    %v3904 = vpack.c.b16 %v3250, %v3248
    %v3905 = vpack.c.b16 %v3253, %v3251
    %v3906 = vpack.c.b16 %v3254, %v3252
    %v3907 = vpack.c.b16 %v3257, %v3255
    %v3908 = vpack.c.b16 %v3258, %v3256
    %v3909 = vpack.c.b16 %v3261, %v3259
    %v3910 = vpack.c.b16 %v3262, %v3260
    %v3911 = vpack.c.b16 %v3265, %v3263
    %v3912 = vpack.c.b16 %v3266, %v3264
    %v3913 = vpack.c.b16 %v3269, %v3267
    %v3914 = vpack.c.b16 %v3270, %v3268
    %v3915 = vpack.c.b16 %v3273, %v3271
    %v3916 = vpack.c.b16 %v3274, %v3272
    %v3917 = vpack.c.b16 %v3277, %v3275
    %v3918 = vpack.c.b16 %v3278, %v3276
    %v3919 = vpack.c.b16 %v3281, %v3279
    %v3920 = vpack.c.b16 %v3282, %v3280
    %v3921 = vpack.c.b16 %v3285, %v3283
    %v3922 = vpack.c.b16 %v3286, %v3284
    %v3923 = vpack.c.b16 %v3289, %v3287
    %v3924 = vpack.c.b16 %v3290, %v3288
    %v3925 = vpack.c.b16 %v3293, %v3291
    %v3926 = vpack.c.b16 %v3294, %v3292
    %v3927 = vpack.c.b16 %v3297, %v3295
    %v3928 = vpack.c.b16 %v3298, %v3296
    %v3929 = vpack.c.b16 %v3301, %v3299
    %v3930 = vpack.c.b16 %v3302, %v3300
    %v3931 = vpack.c.b16 %v3305, %v3303
    %v3932 = vpack.c.b16 %v3306, %v3304
    %v3933 = vpack.c.b16 %v3309, %v3307
    %v3934 = vpack.c.b16 %v3310, %v3308
    %v3935 = vpack.c.b16 %v3313, %v3311
    %v3936 = vpack.c.b16 %v3314, %v3312
    %v3937 = vpack.c.b16 %v3317, %v3315
    %v3938 = vpack.c.b16 %v3318, %v3316
    %v3939 = vpack.c.b16 %v3321, %v3319
    %v3940 = vpack.c.b16 %v3322, %v3320
    %v3941 = vpack.c.b16 %v3325, %v3323
    %v3942 = vpack.c.b16 %v3326, %v3324
    %v3943 = vpack.c.b16 %v3329, %v3327
    %v3944 = vpack.c.b16 %v3330, %v3328
    %v3945 = vpack.c.b16 %v3333, %v3331
    %v3946 = vpack.c.b16 %v3334, %v3332
    %v3947 = vpack.c.b16 %v3337, %v3335
    %v3948 = vpack.c.b16 %v3338, %v3336
    %v3949 = vpack.c.b16 %v3341, %v3339
    %v3950 = vpack.c.b16 %v3342, %v3340
    %v3951 = vpack.c.b16 %v3345, %v3343
    %v3952 = vpack.c.b16 %v3346, %v3344
    %v3953 = vpack.c.b16 %v3349, %v3347
    %v3954 = vpack.c.b16 %v3350, %v3348
    %v3955 = vpack.c.b16 %v3353, %v3351
    %v3956 = vpack.c.b16 %v3354, %v3352
    %v3957 = vpack.c.b16 %v3357, %v3355
    %v3958 = vpack.c.b16 %v3358, %v3356
    %v3959 = vpack.c.b16 %v3361, %v3359
    %v3960 = vpack.c.b16 %v3362, %v3360
    %v3961 = vpack.c.b16 %v3365, %v3363
    %v3962 = vpack.c.b16 %v3366, %v3364
    %v3963 = vpack.c.b16 %v3369, %v3367
    %v3964 = vpack.c.b16 %v3370, %v3368
    %v3965 = vpack.c.b16 %v3373, %v3371
    %v3966 = vpack.c.b16 %v3374, %v3372
    %v3967 = vpack.c.b16 %v3377, %v3375
    %v3968 = vpack.c.b16 %v3378, %v3376
    %v3969 = vpack.c.b16 %v3381, %v3379
    %v3970 = vpack.c.b16 %v3382, %v3380
    %v3971 = vpack.c.b16 %v3385, %v3383
    %v3972 = vpack.c.b16 %v3386, %v3384
    %v3973 = vpack.c.b16 %v3389, %v3387
    %v3974 = vpack.c.b16 %v3390, %v3388
    %v3975 = vpack.c.b16 %v3393, %v3391
    %v3976 = vpack.c.b16 %v3394, %v3392
    %v3977 = vpack.c.b16 %v3397, %v3395
    %v3978 = vpack.c.b16 %v3398, %v3396
    %v3979 = vpack.c.b16 %v3401, %v3399
    %v3980 = vpack.c.b16 %v3402, %v3400
    %v3981 = vpack.c.b16 %v3405, %v3403
    %v3982 = vpack.c.b16 %v3406, %v3404
    %v3983 = vpack.c.b16 %v3409, %v3407
    %v3984 = vpack.c.b16 %v3410, %v3408
    %v3985 = vpack.c.b16 %v3413, %v3411
    %v3986 = vpack.c.b16 %v3414, %v3412
    %v3987 = vpack.c.b16 %v3417, %v3415
    %v3988 = vpack.c.b16 %v3418, %v3416
    %v3989 = vpack.c.b16 %v3421, %v3419
    %v3990 = vpack.c.b16 %v3422, %v3420
    %v3991 = vpack.c.b16 %v3425, %v3423
    %v3992 = vpack.c.b16 %v3426, %v3424
    %v3993 = vpack.c.b16 %v3429, %v3427
    %v3994 = vpack.c.b16 %v3430, %v3428
    %v3995 = vpack.c.b16 %v3433, %v3431
    %v3996 = vpack.c.b16 %v3434, %v3432
    %v3997 = vpack.c.b16 %v3437, %v3435
    %v3998 = vpack.c.b16 %v3438, %v3436
    %v3999 = vpack.c.b16 %v3441, %v3439
    %v4000 = vpack.c.b16 %v3442, %v3440
    %v4001 = vpack.c.b16 %v3445, %v3443
    %v4002 = vpack.c.b16 %v3446, %v3444
    %v4003 = vpack.c.b16 %v3449, %v3447
    %v4004 = vpack.c.b16 %v3450, %v3448
    %v4005 = vpack.c.b16 %v3453, %v3451
    %v4006 = vpack.c.b16 %v3454, %v3452
    %v4007 = vpack.c.b16 %v3457, %v3455
    %v4008 = vpack.c.b16 %v3458, %v3456
    %v4009 = vpack.c.b16 %v3461, %v3459
    %v4010 = vpack.c.b16 %v3462, %v3460
    %v4011 = vpack.c.b16 %v3465, %v3463
    %v4012 = vpack.c.b16 %v3466, %v3464
    %v4013 = vpack.c.b16 %v3469, %v3467
    %v4014 = vpack.c.b16 %v3470, %v3468
    %v4015 = vpack.c.b16 %v3473, %v3471
    %v4016 = vpack.c.b16 %v3474, %v3472
    %v4017 = vpack.c.b16 %v3477, %v3475
    %v4018 = vpack.c.b16 %v3478, %v3476
    %v4019 = vpack.c.b16 %v3481, %v3479
    %v4020 = vpack.c.b16 %v3482, %v3480
    %v4021 = vpack.c.b16 %v3485, %v3483
    %v4022 = vpack.c.b16 %v3486, %v3484
    %v4023 = vpack.c.b16 %v3489, %v3487
    %v4024 = vpack.c.b16 %v3490, %v3488
    %v4025 = vpack.c.b16 %v3493, %v3491
    %v4026 = vpack.c.b16 %v3494, %v3492
    %v4027 = vpack.c.b16 %v3497, %v3495
    %v4028 = vpack.c.b16 %v3498, %v3496
    %v4029 = vpack.c.b16 %v3501, %v3499
    %v4030 = vpack.c.b16 %v3502, %v3500
    %v4031 = vpack.c.b16 %v3505, %v3503
    %v4032 = vpack.c.b16 %v3506, %v3504
    %v4033 = vpack.c.b16 %v3509, %v3507
    %v4034 = vpack.c.b16 %v3510, %v3508
    %v4035 = vpack.c.b16 %v3513, %v3511
    %v4036 = vpack.c.b16 %v3514, %v3512
    %v4037 = vpack.c.b16 %v3517, %v3515
    %v4038 = vpack.c.b16 %v3518, %v3516
    %v4039 = vpack.c.b16 %v3521, %v3519
    %v4040 = vpack.c.b16 %v3522, %v3520
    %v4041 = vpack.c.b16 %v3525, %v3523
    %v4042 = vpack.c.b16 %v3526, %v3524
    %v4043 = vpack.c.b16 %v3529, %v3527
    %v4044 = vpack.c.b16 %v3530, %v3528
    %v4045 = vpack.c.b16 %v3533, %v3531
    %v4046 = vpack.c.b16 %v3534, %v3532
    %4559 = vmatprep.subr.bf16.mxu0 %v3536
    %4560 = vmatpush1.bf16.msra.mxu0 %v3535
    %4561 = vmatprep.subr.bf16.mxu0 %v3538
    %4562 = vmatpush1.bf16.msra.mxu0 %v3537
    %4563 = vmatprep.subr.bf16.mxu0 %v3540
    %4564 = vmatpush1.bf16.msra.mxu0 %v3539
    %4565 = vmatprep.subr.bf16.mxu0 %v3542
    %4566 = vmatpush1.bf16.msra.mxu0 %v3541
    %4567 = vmatprep.subr.bf16.mxu0 %v3544
    %4568 = vmatpush1.bf16.msra.mxu0 %v3543
    %4569 = vmatprep.subr.bf16.mxu0 %v3546
    %4570 = vmatpush1.bf16.msra.mxu0 %v3545
    %4571 = vmatprep.subr.bf16.mxu0 %v3548
    %4572 = vmatpush1.bf16.msra.mxu0 %v3547
    %4573 = vmatprep.subr.bf16.mxu0 %v3550
    %4574 = vmatpush1.bf16.msra.mxu0 %v3549
    %4575 = vmatprep.subr.bf16.mxu0 %v3552
    %4576 = vmatpush1.bf16.msra.mxu0 %v3551
    %4577 = vmatprep.subr.bf16.mxu0 %v3554
    %4578 = vmatpush1.bf16.msra.mxu0 %v3553
    %4579 = vmatprep.subr.bf16.mxu0 %v3556
    %4580 = vmatpush1.bf16.msra.mxu0 %v3555
    %4581 = vmatprep.subr.bf16.mxu0 %v3558
    %4582 = vmatpush1.bf16.msra.mxu0 %v3557
    %4583 = vmatprep.subr.bf16.mxu0 %v3560
    %4584 = vmatpush1.bf16.msra.mxu0 %v3559
    %4585 = vmatprep.subr.bf16.mxu0 %v3562
    %4586 = vmatpush1.bf16.msra.mxu0 %v3561
    %4587 = vmatprep.subr.bf16.mxu0 %v3564
    %4588 = vmatpush1.bf16.msra.mxu0 %v3563
    %4589 = vmatprep.subr.bf16.mxu0 %v3566
    %4590 = vmatpush1.bf16.msra.mxu0 %v3565
    %4591 = vmatprep.mubr.bf16.mxu0 %v1444
    %4592 = vmatmul.mubr.bf16.gmra.mrb[0].mxu0 %v1443
    %v4593 = vpop.f32.mrb[0].mxu0
    %v4594 = vadd.f32 %v1992, %v4593
    %v4595 = vpop.f32.mrb[0].mxu0
    %v4596 = vadd.f32 %v1996, %v4595
    %v4597 = vpop.f32.mrb[0].mxu0
    %v4598 = vpop.f32.mrb[0].mxu0
    %4599 = vdwg.mxu0
    %4600 = vmatprep.subr.bf16.mxu0 %v3568
    %4601 = vmatpush1.bf16.msra.mxu0 %v3567
    %4602 = vmatprep.subr.bf16.mxu0 %v3570
    %4603 = vmatpush1.bf16.msra.mxu0 %v3569
    %4604 = vmatprep.subr.bf16.mxu0 %v3572
    %4605 = vmatpush1.bf16.msra.mxu0 %v3571
    %4606 = vmatprep.subr.bf16.mxu0 %v3574
    %4607 = vmatpush1.bf16.msra.mxu0 %v3573
    %4608 = vmatprep.subr.bf16.mxu0 %v3576
    %4609 = vmatpush1.bf16.msra.mxu0 %v3575
    %4610 = vmatprep.subr.bf16.mxu0 %v3578
    %4611 = vmatpush1.bf16.msra.mxu0 %v3577
    %4612 = vmatprep.subr.bf16.mxu0 %v3580
    %4613 = vmatpush1.bf16.msra.mxu0 %v3579
    %4614 = vmatprep.subr.bf16.mxu0 %v3582
    %4615 = vmatpush1.bf16.msra.mxu0 %v3581
    %4616 = vmatprep.subr.bf16.mxu0 %v3584
    %4617 = vmatpush1.bf16.msra.mxu0 %v3583
    %4618 = vmatprep.subr.bf16.mxu0 %v3586
    %4619 = vmatpush1.bf16.msra.mxu0 %v3585
    %4620 = vmatprep.subr.bf16.mxu0 %v3588
    %4621 = vmatpush1.bf16.msra.mxu0 %v3587
    %4622 = vmatprep.subr.bf16.mxu0 %v3590
    %4623 = vmatpush1.bf16.msra.mxu0 %v3589
    %4624 = vmatprep.subr.bf16.mxu0 %v3592
    %4625 = vmatpush1.bf16.msra.mxu0 %v3591
    %4626 = vmatprep.subr.bf16.mxu0 %v3594
    %4627 = vmatpush1.bf16.msra.mxu0 %v3593
    %4628 = vmatprep.subr.bf16.mxu0 %v3596
    %4629 = vmatpush1.bf16.msra.mxu0 %v3595
    %4630 = vmatprep.subr.bf16.mxu0 %v3598
    %4631 = vmatpush1.bf16.msra.mxu0 %v3597
    %4632 = vmatprep.mubr.bf16.mxu0 %v1446
    %4633 = vmatmul.mubr.bf16.gmra.mrb[0].mxu0 %v1445
    %v4634 = vpop.f32.mrb[0].mxu0
    %v4635 = vadd.f32 %v4594, %v4634
    %v4636 = vpop.f32.mrb[0].mxu0
    %v4637 = vadd.f32 %v4596, %v4636
    %v4638 = vpop.f32.mrb[0].mxu0
    %v4639 = vpop.f32.mrb[0].mxu0
    %4640 = vdwg.mxu0
    %4641 = vmatprep.subr.bf16.mxu0 %v3600
    %4642 = vmatpush1.bf16.msra.mxu0 %v3599
    %4643 = vmatprep.subr.bf16.mxu0 %v3602
    %4644 = vmatpush1.bf16.msra.mxu0 %v3601
    %4645 = vmatprep.subr.bf16.mxu0 %v3604
    %4646 = vmatpush1.bf16.msra.mxu0 %v3603
    %4647 = vmatprep.subr.bf16.mxu0 %v3606
    %4648 = vmatpush1.bf16.msra.mxu0 %v3605
    %4649 = vmatprep.subr.bf16.mxu0 %v3608
    %4650 = vmatpush1.bf16.msra.mxu0 %v3607
    %4651 = vmatprep.subr.bf16.mxu0 %v3610
    %4652 = vmatpush1.bf16.msra.mxu0 %v3609
    %4653 = vmatprep.subr.bf16.mxu0 %v3612
    %4654 = vmatpush1.bf16.msra.mxu0 %v3611
    %4655 = vmatprep.subr.bf16.mxu0 %v3614
    %4656 = vmatpush1.bf16.msra.mxu0 %v3613
    %4657 = vmatprep.subr.bf16.mxu0 %v3616
    %4658 = vmatpush1.bf16.msra.mxu0 %v3615
    %4659 = vmatprep.subr.bf16.mxu0 %v3618
    %4660 = vmatpush1.bf16.msra.mxu0 %v3617
    %4661 = vmatprep.subr.bf16.mxu0 %v3620
    %4662 = vmatpush1.bf16.msra.mxu0 %v3619
    %4663 = vmatprep.subr.bf16.mxu0 %v3622
    %4664 = vmatpush1.bf16.msra.mxu0 %v3621
    %4665 = vmatprep.subr.bf16.mxu0 %v3624
    %4666 = vmatpush1.bf16.msra.mxu0 %v3623
    %4667 = vmatprep.subr.bf16.mxu0 %v3626
    %4668 = vmatpush1.bf16.msra.mxu0 %v3625
    %4669 = vmatprep.subr.bf16.mxu0 %v3628
    %4670 = vmatpush1.bf16.msra.mxu0 %v3627
    %4671 = vmatprep.subr.bf16.mxu0 %v3630
    %4672 = vmatpush1.bf16.msra.mxu0 %v3629
    %4673 = vmatprep.mubr.bf16.mxu0 %v1448
    %4674 = vmatmul.mubr.bf16.gmra.mrb[0].mxu0 %v1447
    %v4675 = vpop.f32.mrb[0].mxu0
    %v4676 = vadd.f32 %v4635, %v4675
    %v4677 = vpop.f32.mrb[0].mxu0
    %v4678 = vadd.f32 %v4637, %v4677
    %v4679 = vpop.f32.mrb[0].mxu0
    %v4680 = vpop.f32.mrb[0].mxu0
    %4681 = vdwg.mxu0
    %4682 = vmatprep.subr.bf16.mxu0 %v3632
    %4683 = vmatpush1.bf16.msra.mxu0 %v3631
    %4684 = vmatprep.subr.bf16.mxu0 %v3634
    %4685 = vmatpush1.bf16.msra.mxu0 %v3633
    %4686 = vmatprep.subr.bf16.mxu0 %v3636
    %4687 = vmatpush1.bf16.msra.mxu0 %v3635
    %4688 = vmatprep.subr.bf16.mxu0 %v3638
    %4689 = vmatpush1.bf16.msra.mxu0 %v3637
    %4690 = vmatprep.subr.bf16.mxu0 %v3640
    %4691 = vmatpush1.bf16.msra.mxu0 %v3639
    %4692 = vmatprep.subr.bf16.mxu0 %v3642
    %4693 = vmatpush1.bf16.msra.mxu0 %v3641
    %4694 = vmatprep.subr.bf16.mxu0 %v3644
    %4695 = vmatpush1.bf16.msra.mxu0 %v3643
    %4696 = vmatprep.subr.bf16.mxu0 %v3646
    %4697 = vmatpush1.bf16.msra.mxu0 %v3645
    %4698 = vmatprep.subr.bf16.mxu0 %v3648
    %4699 = vmatpush1.bf16.msra.mxu0 %v3647
    %4700 = vmatprep.subr.bf16.mxu0 %v3650
    %4701 = vmatpush1.bf16.msra.mxu0 %v3649
    %4702 = vmatprep.subr.bf16.mxu0 %v3652
    %4703 = vmatpush1.bf16.msra.mxu0 %v3651
    %4704 = vmatprep.subr.bf16.mxu0 %v3654
    %4705 = vmatpush1.bf16.msra.mxu0 %v3653
    %4706 = vmatprep.subr.bf16.mxu0 %v3656
    %4707 = vmatpush1.bf16.msra.mxu0 %v3655
    %4708 = vmatprep.subr.bf16.mxu0 %v3658
    %4709 = vmatpush1.bf16.msra.mxu0 %v3657
    %4710 = vmatprep.subr.bf16.mxu0 %v3660
    %4711 = vmatpush1.bf16.msra.mxu0 %v3659
    %4712 = vmatprep.subr.bf16.mxu0 %v3662
    %4713 = vmatpush1.bf16.msra.mxu0 %v3661
    %4714 = vmatprep.mubr.bf16.mxu0 %v1450
    %4715 = vmatmul.mubr.bf16.gmra.mrb[0].mxu0 %v1449
    %v4716 = vpop.f32.mrb[0].mxu0
    %v4717 = vadd.f32 %v4676, %v4716
    %v4718 = vpop.f32.mrb[0].mxu0
    %v4719 = vadd.f32 %v4678, %v4718
    %v4720 = vpop.f32.mrb[0].mxu0
    %v4721 = vpop.f32.mrb[0].mxu0
    %4722 = vdwg.mxu0
    %4723 = vmatprep.subr.bf16.mxu0 %v3664
    %4724 = vmatpush1.bf16.msra.mxu0 %v3663
    %4725 = vmatprep.subr.bf16.mxu0 %v3666
    %4726 = vmatpush1.bf16.msra.mxu0 %v3665
    %4727 = vmatprep.subr.bf16.mxu0 %v3668
    %4728 = vmatpush1.bf16.msra.mxu0 %v3667
    %4729 = vmatprep.subr.bf16.mxu0 %v3670
    %4730 = vmatpush1.bf16.msra.mxu0 %v3669
    %4731 = vmatprep.subr.bf16.mxu0 %v3672
    %4732 = vmatpush1.bf16.msra.mxu0 %v3671
    %4733 = vmatprep.subr.bf16.mxu0 %v3674
    %4734 = vmatpush1.bf16.msra.mxu0 %v3673
    %4735 = vmatprep.subr.bf16.mxu0 %v3676
    %4736 = vmatpush1.bf16.msra.mxu0 %v3675
    %4737 = vmatprep.subr.bf16.mxu0 %v3678
    %4738 = vmatpush1.bf16.msra.mxu0 %v3677
    %4739 = vmatprep.subr.bf16.mxu0 %v3680
    %4740 = vmatpush1.bf16.msra.mxu0 %v3679
    %4741 = vmatprep.subr.bf16.mxu0 %v3682
    %4742 = vmatpush1.bf16.msra.mxu0 %v3681
    %4743 = vmatprep.subr.bf16.mxu0 %v3684
    %4744 = vmatpush1.bf16.msra.mxu0 %v3683
    %4745 = vmatprep.subr.bf16.mxu0 %v3686
    %4746 = vmatpush1.bf16.msra.mxu0 %v3685
    %4747 = vmatprep.subr.bf16.mxu0 %v3688
    %4748 = vmatpush1.bf16.msra.mxu0 %v3687
    %4749 = vmatprep.subr.bf16.mxu0 %v3690
    %4750 = vmatpush1.bf16.msra.mxu0 %v3689
    %4751 = vmatprep.subr.bf16.mxu0 %v3692
    %4752 = vmatpush1.bf16.msra.mxu0 %v3691
    %4753 = vmatprep.subr.bf16.mxu0 %v3694
    %4754 = vmatpush1.bf16.msra.mxu0 %v3693
    %4755 = vmatprep.mubr.bf16.mxu0 %v1452
    %4756 = vmatmul.mubr.bf16.gmra.mrb[0].mxu0 %v1451
    %v4757 = vpop.f32.mrb[0].mxu0
    %v4758 = vadd.f32 %v4717, %v4757
    %v4759 = vpop.f32.mrb[0].mxu0
    %v4760 = vadd.f32 %v4719, %v4759
    %v4761 = vpop.f32.mrb[0].mxu0
    %v4762 = vpop.f32.mrb[0].mxu0
    %4763 = vdwg.mxu0
    %4764 = vmatprep.subr.bf16.mxu0 %v3696
    %4765 = vmatpush1.bf16.msra.mxu0 %v3695
    %4766 = vmatprep.subr.bf16.mxu0 %v3698
    %4767 = vmatpush1.bf16.msra.mxu0 %v3697
    %4768 = vmatprep.subr.bf16.mxu0 %v3700
    %4769 = vmatpush1.bf16.msra.mxu0 %v3699
    %4770 = vmatprep.subr.bf16.mxu0 %v3702
    %4771 = vmatpush1.bf16.msra.mxu0 %v3701
    %4772 = vmatprep.subr.bf16.mxu0 %v3704
    %4773 = vmatpush1.bf16.msra.mxu0 %v3703
    %4774 = vmatprep.subr.bf16.mxu0 %v3706
    %4775 = vmatpush1.bf16.msra.mxu0 %v3705
    %4776 = vmatprep.subr.bf16.mxu0 %v3708
    %4777 = vmatpush1.bf16.msra.mxu0 %v3707
    %4778 = vmatprep.subr.bf16.mxu0 %v3710
    %4779 = vmatpush1.bf16.msra.mxu0 %v3709
    %4780 = vmatprep.subr.bf16.mxu0 %v3712
    %4781 = vmatpush1.bf16.msra.mxu0 %v3711
    %4782 = vmatprep.subr.bf16.mxu0 %v3714
    %4783 = vmatpush1.bf16.msra.mxu0 %v3713
    %4784 = vmatprep.subr.bf16.mxu0 %v3716
    %4785 = vmatpush1.bf16.msra.mxu0 %v3715
    %4786 = vmatprep.subr.bf16.mxu0 %v3718
    %4787 = vmatpush1.bf16.msra.mxu0 %v3717
    %4788 = vmatprep.subr.bf16.mxu0 %v3720
    %4789 = vmatpush1.bf16.msra.mxu0 %v3719
    %4790 = vmatprep.subr.bf16.mxu0 %v3722
    %4791 = vmatpush1.bf16.msra.mxu0 %v3721
    %4792 = vmatprep.subr.bf16.mxu0 %v3724
    %4793 = vmatpush1.bf16.msra.mxu0 %v3723
    %4794 = vmatprep.subr.bf16.mxu0 %v3726
    %4795 = vmatpush1.bf16.msra.mxu0 %v3725
    %4796 = vmatprep.mubr.bf16.mxu0 %v1454
    %4797 = vmatmul.mubr.bf16.gmra.mrb[0].mxu0 %v1453
    %v4798 = vpop.f32.mrb[0].mxu0
    %v4799 = vadd.f32 %v4758, %v4798
    %v4800 = vpop.f32.mrb[0].mxu0
    %v4801 = vadd.f32 %v4760, %v4800
    %v4802 = vpop.f32.mrb[0].mxu0
    %v4803 = vpop.f32.mrb[0].mxu0
    %4804 = vdwg.mxu0
    %4805 = vmatprep.subr.bf16.mxu0 %v3728
    %4806 = vmatpush1.bf16.msra.mxu0 %v3727
    %4807 = vmatprep.subr.bf16.mxu0 %v3730
    %4808 = vmatpush1.bf16.msra.mxu0 %v3729
    %4809 = vmatprep.subr.bf16.mxu0 %v3732
    %4810 = vmatpush1.bf16.msra.mxu0 %v3731
    %4811 = vmatprep.subr.bf16.mxu0 %v3734
    %4812 = vmatpush1.bf16.msra.mxu0 %v3733
    %4813 = vmatprep.subr.bf16.mxu0 %v3736
    %4814 = vmatpush1.bf16.msra.mxu0 %v3735
    %4815 = vmatprep.subr.bf16.mxu0 %v3738
    %4816 = vmatpush1.bf16.msra.mxu0 %v3737
    %4817 = vmatprep.subr.bf16.mxu0 %v3740
    %4818 = vmatpush1.bf16.msra.mxu0 %v3739
    %4819 = vmatprep.subr.bf16.mxu0 %v3742
    %4820 = vmatpush1.bf16.msra.mxu0 %v3741
    %4821 = vmatprep.subr.bf16.mxu0 %v3744
    %4822 = vmatpush1.bf16.msra.mxu0 %v3743
    %4823 = vmatprep.subr.bf16.mxu0 %v3746
    %4824 = vmatpush1.bf16.msra.mxu0 %v3745
    %4825 = vmatprep.subr.bf16.mxu0 %v3748
    %4826 = vmatpush1.bf16.msra.mxu0 %v3747
    %4827 = vmatprep.subr.bf16.mxu0 %v3750
    %4828 = vmatpush1.bf16.msra.mxu0 %v3749
    %4829 = vmatprep.subr.bf16.mxu0 %v3752
    %4830 = vmatpush1.bf16.msra.mxu0 %v3751
    %4831 = vmatprep.subr.bf16.mxu0 %v3754
    %4832 = vmatpush1.bf16.msra.mxu0 %v3753
    %4833 = vmatprep.subr.bf16.mxu0 %v3756
    %4834 = vmatpush1.bf16.msra.mxu0 %v3755
    %4835 = vmatprep.subr.bf16.mxu0 %v3758
    %4836 = vmatpush1.bf16.msra.mxu0 %v3757
    %4837 = vmatprep.mubr.bf16.mxu0 %v1456
    %4838 = vmatmul.mubr.bf16.gmra.mrb[0].mxu0 %v1455
    %v4839 = vpop.f32.mrb[0].mxu0
    %v4840 = vadd.f32 %v4799, %v4839
    %v4841 = vpop.f32.mrb[0].mxu0
    %v4842 = vadd.f32 %v4801, %v4841
    %v4843 = vpop.f32.mrb[0].mxu0
    %v4844 = vpop.f32.mrb[0].mxu0
    %4845 = vdwg.mxu0
    %4846 = vmatprep.subr.bf16.mxu0 %v3760
    %4847 = vmatpush1.bf16.msra.mxu0 %v3759
    %4848 = vmatprep.subr.bf16.mxu0 %v3762
    %4849 = vmatpush1.bf16.msra.mxu0 %v3761
    %4850 = vmatprep.subr.bf16.mxu0 %v3764
    %4851 = vmatpush1.bf16.msra.mxu0 %v3763
    %4852 = vmatprep.subr.bf16.mxu0 %v3766
    %4853 = vmatpush1.bf16.msra.mxu0 %v3765
    %4854 = vmatprep.subr.bf16.mxu0 %v3768
    %4855 = vmatpush1.bf16.msra.mxu0 %v3767
    %4856 = vmatprep.subr.bf16.mxu0 %v3770
    %4857 = vmatpush1.bf16.msra.mxu0 %v3769
    %4858 = vmatprep.subr.bf16.mxu0 %v3772
    %4859 = vmatpush1.bf16.msra.mxu0 %v3771
    %4860 = vmatprep.subr.bf16.mxu0 %v3774
    %4861 = vmatpush1.bf16.msra.mxu0 %v3773
    %4862 = vmatprep.subr.bf16.mxu0 %v3776
    %4863 = vmatpush1.bf16.msra.mxu0 %v3775
    %4864 = vmatprep.subr.bf16.mxu0 %v3778
    %4865 = vmatpush1.bf16.msra.mxu0 %v3777
    %4866 = vmatprep.subr.bf16.mxu0 %v3780
    %4867 = vmatpush1.bf16.msra.mxu0 %v3779
    %4868 = vmatprep.subr.bf16.mxu0 %v3782
    %4869 = vmatpush1.bf16.msra.mxu0 %v3781
    %4870 = vmatprep.subr.bf16.mxu0 %v3784
    %4871 = vmatpush1.bf16.msra.mxu0 %v3783
    %4872 = vmatprep.subr.bf16.mxu0 %v3786
    %4873 = vmatpush1.bf16.msra.mxu0 %v3785
    %4874 = vmatprep.subr.bf16.mxu0 %v3788
    %4875 = vmatpush1.bf16.msra.mxu0 %v3787
    %4876 = vmatprep.subr.bf16.mxu0 %v3790
    %4877 = vmatpush1.bf16.msra.mxu0 %v3789
    %4878 = vmatprep.mubr.bf16.mxu0 %v1458
    %4879 = vmatmul.mubr.bf16.gmra.mrb[0].mxu0 %v1457
    %v4880 = vpop.f32.mrb[0].mxu0
    %v4881 = vadd.f32 %v4840, %v4880
    %v4882 = vpop.f32.mrb[0].mxu0
    %v4883 = vadd.f32 %v4842, %v4882
    %v4884 = vpop.f32.mrb[0].mxu0
    %v4885 = vpop.f32.mrb[0].mxu0
    %4886 = vdwg.mxu0
    %4887 = vmatprep.subr.bf16.mxu0 %v3792
    %4888 = vmatpush1.bf16.msra.mxu0 %v3791
    %4889 = vmatprep.subr.bf16.mxu0 %v3794
    %4890 = vmatpush1.bf16.msra.mxu0 %v3793
    %4891 = vmatprep.subr.bf16.mxu0 %v3796
    %4892 = vmatpush1.bf16.msra.mxu0 %v3795
    %4893 = vmatprep.subr.bf16.mxu0 %v3798
    %4894 = vmatpush1.bf16.msra.mxu0 %v3797
    %4895 = vmatprep.subr.bf16.mxu0 %v3800
    %4896 = vmatpush1.bf16.msra.mxu0 %v3799
    %4897 = vmatprep.subr.bf16.mxu0 %v3802
    %4898 = vmatpush1.bf16.msra.mxu0 %v3801
    %4899 = vmatprep.subr.bf16.mxu0 %v3804
    %4900 = vmatpush1.bf16.msra.mxu0 %v3803
    %4901 = vmatprep.subr.bf16.mxu0 %v3806
    %4902 = vmatpush1.bf16.msra.mxu0 %v3805
    %4903 = vmatprep.subr.bf16.mxu0 %v3808
    %4904 = vmatpush1.bf16.msra.mxu0 %v3807
    %4905 = vmatprep.subr.bf16.mxu0 %v3810
    %4906 = vmatpush1.bf16.msra.mxu0 %v3809
    %4907 = vmatprep.subr.bf16.mxu0 %v3812
    %4908 = vmatpush1.bf16.msra.mxu0 %v3811
    %4909 = vmatprep.subr.bf16.mxu0 %v3814
    %4910 = vmatpush1.bf16.msra.mxu0 %v3813
    %4911 = vmatprep.subr.bf16.mxu0 %v3816
    %4912 = vmatpush1.bf16.msra.mxu0 %v3815
    %4913 = vmatprep.subr.bf16.mxu0 %v3818
    %4914 = vmatpush1.bf16.msra.mxu0 %v3817
    %4915 = vmatprep.subr.bf16.mxu0 %v3820
    %4916 = vmatpush1.bf16.msra.mxu0 %v3819
    %4917 = vmatprep.subr.bf16.mxu0 %v3822
    %4918 = vmatpush1.bf16.msra.mxu0 %v3821
    %4919 = vmatprep.mubr.bf16.mxu0 %v1460
    %4920 = vmatmul.mubr.bf16.gmra.mrb[0].mxu0 %v1459
    %v4921 = vpop.f32.mrb[0].mxu0
    %v4922 = vadd.f32 %v4881, %v4921
    %v4923 = vpop.f32.mrb[0].mxu0
    %v4924 = vadd.f32 %v4883, %v4923
    %v4925 = vpop.f32.mrb[0].mxu0
    %v4926 = vpop.f32.mrb[0].mxu0
    %4927 = vdwg.mxu0
    %4928 = vmatprep.subr.bf16.mxu0 %v3824
    %4929 = vmatpush1.bf16.msra.mxu0 %v3823
    %4930 = vmatprep.subr.bf16.mxu0 %v3826
    %4931 = vmatpush1.bf16.msra.mxu0 %v3825
    %4932 = vmatprep.subr.bf16.mxu0 %v3828
    %4933 = vmatpush1.bf16.msra.mxu0 %v3827
    %4934 = vmatprep.subr.bf16.mxu0 %v3830
    %4935 = vmatpush1.bf16.msra.mxu0 %v3829
    %4936 = vmatprep.subr.bf16.mxu0 %v3832
    %4937 = vmatpush1.bf16.msra.mxu0 %v3831
    %4938 = vmatprep.subr.bf16.mxu0 %v3834
    %4939 = vmatpush1.bf16.msra.mxu0 %v3833
    %4940 = vmatprep.subr.bf16.mxu0 %v3836
    %4941 = vmatpush1.bf16.msra.mxu0 %v3835
    %4942 = vmatprep.subr.bf16.mxu0 %v3838
    %4943 = vmatpush1.bf16.msra.mxu0 %v3837
    %4944 = vmatprep.subr.bf16.mxu0 %v3840
    %4945 = vmatpush1.bf16.msra.mxu0 %v3839
    %4946 = vmatprep.subr.bf16.mxu0 %v3842
    %4947 = vmatpush1.bf16.msra.mxu0 %v3841
    %4948 = vmatprep.subr.bf16.mxu0 %v3844
    %4949 = vmatpush1.bf16.msra.mxu0 %v3843
    %4950 = vmatprep.subr.bf16.mxu0 %v3846
    %4951 = vmatpush1.bf16.msra.mxu0 %v3845
    %4952 = vmatprep.subr.bf16.mxu0 %v3848
    %4953 = vmatpush1.bf16.msra.mxu0 %v3847
    %4954 = vmatprep.subr.bf16.mxu0 %v3850
    %4955 = vmatpush1.bf16.msra.mxu0 %v3849
    %4956 = vmatprep.subr.bf16.mxu0 %v3852
    %4957 = vmatpush1.bf16.msra.mxu0 %v3851
    %4958 = vmatprep.subr.bf16.mxu0 %v3854
    %4959 = vmatpush1.bf16.msra.mxu0 %v3853
    %4960 = vmatprep.mubr.bf16.mxu0 %v1462
    %4961 = vmatmul.mubr.bf16.gmra.mrb[0].mxu0 %v1461
    %v4962 = vpop.f32.mrb[0].mxu0
    %v4963 = vadd.f32 %v4922, %v4962
    %v4964 = vpop.f32.mrb[0].mxu0
    %v4965 = vadd.f32 %v4924, %v4964
    %v4966 = vpop.f32.mrb[0].mxu0
    %v4967 = vpop.f32.mrb[0].mxu0
    %4968 = vdwg.mxu0
    %4969 = vmatprep.subr.bf16.mxu0 %v3856
    %4970 = vmatpush1.bf16.msra.mxu0 %v3855
    %4971 = vmatprep.subr.bf16.mxu0 %v3858
    %4972 = vmatpush1.bf16.msra.mxu0 %v3857
    %4973 = vmatprep.subr.bf16.mxu0 %v3860
    %4974 = vmatpush1.bf16.msra.mxu0 %v3859
    %4975 = vmatprep.subr.bf16.mxu0 %v3862
    %4976 = vmatpush1.bf16.msra.mxu0 %v3861
    %4977 = vmatprep.subr.bf16.mxu0 %v3864
    %4978 = vmatpush1.bf16.msra.mxu0 %v3863
    %4979 = vmatprep.subr.bf16.mxu0 %v3866
    %4980 = vmatpush1.bf16.msra.mxu0 %v3865
    %4981 = vmatprep.subr.bf16.mxu0 %v3868
    %4982 = vmatpush1.bf16.msra.mxu0 %v3867
    %4983 = vmatprep.subr.bf16.mxu0 %v3870
    %4984 = vmatpush1.bf16.msra.mxu0 %v3869
    %4985 = vmatprep.subr.bf16.mxu0 %v3872
    %4986 = vmatpush1.bf16.msra.mxu0 %v3871
    %4987 = vmatprep.subr.bf16.mxu0 %v3874
    %4988 = vmatpush1.bf16.msra.mxu0 %v3873
    %4989 = vmatprep.subr.bf16.mxu0 %v3876
    %4990 = vmatpush1.bf16.msra.mxu0 %v3875
    %4991 = vmatprep.subr.bf16.mxu0 %v3878
    %4992 = vmatpush1.bf16.msra.mxu0 %v3877
    %4993 = vmatprep.subr.bf16.mxu0 %v3880
    %4994 = vmatpush1.bf16.msra.mxu0 %v3879
    %4995 = vmatprep.subr.bf16.mxu0 %v3882
    %4996 = vmatpush1.bf16.msra.mxu0 %v3881
    %4997 = vmatprep.subr.bf16.mxu0 %v3884
    %4998 = vmatpush1.bf16.msra.mxu0 %v3883
    %4999 = vmatprep.subr.bf16.mxu0 %v3886
    %5000 = vmatpush1.bf16.msra.mxu0 %v3885
    %5001 = vmatprep.mubr.bf16.mxu0 %v1464
    %5002 = vmatmul.mubr.bf16.gmra.mrb[0].mxu0 %v1463
    %v5003 = vpop.f32.mrb[0].mxu0
    %v5004 = vadd.f32 %v4963, %v5003
    %v5005 = vpop.f32.mrb[0].mxu0
    %v5006 = vadd.f32 %v4965, %v5005
    %v5007 = vpop.f32.mrb[0].mxu0
    %v5008 = vpop.f32.mrb[0].mxu0
    %5009 = vdwg.mxu0
    %5010 = vmatprep.subr.bf16.mxu0 %v3888
    %5011 = vmatpush1.bf16.msra.mxu0 %v3887
    %5012 = vmatprep.subr.bf16.mxu0 %v3890
    %5013 = vmatpush1.bf16.msra.mxu0 %v3889
    %5014 = vmatprep.subr.bf16.mxu0 %v3892
    %5015 = vmatpush1.bf16.msra.mxu0 %v3891
    %5016 = vmatprep.subr.bf16.mxu0 %v3894
    %5017 = vmatpush1.bf16.msra.mxu0 %v3893
    %5018 = vmatprep.subr.bf16.mxu0 %v3896
    %5019 = vmatpush1.bf16.msra.mxu0 %v3895
    %5020 = vmatprep.subr.bf16.mxu0 %v3898
    %5021 = vmatpush1.bf16.msra.mxu0 %v3897
    %5022 = vmatprep.subr.bf16.mxu0 %v3900
    %5023 = vmatpush1.bf16.msra.mxu0 %v3899
    %5024 = vmatprep.subr.bf16.mxu0 %v3902
    %5025 = vmatpush1.bf16.msra.mxu0 %v3901
    %5026 = vmatprep.subr.bf16.mxu0 %v3904
    %5027 = vmatpush1.bf16.msra.mxu0 %v3903
    %5028 = vmatprep.subr.bf16.mxu0 %v3906
    %5029 = vmatpush1.bf16.msra.mxu0 %v3905
    %5030 = vmatprep.subr.bf16.mxu0 %v3908
    %5031 = vmatpush1.bf16.msra.mxu0 %v3907
    %5032 = vmatprep.subr.bf16.mxu0 %v3910
    %5033 = vmatpush1.bf16.msra.mxu0 %v3909
    %5034 = vmatprep.subr.bf16.mxu0 %v3912
    %5035 = vmatpush1.bf16.msra.mxu0 %v3911
    %5036 = vmatprep.subr.bf16.mxu0 %v3914
    %5037 = vmatpush1.bf16.msra.mxu0 %v3913
    %5038 = vmatprep.subr.bf16.mxu0 %v3916
    %5039 = vmatpush1.bf16.msra.mxu0 %v3915
    %5040 = vmatprep.subr.bf16.mxu0 %v3918
    %5041 = vmatpush1.bf16.msra.mxu0 %v3917
    %5042 = vmatprep.mubr.bf16.mxu0 %v1466
    %5043 = vmatmul.mubr.bf16.gmra.mrb[0].mxu0 %v1465
    %v5044 = vpop.f32.mrb[0].mxu0
    %v5045 = vadd.f32 %v5004, %v5044
    %v5046 = vpop.f32.mrb[0].mxu0
    %v5047 = vadd.f32 %v5006, %v5046
    %v5048 = vpop.f32.mrb[0].mxu0
    %v5049 = vpop.f32.mrb[0].mxu0
    %5050 = vdwg.mxu0
    %5051 = vmatprep.subr.bf16.mxu0 %v3920
    %5052 = vmatpush1.bf16.msra.mxu0 %v3919
    %5053 = vmatprep.subr.bf16.mxu0 %v3922
    %5054 = vmatpush1.bf16.msra.mxu0 %v3921
    %5055 = vmatprep.subr.bf16.mxu0 %v3924
    %5056 = vmatpush1.bf16.msra.mxu0 %v3923
    %5057 = vmatprep.subr.bf16.mxu0 %v3926
    %5058 = vmatpush1.bf16.msra.mxu0 %v3925
    %5059 = vmatprep.subr.bf16.mxu0 %v3928
    %5060 = vmatpush1.bf16.msra.mxu0 %v3927
    %5061 = vmatprep.subr.bf16.mxu0 %v3930
    %5062 = vmatpush1.bf16.msra.mxu0 %v3929
    %5063 = vmatprep.subr.bf16.mxu0 %v3932
    %5064 = vmatpush1.bf16.msra.mxu0 %v3931
    %5065 = vmatprep.subr.bf16.mxu0 %v3934
    %5066 = vmatpush1.bf16.msra.mxu0 %v3933
    %5067 = vmatprep.subr.bf16.mxu0 %v3936
    %5068 = vmatpush1.bf16.msra.mxu0 %v3935
    %5069 = vmatprep.subr.bf16.mxu0 %v3938
    %5070 = vmatpush1.bf16.msra.mxu0 %v3937
    %5071 = vmatprep.subr.bf16.mxu0 %v3940
    %5072 = vmatpush1.bf16.msra.mxu0 %v3939
    %5073 = vmatprep.subr.bf16.mxu0 %v3942
    %5074 = vmatpush1.bf16.msra.mxu0 %v3941
    %5075 = vmatprep.subr.bf16.mxu0 %v3944
    %5076 = vmatpush1.bf16.msra.mxu0 %v3943
    %5077 = vmatprep.subr.bf16.mxu0 %v3946
    %5078 = vmatpush1.bf16.msra.mxu0 %v3945
    %5079 = vmatprep.subr.bf16.mxu0 %v3948
    %5080 = vmatpush1.bf16.msra.mxu0 %v3947
    %5081 = vmatprep.subr.bf16.mxu0 %v3950
    %5082 = vmatpush1.bf16.msra.mxu0 %v3949
    %5083 = vmatprep.mubr.bf16.mxu0 %v1468
    %5084 = vmatmul.mubr.bf16.gmra.mrb[0].mxu0 %v1467
    %v5085 = vpop.f32.mrb[0].mxu0
    %v5086 = vadd.f32 %v5045, %v5085
    %v5087 = vpop.f32.mrb[0].mxu0
    %v5088 = vadd.f32 %v5047, %v5087
    %v5089 = vpop.f32.mrb[0].mxu0
    %v5090 = vpop.f32.mrb[0].mxu0
    %5091 = vdwg.mxu0
    %5092 = vmatprep.subr.bf16.mxu0 %v3952
    %5093 = vmatpush1.bf16.msra.mxu0 %v3951
    %5094 = vmatprep.subr.bf16.mxu0 %v3954
    %5095 = vmatpush1.bf16.msra.mxu0 %v3953
    %5096 = vmatprep.subr.bf16.mxu0 %v3956
    %5097 = vmatpush1.bf16.msra.mxu0 %v3955
    %5098 = vmatprep.subr.bf16.mxu0 %v3958
    %5099 = vmatpush1.bf16.msra.mxu0 %v3957
    %5100 = vmatprep.subr.bf16.mxu0 %v3960
    %5101 = vmatpush1.bf16.msra.mxu0 %v3959
    %5102 = vmatprep.subr.bf16.mxu0 %v3962
    %5103 = vmatpush1.bf16.msra.mxu0 %v3961
    %5104 = vmatprep.subr.bf16.mxu0 %v3964
    %5105 = vmatpush1.bf16.msra.mxu0 %v3963
    %5106 = vmatprep.subr.bf16.mxu0 %v3966
    %5107 = vmatpush1.bf16.msra.mxu0 %v3965
    %5108 = vmatprep.subr.bf16.mxu0 %v3968
    %5109 = vmatpush1.bf16.msra.mxu0 %v3967
    %5110 = vmatprep.subr.bf16.mxu0 %v3970
    %5111 = vmatpush1.bf16.msra.mxu0 %v3969
    %5112 = vmatprep.subr.bf16.mxu0 %v3972
    %5113 = vmatpush1.bf16.msra.mxu0 %v3971
    %5114 = vmatprep.subr.bf16.mxu0 %v3974
    %5115 = vmatpush1.bf16.msra.mxu0 %v3973
    %5116 = vmatprep.subr.bf16.mxu0 %v3976
    %5117 = vmatpush1.bf16.msra.mxu0 %v3975
    %5118 = vmatprep.subr.bf16.mxu0 %v3978
    %5119 = vmatpush1.bf16.msra.mxu0 %v3977
    %5120 = vmatprep.subr.bf16.mxu0 %v3980
    %5121 = vmatpush1.bf16.msra.mxu0 %v3979
    %5122 = vmatprep.subr.bf16.mxu0 %v3982
    %5123 = vmatpush1.bf16.msra.mxu0 %v3981
    %5124 = vmatprep.mubr.bf16.mxu0 %v1470
    %5125 = vmatmul.mubr.bf16.gmra.mrb[0].mxu0 %v1469
    %v5126 = vpop.f32.mrb[0].mxu0
    %v5127 = vadd.f32 %v5086, %v5126
    %v5128 = vpop.f32.mrb[0].mxu0
    %v5129 = vadd.f32 %v5088, %v5128
    %v5130 = vpop.f32.mrb[0].mxu0
    %v5131 = vpop.f32.mrb[0].mxu0
    %5132 = vdwg.mxu0
    %5133 = vmatprep.subr.bf16.mxu0 %v3984
    %5134 = vmatpush1.bf16.msra.mxu0 %v3983
    %5135 = vmatprep.subr.bf16.mxu0 %v3986
    %5136 = vmatpush1.bf16.msra.mxu0 %v3985
    %5137 = vmatprep.subr.bf16.mxu0 %v3988
    %5138 = vmatpush1.bf16.msra.mxu0 %v3987
    %5139 = vmatprep.subr.bf16.mxu0 %v3990
    %5140 = vmatpush1.bf16.msra.mxu0 %v3989
    %5141 = vmatprep.subr.bf16.mxu0 %v3992
    %5142 = vmatpush1.bf16.msra.mxu0 %v3991
    %5143 = vmatprep.subr.bf16.mxu0 %v3994
    %5144 = vmatpush1.bf16.msra.mxu0 %v3993
    %5145 = vmatprep.subr.bf16.mxu0 %v3996
    %5146 = vmatpush1.bf16.msra.mxu0 %v3995
    %5147 = vmatprep.subr.bf16.mxu0 %v3998
    %5148 = vmatpush1.bf16.msra.mxu0 %v3997
    %5149 = vmatprep.subr.bf16.mxu0 %v4000
    %5150 = vmatpush1.bf16.msra.mxu0 %v3999
    %5151 = vmatprep.subr.bf16.mxu0 %v4002
    %5152 = vmatpush1.bf16.msra.mxu0 %v4001
    %5153 = vmatprep.subr.bf16.mxu0 %v4004
    %5154 = vmatpush1.bf16.msra.mxu0 %v4003
    %5155 = vmatprep.subr.bf16.mxu0 %v4006
    %5156 = vmatpush1.bf16.msra.mxu0 %v4005
    %5157 = vmatprep.subr.bf16.mxu0 %v4008
    %5158 = vmatpush1.bf16.msra.mxu0 %v4007
    %5159 = vmatprep.subr.bf16.mxu0 %v4010
    %5160 = vmatpush1.bf16.msra.mxu0 %v4009
    %5161 = vmatprep.subr.bf16.mxu0 %v4012
    %5162 = vmatpush1.bf16.msra.mxu0 %v4011
    %5163 = vmatprep.subr.bf16.mxu0 %v4014
    %5164 = vmatpush1.bf16.msra.mxu0 %v4013
    %5165 = vmatprep.mubr.bf16.mxu0 %v1472
    %5166 = vmatmul.mubr.bf16.gmra.mrb[0].mxu0 %v1471
    %v5167 = vpop.f32.mrb[0].mxu0
    %v5168 = vadd.f32 %v5127, %v5167
    %v5169 = vpop.f32.mrb[0].mxu0
    %v5170 = vadd.f32 %v5129, %v5169
    %v5171 = vpop.f32.mrb[0].mxu0
    %v5172 = vpop.f32.mrb[0].mxu0
    %5173 = vdwg.mxu0
    %5174 = vmatprep.subr.bf16.mxu0 %v4016
    %5175 = vmatpush1.bf16.msra.mxu0 %v4015
    %5176 = vmatprep.subr.bf16.mxu0 %v4018
    %5177 = vmatpush1.bf16.msra.mxu0 %v4017
    %5178 = vmatprep.subr.bf16.mxu0 %v4020
    %5179 = vmatpush1.bf16.msra.mxu0 %v4019
    %5180 = vmatprep.subr.bf16.mxu0 %v4022
    %5181 = vmatpush1.bf16.msra.mxu0 %v4021
    %5182 = vmatprep.subr.bf16.mxu0 %v4024
    %5183 = vmatpush1.bf16.msra.mxu0 %v4023
    %5184 = vmatprep.subr.bf16.mxu0 %v4026
    %5185 = vmatpush1.bf16.msra.mxu0 %v4025
    %5186 = vmatprep.subr.bf16.mxu0 %v4028
    %5187 = vmatpush1.bf16.msra.mxu0 %v4027
    %5188 = vmatprep.subr.bf16.mxu0 %v4030
    %5189 = vmatpush1.bf16.msra.mxu0 %v4029
    %5190 = vmatprep.subr.bf16.mxu0 %v4032
    %5191 = vmatpush1.bf16.msra.mxu0 %v4031
    %5192 = vmatprep.subr.bf16.mxu0 %v4034
    %5193 = vmatpush1.bf16.msra.mxu0 %v4033
    %5194 = vmatprep.subr.bf16.mxu0 %v4036
    %5195 = vmatpush1.bf16.msra.mxu0 %v4035
    %5196 = vmatprep.subr.bf16.mxu0 %v4038
    %5197 = vmatpush1.bf16.msra.mxu0 %v4037
    %5198 = vmatprep.subr.bf16.mxu0 %v4040
    %5199 = vmatpush1.bf16.msra.mxu0 %v4039
    %5200 = vmatprep.subr.bf16.mxu0 %v4042
    %5201 = vmatpush1.bf16.msra.mxu0 %v4041
    %5202 = vmatprep.subr.bf16.mxu0 %v4044
    %5203 = vmatpush1.bf16.msra.mxu0 %v4043
    %5204 = vmatprep.subr.bf16.mxu0 %v4046
    %5205 = vmatpush1.bf16.msra.mxu0 %v4045
    %5206 = vmatprep.mubr.bf16.mxu0 %v1474
    %5207 = vmatmul.mubr.bf16.gmra.mrb[0].mxu0 %v1473
    %v5208 = vpop.f32.mrb[0].mxu0
    %v5209 = vadd.f32 %v5168, %v5208
    %v5210 = vpop.f32.mrb[0].mxu0
    %v5211 = vadd.f32 %v5170, %v5210
    %v5212 = vpop.f32.mrb[0].mxu0
    %v5213 = vpop.f32.mrb[0].mxu0
    %5214 = vdwg.mxu0
    %5215 = vst [vmem:[%s7] sm:$0xff] %v5209
    %5216 = vst [vmem:[%s7 + $0x8] sm:$0xff] %v5211
    // Predicated region
    $region54: #{mycnn1_forward.1} parent=1 // pred_check
      _
    $region55: #{mycnn1_forward.1} parent=1 // pred_check_branch
      %5218 = sbr.rel (0) target = $region57
    $region56: #{mycnn1_forward.1} parent=1 // pred_region
      _
    $region57: #{mycnn1_forward.1} parent=1 // pred_fallthru
      _
    // Predicated region
    $region58: #{mycnn1_forward.1} parent=1 // pred_check
      _
    $region59: #{mycnn1_forward.1} parent=1 // pred_check_branch
      %5220 = sbr.rel (0) target = $region61
    $region60: #{mycnn1_forward.1} parent=1 // pred_region
      _
    $region61: #{mycnn1_forward.1} parent=1 // pred_fallthru
      _
    %5221 = vsyncpa [#allocation3], 1
    %5222 = vsyncpa [#allocation5], 1
    %5223 = vsyncpa [#allocation8], 1
    %5224 = vsyncpa [#allocation11], 1

</llo_original>
